<compile_context>
chip_gen: v7x
topology: tpu7x:2x2x1
jax: 0.10.0
libtpu: 0.0.40
codegen_flags: <defaults>
</compile_context>

<pallas_src>
import jax
import jax.numpy as jnp
from jax.experimental import pallas as pl
from jax.experimental.pallas import tpu as pltpu

IN_DIM = 1 * 28 * 28      # 784 (kept un-padded end-to-end)
HID1 = 526                # logical hidden 1
HID2 = 128                # hidden 2 (already lane-aligned)

HID1_P = 640              # 526 padded up to a multiple of 128 (weights only)

_SUBLANE = 16             # keep batch tiles bf16-sublane aligned


def _round_up(x, m):
    return ((x + m - 1) // m) * m


def _pad2(a, rows, cols):
    """Zero-pad a 2-D array up to (rows, cols)."""
    return jnp.pad(a, ((0, rows - a.shape[0]), (0, cols - a.shape[1])))


def _num_tensorcores():
    """Best-effort TensorCores-per-device count (1 on v5e/v6e, 2 on megacore)."""
    try:
        info = pltpu.get_tpu_info()
        for attr in ("num_cores", "num_tensorcores", "tensorcores_per_chip",
                     "cores_per_chip"):
            v = getattr(info, attr, None)
            if v:
                return int(v)
    except Exception:
        pass
    try:
        kind = jax.devices()[0].device_kind.lower()
        if ("v7" in kind) or ("v4" in kind) or ("v5p" in kind):
            return 2
    except Exception:
        pass
    return 1


def _choose_batch_tile(B, batch_tile, num_cores):
    """Largest sublane-aligned tile; only split the batch for multi-TC chips."""
    bt = min(batch_tile, _round_up(B, _SUBLANE))
    bt = max(_SUBLANE, _round_up(bt, _SUBLANE))
    if num_cores > 1 and B > _SUBLANE * num_cores:
        # Megacore (v7x): keep the grid an even multiple of the core count so
        # no TensorCore idles on a trailing odd step.
        steps = max(num_cores, -(-B // bt))
        steps = _round_up(steps, num_cores)
        bt = max(_SUBLANE, _round_up(-(-B // steps), _SUBLANE))
    return bt


def _sigmoid(x):
    # sigmoid(x) == 0.5 * (1 + tanh(x / 2)): one EUP push instead of exp+div.
    return 0.5 * jnp.tanh(0.5 * x) + 0.5


def ae_kernel(x_ref,
              w1_ref, b1_ref,
              w2_ref, b2_ref,
              w3_ref, b3_ref,
              w4_ref, b4_ref,
              o_ref):
    """Fused encoder+decoder forward for one batch tile.

    x_ref:  (TB, 784)  bfloat16
    wN_ref: (in, out)  bfloat16 (hidden dims zero-padded to 640,
                                 pre-transposed from torch (out, in))
    bN_ref: (1, out)   float32
    o_ref:  (TB, 784)  out_dtype (f32 by default)
    """
    x = x_ref[...]                                          # already bf16

    # encoder: Linear(784, 526) + ReLU     (MXU bf16 operands, f32 accumulate)
    h = jnp.dot(x, w1_ref[...],
                preferred_element_type=jnp.float32) + b1_ref[...]
    h = jnp.maximum(h, 0.0)

    # encoder: Linear(526, 128) + Sigmoid
    z = jnp.dot(h.astype(jnp.bfloat16), w2_ref[...],
                preferred_element_type=jnp.float32) + b2_ref[...]
    z = _sigmoid(z)

    # decoder: Linear(128, 526) + ReLU
    d = jnp.dot(z.astype(jnp.bfloat16), w3_ref[...],
                preferred_element_type=jnp.float32) + b3_ref[...]
    d = jnp.maximum(d, 0.0)

    # decoder: Linear(526, 784) + Sigmoid
    y = jnp.dot(d.astype(jnp.bfloat16), w4_ref[...],
                preferred_element_type=jnp.float32) + b4_ref[...]
    o_ref[...] = _sigmoid(y).astype(o_ref.dtype)


def mnist_ae_forward(x, params, *, batch_tile=512, num_cores=None,
                     out_dtype=jnp.float32):
    """x: (B, 1, 28, 28) NCHW. Returns same shape (dtype out_dtype)."""
    og_shape = x.shape
    B = og_shape[0]
    x_flat = x.reshape(B, -1)                 # torch.nn.Flatten on NCHW
    assert x_flat.shape[1] == IN_DIM

    if num_cores is None:
        num_cores = _num_tensorcores()
    bt = _choose_batch_tile(B, batch_tile, num_cores)
    B_pad = _round_up(B, bt)

    # Input goes to the MXU in bf16 anyway; cast here so it is DMA'd as bf16.
    # Only the batch dim is ever padded (feature dim stays at 784).
    x_p = x_flat.astype(jnp.bfloat16)
    if B_pad != B:
        x_p = jnp.pad(x_p, ((0, B_pad - B), (0, 0)))

    w1, b1, w2, b2, w3, b3, w4, b4 = params

    # Hidden dims zero-padded to 640 (lane-dense); weights bf16, biases f32.
    # Padded units contribute exactly 0 through the ReLU/linear paths.
    w1p = _pad2(w1, IN_DIM, HID1_P).astype(jnp.bfloat16)   # (784, 640)
    b1p = _pad2(b1, 1, HID1_P)                             # (1, 640)
    w2p = _pad2(w2, HID1_P, HID2).astype(jnp.bfloat16)     # (640, 128)
    b2p = b2                                               # (1, 128)
    w3p = _pad2(w3, HID2, HID1_P).astype(jnp.bfloat16)     # (128, 640)
    b3p = _pad2(b3, 1, HID1_P)                             # (1, 640)
    w4p = _pad2(w4, HID1_P, IN_DIM).astype(jnp.bfloat16)   # (640, 784)
    b4p = b4                                               # (1, 784)

    # Weights/biases are grid-invariant (index_map -> block (0, 0)); Pallas
    # will not re-fetch them across batch tiles.
    weight_spec = lambda shape: pl.BlockSpec(shape, lambda i: (0, 0))

    out = pl.pallas_call(
        ae_kernel,
        out_shape=jax.ShapeDtypeStruct((B_pad, IN_DIM), out_dtype),
        grid_spec=pltpu.PrefetchScalarGridSpec(
            num_scalar_prefetch=0,
            grid=(B_pad // bt,),
            in_specs=[
                pl.BlockSpec((bt, IN_DIM), lambda i: (i, 0)),            # x
                weight_spec((IN_DIM, HID1_P)), weight_spec((1, HID1_P)),  # L1
                weight_spec((HID1_P, HID2)),   weight_spec((1, HID2)),    # L2
                weight_spec((HID2, HID1_P)),   weight_spec((1, HID1_P)),  # L3
                weight_spec((HID1_P, IN_DIM)), weight_spec((1, IN_DIM)),  # L4
            ],
            out_specs=pl.BlockSpec((bt, IN_DIM), lambda i: (i, 0)),
        ),
        compiler_params=pltpu.CompilerParams(
            dimension_semantics=("parallel",),
            vmem_limit_bytes=40 << 20,
        ),
    )(x_p, w1p, b1p, w2p, b2p, w3p, b3p, w4p, b4p)

    if B_pad != B:
        out = out[:B]
    return out.reshape(og_shape)


def init_params(key):
    """Deterministic init mimicking torch.nn.Linear (uniform +/- 1/sqrt(fan_in)).

    Weights stored transposed as (in_features, out_features) so the kernel
    computes x @ W; biases stored as (1, out_features).
    """
    dims = [(IN_DIM, HID1), (HID1, HID2), (HID2, HID1), (HID1, IN_DIM)]
    params = []
    keys = jax.random.split(key, 2 * len(dims))
    for li, (fan_in, fan_out) in enumerate(dims):
        bound = 1.0 / jnp.sqrt(float(fan_in))
        w = jax.random.uniform(keys[2 * li], (fan_in, fan_out),
                               minval=-bound, maxval=bound, dtype=jnp.float32)
        b = jax.random.uniform(keys[2 * li + 1], (1, fan_out),
                               minval=-bound, maxval=bound, dtype=jnp.float32)
        params += [w, b]
    return tuple(params)


def reference_forward(x, params):
    """Plain-JAX f32 reference for correctness checking."""
    w1, b1, w2, b2, w3, b3, w4, b4 = params
    og_shape = x.shape
    h = x.reshape(x.shape[0], -1)
    h = jnp.maximum(h @ w1 + b1, 0.0)
    h = jax.nn.sigmoid(h @ w2 + b2)
    h = jnp.maximum(h @ w3 + b3, 0.0)
    h = jax.nn.sigmoid(h @ w4 + b4)
    return h.reshape(og_shape)


if __name__ == "__main__":
    key = jax.random.PRNGKey(0)
    k_params, k_x = jax.random.split(key)

    params = init_params(k_params)
    # Small MNIST-like batch, NCHW.
    x = jax.random.uniform(k_x, (16, 1, 28, 28), dtype=jnp.float32)

    y = mnist_ae_forward(x, params)
    y = jax.block_until_ready(y)

    y_ref = reference_forward(x, params)
    assert y.shape == x.shape
    assert y.dtype == jnp.float32

    # bf16 MXU operands with f32 accumulation -> small tolerance; also check
    # mean abs error so a systematic bf16 bias cannot hide under atol.
    err = jnp.abs(y.astype(jnp.float32) - y_ref)
    max_err = float(err.max())
    mean_err = float(err.mean())
    assert max_err < 2e-2, f"max abs err {max_err}"
    assert mean_err < 5e-3, f"mean abs err {mean_err}"

    print("KERNEL_OK")
</pallas_src>

<mosaic_0001>
module attributes {stable_mosaic.version = 11 : i64} {
  func.func @ae_kernel(%arg0: i32, %arg1: memref<16x784xbf16, #tpu.memory_space<vmem>>, %arg2: memref<784x640xbf16, #tpu.memory_space<vmem>>, %arg3: memref<1x640xf32, #tpu.memory_space<vmem>>, %arg4: memref<640x128xbf16, #tpu.memory_space<vmem>>, %arg5: memref<1x128xf32, #tpu.memory_space<vmem>>, %arg6: memref<128x640xbf16, #tpu.memory_space<vmem>>, %arg7: memref<1x640xf32, #tpu.memory_space<vmem>>, %arg8: memref<640x784xbf16, #tpu.memory_space<vmem>>, %arg9: memref<1x784xf32, #tpu.memory_space<vmem>>, %arg10: memref<16x784xf32, #tpu.memory_space<vmem>>) attributes {dimension_semantics = [#tpu.dimension_semantics<parallel>], iteration_bounds = array<i64: 1>, scalar_prefetch = 0 : i64, scratch_operands = 0 : i64, tpu.core_type = #tpu.core_type<tc>, window_params = [{transform_indices = @transform_0, window_bounds = array<i64: 16, 784>}, {pipeline_mode = #tpu.pipeline_mode<synchronous>, transform_indices = @transform_1, window_bounds = array<i64: 784, 640>}, {pipeline_mode = #tpu.pipeline_mode<synchronous>, transform_indices = @transform_2, window_bounds = array<i64: 1, 640>}, {pipeline_mode = #tpu.pipeline_mode<synchronous>, transform_indices = @transform_3, window_bounds = array<i64: 640, 128>}, {pipeline_mode = #tpu.pipeline_mode<synchronous>, transform_indices = @transform_4, window_bounds = array<i64: 1, 128>}, {pipeline_mode = #tpu.pipeline_mode<synchronous>, transform_indices = @transform_5, window_bounds = array<i64: 128, 640>}, {pipeline_mode = #tpu.pipeline_mode<synchronous>, transform_indices = @transform_6, window_bounds = array<i64: 1, 640>}, {pipeline_mode = #tpu.pipeline_mode<synchronous>, transform_indices = @transform_7, window_bounds = array<i64: 640, 784>}, {pipeline_mode = #tpu.pipeline_mode<synchronous>, transform_indices = @transform_8, window_bounds = array<i64: 1, 784>}, {transform_indices = @transform_9, window_bounds = array<i64: 16, 784>}]} {
    %c0 = arith.constant 0 : index
    %c0_0 = arith.constant 0 : index
    %0 = vector.load %arg1[%c0, %c0_0] : memref<16x784xbf16, #tpu.memory_space<vmem>>, vector<16x784xbf16>
    %c0_1 = arith.constant 0 : index
    %c0_2 = arith.constant 0 : index
    %1 = vector.load %arg2[%c0_1, %c0_2] : memref<784x640xbf16, #tpu.memory_space<vmem>>, vector<784x640xbf16>
    %cst = arith.constant dense<0.000000e+00> : vector<16x640xf32>
    %2 = tpu.matmul %0, %1, %cst {dimension_numbers = #tpu.dot_dimension_numbers<[1], [0], [0], [1], [0, 0, 1, 1], [], []>} : vector<16x784xbf16>, vector<784x640xbf16>, vector<16x640xf32> -> vector<16x640xf32>
    %c0_3 = arith.constant 0 : index
    %c0_4 = arith.constant 0 : index
    %3 = vector.load %arg3[%c0_3, %c0_4] : memref<1x640xf32, #tpu.memory_space<vmem>>, vector<1x640xf32>
    %4 = vector.broadcast %3 : vector<1x640xf32> to vector<16x640xf32>
    %5 = arith.addf %2, %4 : vector<16x640xf32>
    %cst_5 = arith.constant 0.000000e+00 : f32
    %6 = vector.broadcast %cst_5 : f32 to vector<16x640xf32>
    %7 = arith.maximumf %5, %6 : vector<16x640xf32>
    %8 = arith.truncf %7 : vector<16x640xf32> to vector<16x640xbf16>
    %c0_6 = arith.constant 0 : index
    %c0_7 = arith.constant 0 : index
    %9 = vector.load %arg4[%c0_6, %c0_7] : memref<640x128xbf16, #tpu.memory_space<vmem>>, vector<640x128xbf16>
    %cst_8 = arith.constant dense<0.000000e+00> : vector<16x128xf32>
    %10 = tpu.matmul %8, %9, %cst_8 {dimension_numbers = #tpu.dot_dimension_numbers<[1], [0], [0], [1], [0, 0, 1, 1], [], []>} : vector<16x640xbf16>, vector<640x128xbf16>, vector<16x128xf32> -> vector<16x128xf32>
    %c0_9 = arith.constant 0 : index
    %c0_10 = arith.constant 0 : index
    %11 = vector.load %arg5[%c0_9, %c0_10] : memref<1x128xf32, #tpu.memory_space<vmem>>, vector<1x128xf32>
    %12 = vector.broadcast %11 : vector<1x128xf32> to vector<16x128xf32>
    %13 = arith.addf %10, %12 : vector<16x128xf32>
    %cst_11 = arith.constant 5.000000e-01 : f32
    %14 = vector.broadcast %cst_11 : f32 to vector<16x128xf32>
    %15 = arith.mulf %14, %13 : vector<16x128xf32>
    %16 = math.tanh %15 : vector<16x128xf32>
    %cst_12 = arith.constant 5.000000e-01 : f32
    %17 = vector.broadcast %cst_12 : f32 to vector<16x128xf32>
    %18 = arith.mulf %17, %16 : vector<16x128xf32>
    %cst_13 = arith.constant 5.000000e-01 : f32
    %19 = vector.broadcast %cst_13 : f32 to vector<16x128xf32>
    %20 = arith.addf %18, %19 : vector<16x128xf32>
    %21 = arith.truncf %20 : vector<16x128xf32> to vector<16x128xbf16>
    %c0_14 = arith.constant 0 : index
    %c0_15 = arith.constant 0 : index
    %22 = vector.load %arg6[%c0_14, %c0_15] : memref<128x640xbf16, #tpu.memory_space<vmem>>, vector<128x640xbf16>
    %cst_16 = arith.constant dense<0.000000e+00> : vector<16x640xf32>
    %23 = tpu.matmul %21, %22, %cst_16 {dimension_numbers = #tpu.dot_dimension_numbers<[1], [0], [0], [1], [0, 0, 1, 1], [], []>} : vector<16x128xbf16>, vector<128x640xbf16>, vector<16x640xf32> -> vector<16x640xf32>
    %c0_17 = arith.constant 0 : index
    %c0_18 = arith.constant 0 : index
    %24 = vector.load %arg7[%c0_17, %c0_18] : memref<1x640xf32, #tpu.memory_space<vmem>>, vector<1x640xf32>
    %25 = vector.broadcast %24 : vector<1x640xf32> to vector<16x640xf32>
    %26 = arith.addf %23, %25 : vector<16x640xf32>
    %cst_19 = arith.constant 0.000000e+00 : f32
    %27 = vector.broadcast %cst_19 : f32 to vector<16x640xf32>
    %28 = arith.maximumf %26, %27 : vector<16x640xf32>
    %29 = arith.truncf %28 : vector<16x640xf32> to vector<16x640xbf16>
    %c0_20 = arith.constant 0 : index
    %c0_21 = arith.constant 0 : index
    %30 = vector.load %arg8[%c0_20, %c0_21] : memref<640x784xbf16, #tpu.memory_space<vmem>>, vector<640x784xbf16>
    %cst_22 = arith.constant dense<0.000000e+00> : vector<16x784xf32>
    %31 = tpu.matmul %29, %30, %cst_22 {dimension_numbers = #tpu.dot_dimension_numbers<[1], [0], [0], [1], [0, 0, 1, 1], [], []>} : vector<16x640xbf16>, vector<640x784xbf16>, vector<16x784xf32> -> vector<16x784xf32>
    %c0_23 = arith.constant 0 : index
    %c0_24 = arith.constant 0 : index
    %32 = vector.load %arg9[%c0_23, %c0_24] : memref<1x784xf32, #tpu.memory_space<vmem>>, vector<1x784xf32>
    %33 = vector.broadcast %32 : vector<1x784xf32> to vector<16x784xf32>
    %34 = arith.addf %31, %33 : vector<16x784xf32>
    %cst_25 = arith.constant 5.000000e-01 : f32
    %35 = vector.broadcast %cst_25 : f32 to vector<16x784xf32>
    %36 = arith.mulf %35, %34 : vector<16x784xf32>
    %37 = math.tanh %36 : vector<16x784xf32>
    %cst_26 = arith.constant 5.000000e-01 : f32
    %38 = vector.broadcast %cst_26 : f32 to vector<16x784xf32>
    %39 = arith.mulf %38, %37 : vector<16x784xf32>
    %cst_27 = arith.constant 5.000000e-01 : f32
    %40 = vector.broadcast %cst_27 : f32 to vector<16x784xf32>
    %41 = arith.addf %39, %40 : vector<16x784xf32>
    %c0_28 = arith.constant 0 : index
    %c0_29 = arith.constant 0 : index
    %42 = vector.load %arg10[%c0_28, %c0_29] : memref<16x784xf32, #tpu.memory_space<vmem>>, vector<16x784xf32>
    tpu.vector_store %arg10[%c0_28, %c0_29], %41 {strides = array<i32>} : memref<16x784xf32, #tpu.memory_space<vmem>>, vector<16x784xf32>,
    return
  }
  func.func @transform_0(%arg0: i32) -> (i32, i32) {
    %c0_i32 = arith.constant 0 : i32
    %c0_i32_0 = arith.constant 0 : i32
    return %arg0, %c0_i32 : i32, i32
  }
  func.func @transform_1(%arg0: i32) -> (i32, i32) {
    %c0_i32 = arith.constant 0 : i32
    %c0_i32_0 = arith.constant 0 : i32
    %c0_i32_1 = arith.constant 0 : i32
    return %c0_i32, %c0_i32_0 : i32, i32
  }
  func.func @transform_2(%arg0: i32) -> (i32, i32) {
    %c0_i32 = arith.constant 0 : i32
    %c0_i32_0 = arith.constant 0 : i32
    %c0_i32_1 = arith.constant 0 : i32
    return %c0_i32, %c0_i32_0 : i32, i32
  }
  func.func @transform_3(%arg0: i32) -> (i32, i32) {
    %c0_i32 = arith.constant 0 : i32
    %c0_i32_0 = arith.constant 0 : i32
    %c0_i32_1 = arith.constant 0 : i32
    return %c0_i32, %c0_i32_0 : i32, i32
  }
  func.func @transform_4(%arg0: i32) -> (i32, i32) {
    %c0_i32 = arith.constant 0 : i32
    %c0_i32_0 = arith.constant 0 : i32
    %c0_i32_1 = arith.constant 0 : i32
    return %c0_i32, %c0_i32_0 : i32, i32
  }
  func.func @transform_5(%arg0: i32) -> (i32, i32) {
    %c0_i32 = arith.constant 0 : i32
    %c0_i32_0 = arith.constant 0 : i32
    %c0_i32_1 = arith.constant 0 : i32
    return %c0_i32, %c0_i32_0 : i32, i32
  }
  func.func @transform_6(%arg0: i32) -> (i32, i32) {
    %c0_i32 = arith.constant 0 : i32
    %c0_i32_0 = arith.constant 0 : i32
    %c0_i32_1 = arith.constant 0 : i32
    return %c0_i32, %c0_i32_0 : i32, i32
  }
  func.func @transform_7(%arg0: i32) -> (i32, i32) {
    %c0_i32 = arith.constant 0 : i32
    %c0_i32_0 = arith.constant 0 : i32
    %c0_i32_1 = arith.constant 0 : i32
    return %c0_i32, %c0_i32_0 : i32, i32
  }
  func.func @transform_8(%arg0: i32) -> (i32, i32) {
    %c0_i32 = arith.constant 0 : i32
    %c0_i32_0 = arith.constant 0 : i32
    %c0_i32_1 = arith.constant 0 : i32
    return %c0_i32, %c0_i32_0 : i32, i32
  }
  func.func @transform_9(%arg0: i32) -> (i32, i32) {
    %c0_i32 = arith.constant 0 : i32
    %c0_i32_0 = arith.constant 0 : i32
    return %arg0, %c0_i32 : i32, i32
  }
}

</mosaic_0001>

<llo_original>
// kernel: tpu_custom_call.1
$region0: #{tpu_custom_call.1}
  #allocation0 [shape = 'u32[]', space=smem, size = 0x4, offset = 0x4, fixed_abs, tag = 'smem constant byte address 0x4 - core index']
  #allocation1 [shape = 'u32[144,128]{1,0:T(1,128)}', space=vmem, size = 0x12000, scoped, tag = 'internal scratch']
  %s0 = inlined_call_operand.vmem [shape: bf16[16,784], index: 0, kind: input, shape index: {}]
  %s1 = inlined_call_operand.vmem [shape: bf16[784,640], index: 1, kind: input, shape index: {}]
  %s2 = inlined_call_operand.vmem [shape: f32[1,640], index: 2, kind: input, shape index: {}]
  %s3 = inlined_call_operand.vmem [shape: bf16[640,128], index: 3, kind: input, shape index: {}]
  %s4 = inlined_call_operand.vmem [shape: f32[1,128], index: 4, kind: input, shape index: {}]
  %s5 = inlined_call_operand.vmem [shape: bf16[128,640], index: 5, kind: input, shape index: {}]
  %s6 = inlined_call_operand.vmem [shape: f32[1,640], index: 6, kind: input, shape index: {}]
  %s7 = inlined_call_operand.vmem [shape: bf16[640,784], index: 7, kind: input, shape index: {}]
  %s8 = inlined_call_operand.vmem [shape: f32[1,784], index: 8, kind: input, shape index: {}]
  %s9 = inlined_call_operand.hbm [shape: f32[16,784], index: 9, kind: output, shape index: {}]
  %s10 = sld [smem:[#allocation0]]
  $region46: #{tpu_custom_call.1} parent=0
    _
  %s12 = ssub.s32 1, %s10
  %s13 = scalar_select 0, %s12, %s10
  $region1: #{tpu_custom_call.1} parent=0
    #allocation2 [shape = 'u8[57344]{0}', space=vmem, size = 0xe000, scoped, tag = 'output window, operand 0, single buffered']
    #allocation3 [shape = 's32[1]{0}', space=sflag, size = 0x4, scoped, tag = 'scoped memory for tpu_custom_call.1']
    %14 = vsyncpa [#allocation3], 0
    // Predicated region
    $region2: #{tpu_custom_call.1} parent=1 // pred_check
      _
    $region3: #{tpu_custom_call.1} parent=1 // pred_check_branch
      %16 = sbr.rel (0) target = $region5
    $region4: #{tpu_custom_call.1} parent=1 // pred_region
      _
    $region5: #{tpu_custom_call.1} parent=1 // pred_fallthru
      _
    // Predicated region
    $region6: #{tpu_custom_call.1} parent=1 // pred_check
      _
    $region7: #{tpu_custom_call.1} parent=1 // pred_check_branch
      %18 = sbr.rel (0) target = $region9
    $region8: #{tpu_custom_call.1} parent=1 // pred_region
      _
    $region9: #{tpu_custom_call.1} parent=1 // pred_fallthru
      _
    // Predicated region
    $region10: #{tpu_custom_call.1} parent=1 // pred_check
      _
    $region11: #{tpu_custom_call.1} parent=1 // pred_check_branch
      %20 = sbr.rel (0) target = $region13
    $region12: #{tpu_custom_call.1} parent=1 // pred_region
      _
    $region13: #{tpu_custom_call.1} parent=1 // pred_fallthru
      _
    // Predicated region
    $region14: #{tpu_custom_call.1} parent=1 // pred_check
      _
    $region15: #{tpu_custom_call.1} parent=1 // pred_check_branch
      %22 = sbr.rel (0) target = $region17
    $region16: #{tpu_custom_call.1} parent=1 // pred_region
      _
    $region17: #{tpu_custom_call.1} parent=1 // pred_fallthru
      _
    // Predicated region
    $region18: #{tpu_custom_call.1} parent=1 // pred_check
      _
    $region19: #{tpu_custom_call.1} parent=1 // pred_check_branch
      %24 = sbr.rel (0) target = $region21
    $region20: #{tpu_custom_call.1} parent=1 // pred_region
      _
    $region21: #{tpu_custom_call.1} parent=1 // pred_fallthru
      _
    // Predicated region
    $region22: #{tpu_custom_call.1} parent=1 // pred_check
      _
    $region23: #{tpu_custom_call.1} parent=1 // pred_check_branch
      %26 = sbr.rel (0) target = $region25
    $region24: #{tpu_custom_call.1} parent=1 // pred_region
      _
    $region25: #{tpu_custom_call.1} parent=1 // pred_fallthru
      _
    // Predicated region
    $region26: #{tpu_custom_call.1} parent=1 // pred_check
      _
    $region27: #{tpu_custom_call.1} parent=1 // pred_check_branch
      %28 = sbr.rel (0) target = $region29
    $region28: #{tpu_custom_call.1} parent=1 // pred_region
      _
    $region29: #{tpu_custom_call.1} parent=1 // pred_fallthru
      _
    // Predicated region
    $region30: #{tpu_custom_call.1} parent=1 // pred_check
      _
    $region31: #{tpu_custom_call.1} parent=1 // pred_check_branch
      %30 = sbr.rel (0) target = $region33
    $region32: #{tpu_custom_call.1} parent=1 // pred_region
      _
    $region33: #{tpu_custom_call.1} parent=1 // pred_fallthru
      _
    // Predicated region
    $region34: #{tpu_custom_call.1} parent=1 // pred_check
      _
    $region35: #{tpu_custom_call.1} parent=1 // pred_check_branch
      %32 = sbr.rel (0) target = $region37
    $region36: #{tpu_custom_call.1} parent=1 // pred_region
      _
    $region37: #{tpu_custom_call.1} parent=1 // pred_fallthru
      _
    %v34 = vld [vmem:[%s0] sm:$0xff]
    %v35 = vld [vmem:[%s0 + $0x8] sm:$0xff]
    %v36 = vld [vmem:[%s0 + $0x10] sm:$0xff]
    %v37 = vld [vmem:[%s0 + $0x18] sm:$0xf]
    %v38 = vld [vmem:[%s0 + $0x1c] sm:$0xff]
    %v39 = vld [vmem:[%s0 + $0x24] sm:$0xff]
    %v40 = vld [vmem:[%s0 + $0x2c] sm:$0xff]
    %v41 = vld [vmem:[%s0 + $0x34] sm:$0xf]
    %v42 = vld [vmem:[%s1] sm:$0xff]
    %v43 = vld [vmem:[%s1 + $0x8] sm:$0xff]
    %v44 = vld [vmem:[%s1 + $0x10] sm:$0xf]
    %v45 = vld [vmem:[%s1 + $0x14] sm:$0xff]
    %v46 = vld [vmem:[%s1 + $0x1c] sm:$0xff]
    %v47 = vld [vmem:[%s1 + $0x24] sm:$0xf]
    %v48 = vld [vmem:[%s1 + $0x28] sm:$0xff]
    %v49 = vld [vmem:[%s1 + $0x30] sm:$0xff]
    %v50 = vld [vmem:[%s1 + $0x38] sm:$0xf]
    %v51 = vld [vmem:[%s1 + $0x3c] sm:$0xff]
    %v52 = vld [vmem:[%s1 + $0x44] sm:$0xff]
    %v53 = vld [vmem:[%s1 + $0x4c] sm:$0xf]
    %v54 = vld [vmem:[%s1 + $0x50] sm:$0xff]
    %v55 = vld [vmem:[%s1 + $0x58] sm:$0xff]
    %v56 = vld [vmem:[%s1 + $0x60] sm:$0xf]
    %v57 = vld [vmem:[%s1 + $0x64] sm:$0xff]
    %v58 = vld [vmem:[%s1 + $0x6c] sm:$0xff]
    %v59 = vld [vmem:[%s1 + $0x74] sm:$0xf]
    %v60 = vld [vmem:[%s1 + $0x78] sm:$0xff]
    %v61 = vld [vmem:[%s1 + $0x80] sm:$0xff]
    %v62 = vld [vmem:[%s1 + $0x88] sm:$0xf]
    %v63 = vld [vmem:[%s1 + $0x8c] sm:$0xff]
    %v64 = vld [vmem:[%s1 + $0x94] sm:$0xff]
    %v65 = vld [vmem:[%s1 + $0x9c] sm:$0xf]
    %v66 = vld [vmem:[%s1 + $0xa0] sm:$0xff]
    %v67 = vld [vmem:[%s1 + $0xa8] sm:$0xff]
    %v68 = vld [vmem:[%s1 + $0xb0] sm:$0xf]
    %v69 = vld [vmem:[%s1 + $0xb4] sm:$0xff]
    %v70 = vld [vmem:[%s1 + $0xbc] sm:$0xff]
    %v71 = vld [vmem:[%s1 + $0xc4] sm:$0xf]
    %v72 = vld [vmem:[%s1 + $0xc8] sm:$0xff]
    %v73 = vld [vmem:[%s1 + $0xd0] sm:$0xff]
    %v74 = vld [vmem:[%s1 + $0xd8] sm:$0xf]
    %v75 = vld [vmem:[%s1 + $0xdc] sm:$0xff]
    %v76 = vld [vmem:[%s1 + $0xe4] sm:$0xff]
    %v77 = vld [vmem:[%s1 + $0xec] sm:$0xf]
    %v78 = vld [vmem:[%s1 + $0xf0] sm:$0xff]
    %v79 = vld [vmem:[%s1 + $0xf8] sm:$0xff]
    %v80 = vld [vmem:[%s1 + $0x100] sm:$0xf]
    %v81 = vld [vmem:[%s1 + $0x104] sm:$0xff]
    %v82 = vld [vmem:[%s1 + $0x10c] sm:$0xff]
    %v83 = vld [vmem:[%s1 + $0x114] sm:$0xf]
    %v84 = vld [vmem:[%s1 + $0x118] sm:$0xff]
    %v85 = vld [vmem:[%s1 + $0x120] sm:$0xff]
    %v86 = vld [vmem:[%s1 + $0x128] sm:$0xf]
    %v87 = vld [vmem:[%s1 + $0x12c] sm:$0xff]
    %v88 = vld [vmem:[%s1 + $0x134] sm:$0xff]
    %v89 = vld [vmem:[%s1 + $0x13c] sm:$0xf]
    %v90 = vld [vmem:[%s1 + $0x140] sm:$0xff]
    %v91 = vld [vmem:[%s1 + $0x148] sm:$0xff]
    %v92 = vld [vmem:[%s1 + $0x150] sm:$0xf]
    %v93 = vld [vmem:[%s1 + $0x154] sm:$0xff]
    %v94 = vld [vmem:[%s1 + $0x15c] sm:$0xff]
    %v95 = vld [vmem:[%s1 + $0x164] sm:$0xf]
    %v96 = vld [vmem:[%s1 + $0x168] sm:$0xff]
    %v97 = vld [vmem:[%s1 + $0x170] sm:$0xff]
    %v98 = vld [vmem:[%s1 + $0x178] sm:$0xf]
    %v99 = vld [vmem:[%s1 + $0x17c] sm:$0xff]
    %v100 = vld [vmem:[%s1 + $0x184] sm:$0xff]
    %v101 = vld [vmem:[%s1 + $0x18c] sm:$0xf]
    %v102 = vld [vmem:[%s1 + $0x190] sm:$0xff]
    %v103 = vld [vmem:[%s1 + $0x198] sm:$0xff]
    %v104 = vld [vmem:[%s1 + $0x1a0] sm:$0xf]
    %v105 = vld [vmem:[%s1 + $0x1a4] sm:$0xff]
    %v106 = vld [vmem:[%s1 + $0x1ac] sm:$0xff]
    %v107 = vld [vmem:[%s1 + $0x1b4] sm:$0xf]
    %v108 = vld [vmem:[%s1 + $0x1b8] sm:$0xff]
    %v109 = vld [vmem:[%s1 + $0x1c0] sm:$0xff]
    %v110 = vld [vmem:[%s1 + $0x1c8] sm:$0xf]
    %v111 = vld [vmem:[%s1 + $0x1cc] sm:$0xff]
    %v112 = vld [vmem:[%s1 + $0x1d4] sm:$0xff]
    %v113 = vld [vmem:[%s1 + $0x1dc] sm:$0xf]
    %v114 = vld [vmem:[%s1 + $0x1e0] sm:$0xff]
    %v115 = vld [vmem:[%s1 + $0x1e8] sm:$0xff]
    %v116 = vld [vmem:[%s1 + $0x1f0] sm:$0xf]
    %v117 = vld [vmem:[%s1 + $0x1f4] sm:$0xff]
    %v118 = vld [vmem:[%s1 + $0x1fc] sm:$0xff]
    %v119 = vld [vmem:[%s1 + $0x204] sm:$0xf]
    %v120 = vld [vmem:[%s1 + $0x208] sm:$0xff]
    %v121 = vld [vmem:[%s1 + $0x210] sm:$0xff]
    %v122 = vld [vmem:[%s1 + $0x218] sm:$0xf]
    %v123 = vld [vmem:[%s1 + $0x21c] sm:$0xff]
    %v124 = vld [vmem:[%s1 + $0x224] sm:$0xff]
    %v125 = vld [vmem:[%s1 + $0x22c] sm:$0xf]
    %v126 = vld [vmem:[%s1 + $0x230] sm:$0xff]
    %v127 = vld [vmem:[%s1 + $0x238] sm:$0xff]
    %v128 = vld [vmem:[%s1 + $0x240] sm:$0xf]
    %v129 = vld [vmem:[%s1 + $0x244] sm:$0xff]
    %v130 = vld [vmem:[%s1 + $0x24c] sm:$0xff]
    %v131 = vld [vmem:[%s1 + $0x254] sm:$0xf]
    %v132 = vld [vmem:[%s1 + $0x258] sm:$0xff]
    %v133 = vld [vmem:[%s1 + $0x260] sm:$0xff]
    %v134 = vld [vmem:[%s1 + $0x268] sm:$0xf]
    %v135 = vld [vmem:[%s1 + $0x26c] sm:$0xff]
    %v136 = vld [vmem:[%s1 + $0x274] sm:$0xff]
    %v137 = vld [vmem:[%s1 + $0x27c] sm:$0xf]
    %v138 = vld [vmem:[%s1 + $0x280] sm:$0xff]
    %v139 = vld [vmem:[%s1 + $0x288] sm:$0xff]
    %v140 = vld [vmem:[%s1 + $0x290] sm:$0xf]
    %v141 = vld [vmem:[%s1 + $0x294] sm:$0xff]
    %v142 = vld [vmem:[%s1 + $0x29c] sm:$0xff]
    %v143 = vld [vmem:[%s1 + $0x2a4] sm:$0xf]
    %v144 = vld [vmem:[%s1 + $0x2a8] sm:$0xff]
    %v145 = vld [vmem:[%s1 + $0x2b0] sm:$0xff]
    %v146 = vld [vmem:[%s1 + $0x2b8] sm:$0xf]
    %v147 = vld [vmem:[%s1 + $0x2bc] sm:$0xff]
    %v148 = vld [vmem:[%s1 + $0x2c4] sm:$0xff]
    %v149 = vld [vmem:[%s1 + $0x2cc] sm:$0xf]
    %v150 = vld [vmem:[%s1 + $0x2d0] sm:$0xff]
    %v151 = vld [vmem:[%s1 + $0x2d8] sm:$0xff]
    %v152 = vld [vmem:[%s1 + $0x2e0] sm:$0xf]
    %v153 = vld [vmem:[%s1 + $0x2e4] sm:$0xff]
    %v154 = vld [vmem:[%s1 + $0x2ec] sm:$0xff]
    %v155 = vld [vmem:[%s1 + $0x2f4] sm:$0xf]
    %v156 = vld [vmem:[%s1 + $0x2f8] sm:$0xff]
    %v157 = vld [vmem:[%s1 + $0x300] sm:$0xff]
    %v158 = vld [vmem:[%s1 + $0x308] sm:$0xf]
    %v159 = vld [vmem:[%s1 + $0x30c] sm:$0xff]
    %v160 = vld [vmem:[%s1 + $0x314] sm:$0xff]
    %v161 = vld [vmem:[%s1 + $0x31c] sm:$0xf]
    %v162 = vld [vmem:[%s1 + $0x320] sm:$0xff]
    %v163 = vld [vmem:[%s1 + $0x328] sm:$0xff]
    %v164 = vld [vmem:[%s1 + $0x330] sm:$0xf]
    %v165 = vld [vmem:[%s1 + $0x334] sm:$0xff]
    %v166 = vld [vmem:[%s1 + $0x33c] sm:$0xff]
    %v167 = vld [vmem:[%s1 + $0x344] sm:$0xf]
    %v168 = vld [vmem:[%s1 + $0x348] sm:$0xff]
    %v169 = vld [vmem:[%s1 + $0x350] sm:$0xff]
    %v170 = vld [vmem:[%s1 + $0x358] sm:$0xf]
    %v171 = vld [vmem:[%s1 + $0x35c] sm:$0xff]
    %v172 = vld [vmem:[%s1 + $0x364] sm:$0xff]
    %v173 = vld [vmem:[%s1 + $0x36c] sm:$0xf]
    %v174 = vld [vmem:[%s1 + $0x370] sm:$0xff]
    %v175 = vld [vmem:[%s1 + $0x378] sm:$0xff]
    %v176 = vld [vmem:[%s1 + $0x380] sm:$0xf]
    %v177 = vld [vmem:[%s1 + $0x384] sm:$0xff]
    %v178 = vld [vmem:[%s1 + $0x38c] sm:$0xff]
    %v179 = vld [vmem:[%s1 + $0x394] sm:$0xf]
    %v180 = vld [vmem:[%s1 + $0x398] sm:$0xff]
    %v181 = vld [vmem:[%s1 + $0x3a0] sm:$0xff]
    %v182 = vld [vmem:[%s1 + $0x3a8] sm:$0xf]
    %v183 = vld [vmem:[%s1 + $0x3ac] sm:$0xff]
    %v184 = vld [vmem:[%s1 + $0x3b4] sm:$0xff]
    %v185 = vld [vmem:[%s1 + $0x3bc] sm:$0xf]
    %v186 = vld [vmem:[%s1 + $0x3c0] sm:$0xff]
    %v187 = vld [vmem:[%s1 + $0x3c8] sm:$0xff]
    %v188 = vld [vmem:[%s1 + $0x3d0] sm:$0xf]
    %v189 = vld [vmem:[%s1 + $0x3d4] sm:$0xff]
    %v190 = vld [vmem:[%s1 + $0x3dc] sm:$0xff]
    %v191 = vld [vmem:[%s1 + $0x3e4] sm:$0xf]
    %v192 = vld [vmem:[%s1 + $0x3e8] sm:$0xff]
    %v193 = vld [vmem:[%s1 + $0x3f0] sm:$0xff]
    %v194 = vld [vmem:[%s1 + $0x3f8] sm:$0xf]
    %v195 = vld [vmem:[%s1 + $0x3fc] sm:$0xff]
    %v196 = vld [vmem:[%s1 + $0x404] sm:$0xff]
    %v197 = vld [vmem:[%s1 + $0x40c] sm:$0xf]
    %v198 = vld [vmem:[%s1 + $0x410] sm:$0xff]
    %v199 = vld [vmem:[%s1 + $0x418] sm:$0xff]
    %v200 = vld [vmem:[%s1 + $0x420] sm:$0xf]
    %v201 = vld [vmem:[%s1 + $0x424] sm:$0xff]
    %v202 = vld [vmem:[%s1 + $0x42c] sm:$0xff]
    %v203 = vld [vmem:[%s1 + $0x434] sm:$0xf]
    %v204 = vld [vmem:[%s1 + $0x438] sm:$0xff]
    %v205 = vld [vmem:[%s1 + $0x440] sm:$0xff]
    %v206 = vld [vmem:[%s1 + $0x448] sm:$0xf]
    %v207 = vld [vmem:[%s1 + $0x44c] sm:$0xff]
    %v208 = vld [vmem:[%s1 + $0x454] sm:$0xff]
    %v209 = vld [vmem:[%s1 + $0x45c] sm:$0xf]
    %v210 = vld [vmem:[%s1 + $0x460] sm:$0xff]
    %v211 = vld [vmem:[%s1 + $0x468] sm:$0xff]
    %v212 = vld [vmem:[%s1 + $0x470] sm:$0xf]
    %v213 = vld [vmem:[%s1 + $0x474] sm:$0xff]
    %v214 = vld [vmem:[%s1 + $0x47c] sm:$0xff]
    %v215 = vld [vmem:[%s1 + $0x484] sm:$0xf]
    %v216 = vld [vmem:[%s1 + $0x488] sm:$0xff]
    %v217 = vld [vmem:[%s1 + $0x490] sm:$0xff]
    %v218 = vld [vmem:[%s1 + $0x498] sm:$0xf]
    %v219 = vld [vmem:[%s1 + $0x49c] sm:$0xff]
    %v220 = vld [vmem:[%s1 + $0x4a4] sm:$0xff]
    %v221 = vld [vmem:[%s1 + $0x4ac] sm:$0xf]
    %v222 = vld [vmem:[%s1 + $0x4b0] sm:$0xff]
    %v223 = vld [vmem:[%s1 + $0x4b8] sm:$0xff]
    %v224 = vld [vmem:[%s1 + $0x4c0] sm:$0xf]
    %v225 = vld [vmem:[%s1 + $0x4c4] sm:$0xff]
    %v226 = vld [vmem:[%s1 + $0x4cc] sm:$0xff]
    %v227 = vld [vmem:[%s1 + $0x4d4] sm:$0xf]
    %v228 = vld [vmem:[%s1 + $0x4d8] sm:$0xff]
    %v229 = vld [vmem:[%s1 + $0x4e0] sm:$0xff]
    %v230 = vld [vmem:[%s1 + $0x4e8] sm:$0xf]
    %v231 = vld [vmem:[%s1 + $0x4ec] sm:$0xff]
    %v232 = vld [vmem:[%s1 + $0x4f4] sm:$0xff]
    %v233 = vld [vmem:[%s1 + $0x4fc] sm:$0xf]
    %v234 = vld [vmem:[%s1 + $0x500] sm:$0xff]
    %v235 = vld [vmem:[%s1 + $0x508] sm:$0xff]
    %v236 = vld [vmem:[%s1 + $0x510] sm:$0xf]
    %v237 = vld [vmem:[%s1 + $0x514] sm:$0xff]
    %v238 = vld [vmem:[%s1 + $0x51c] sm:$0xff]
    %v239 = vld [vmem:[%s1 + $0x524] sm:$0xf]
    %v240 = vld [vmem:[%s1 + $0x528] sm:$0xff]
    %v241 = vld [vmem:[%s1 + $0x530] sm:$0xff]
    %v242 = vld [vmem:[%s1 + $0x538] sm:$0xf]
    %v243 = vld [vmem:[%s1 + $0x53c] sm:$0xff]
    %v244 = vld [vmem:[%s1 + $0x544] sm:$0xff]
    %v245 = vld [vmem:[%s1 + $0x54c] sm:$0xf]
    %v246 = vld [vmem:[%s1 + $0x550] sm:$0xff]
    %v247 = vld [vmem:[%s1 + $0x558] sm:$0xff]
    %v248 = vld [vmem:[%s1 + $0x560] sm:$0xf]
    %v249 = vld [vmem:[%s1 + $0x564] sm:$0xff]
    %v250 = vld [vmem:[%s1 + $0x56c] sm:$0xff]
    %v251 = vld [vmem:[%s1 + $0x574] sm:$0xf]
    %v252 = vld [vmem:[%s1 + $0x578] sm:$0xff]
    %v253 = vld [vmem:[%s1 + $0x580] sm:$0xff]
    %v254 = vld [vmem:[%s1 + $0x588] sm:$0xf]
    %v255 = vld [vmem:[%s1 + $0x58c] sm:$0xff]
    %v256 = vld [vmem:[%s1 + $0x594] sm:$0xff]
    %v257 = vld [vmem:[%s1 + $0x59c] sm:$0xf]
    %v258 = vld [vmem:[%s1 + $0x5a0] sm:$0xff]
    %v259 = vld [vmem:[%s1 + $0x5a8] sm:$0xff]
    %v260 = vld [vmem:[%s1 + $0x5b0] sm:$0xf]
    %v261 = vld [vmem:[%s1 + $0x5b4] sm:$0xff]
    %v262 = vld [vmem:[%s1 + $0x5bc] sm:$0xff]
    %v263 = vld [vmem:[%s1 + $0x5c4] sm:$0xf]
    %v264 = vld [vmem:[%s1 + $0x5c8] sm:$0xff]
    %v265 = vld [vmem:[%s1 + $0x5d0] sm:$0xff]
    %v266 = vld [vmem:[%s1 + $0x5d8] sm:$0xf]
    %v267 = vld [vmem:[%s1 + $0x5dc] sm:$0xff]
    %v268 = vld [vmem:[%s1 + $0x5e4] sm:$0xff]
    %v269 = vld [vmem:[%s1 + $0x5ec] sm:$0xf]
    %v270 = vld [vmem:[%s1 + $0x5f0] sm:$0xff]
    %v271 = vld [vmem:[%s1 + $0x5f8] sm:$0xff]
    %v272 = vld [vmem:[%s1 + $0x600] sm:$0xf]
    %v273 = vld [vmem:[%s1 + $0x604] sm:$0xff]
    %v274 = vld [vmem:[%s1 + $0x60c] sm:$0xff]
    %v275 = vld [vmem:[%s1 + $0x614] sm:$0xf]
    %v276 = vld [vmem:[%s1 + $0x618] sm:$0xff]
    %v277 = vld [vmem:[%s1 + $0x620] sm:$0xff]
    %v278 = vld [vmem:[%s1 + $0x628] sm:$0xf]
    %v279 = vld [vmem:[%s1 + $0x62c] sm:$0xff]
    %v280 = vld [vmem:[%s1 + $0x634] sm:$0xff]
    %v281 = vld [vmem:[%s1 + $0x63c] sm:$0xf]
    %v282 = vld [vmem:[%s1 + $0x640] sm:$0xff]
    %v283 = vld [vmem:[%s1 + $0x648] sm:$0xff]
    %v284 = vld [vmem:[%s1 + $0x650] sm:$0xf]
    %v285 = vld [vmem:[%s1 + $0x654] sm:$0xff]
    %v286 = vld [vmem:[%s1 + $0x65c] sm:$0xff]
    %v287 = vld [vmem:[%s1 + $0x664] sm:$0xf]
    %v288 = vld [vmem:[%s1 + $0x668] sm:$0xff]
    %v289 = vld [vmem:[%s1 + $0x670] sm:$0xff]
    %v290 = vld [vmem:[%s1 + $0x678] sm:$0xf]
    %v291 = vld [vmem:[%s1 + $0x67c] sm:$0xff]
    %v292 = vld [vmem:[%s1 + $0x684] sm:$0xff]
    %v293 = vld [vmem:[%s1 + $0x68c] sm:$0xf]
    %v294 = vld [vmem:[%s1 + $0x690] sm:$0xff]
    %v295 = vld [vmem:[%s1 + $0x698] sm:$0xff]
    %v296 = vld [vmem:[%s1 + $0x6a0] sm:$0xf]
    %v297 = vld [vmem:[%s1 + $0x6a4] sm:$0xff]
    %v298 = vld [vmem:[%s1 + $0x6ac] sm:$0xff]
    %v299 = vld [vmem:[%s1 + $0x6b4] sm:$0xf]
    %v300 = vld [vmem:[%s1 + $0x6b8] sm:$0xff]
    %v301 = vld [vmem:[%s1 + $0x6c0] sm:$0xff]
    %v302 = vld [vmem:[%s1 + $0x6c8] sm:$0xf]
    %v303 = vld [vmem:[%s1 + $0x6cc] sm:$0xff]
    %v304 = vld [vmem:[%s1 + $0x6d4] sm:$0xff]
    %v305 = vld [vmem:[%s1 + $0x6dc] sm:$0xf]
    %v306 = vld [vmem:[%s1 + $0x6e0] sm:$0xff]
    %v307 = vld [vmem:[%s1 + $0x6e8] sm:$0xff]
    %v308 = vld [vmem:[%s1 + $0x6f0] sm:$0xf]
    %v309 = vld [vmem:[%s1 + $0x6f4] sm:$0xff]
    %v310 = vld [vmem:[%s1 + $0x6fc] sm:$0xff]
    %v311 = vld [vmem:[%s1 + $0x704] sm:$0xf]
    %v312 = vld [vmem:[%s1 + $0x708] sm:$0xff]
    %v313 = vld [vmem:[%s1 + $0x710] sm:$0xff]
    %v314 = vld [vmem:[%s1 + $0x718] sm:$0xf]
    %v315 = vld [vmem:[%s1 + $0x71c] sm:$0xff]
    %v316 = vld [vmem:[%s1 + $0x724] sm:$0xff]
    %v317 = vld [vmem:[%s1 + $0x72c] sm:$0xf]
    %v318 = vld [vmem:[%s1 + $0x730] sm:$0xff]
    %v319 = vld [vmem:[%s1 + $0x738] sm:$0xff]
    %v320 = vld [vmem:[%s1 + $0x740] sm:$0xf]
    %v321 = vld [vmem:[%s1 + $0x744] sm:$0xff]
    %v322 = vld [vmem:[%s1 + $0x74c] sm:$0xff]
    %v323 = vld [vmem:[%s1 + $0x754] sm:$0xf]
    %v324 = vld [vmem:[%s1 + $0x758] sm:$0xff]
    %v325 = vld [vmem:[%s1 + $0x760] sm:$0xff]
    %v326 = vld [vmem:[%s1 + $0x768] sm:$0xf]
    %v327 = vld [vmem:[%s1 + $0x76c] sm:$0xff]
    %v328 = vld [vmem:[%s1 + $0x774] sm:$0xff]
    %v329 = vld [vmem:[%s1 + $0x77c] sm:$0xf]
    %v330 = vld [vmem:[%s1 + $0x780] sm:$0xff]
    %v331 = vld [vmem:[%s1 + $0x788] sm:$0xff]
    %v332 = vld [vmem:[%s1 + $0x790] sm:$0xf]
    %v333 = vld [vmem:[%s1 + $0x794] sm:$0xff]
    %v334 = vld [vmem:[%s1 + $0x79c] sm:$0xff]
    %v335 = vld [vmem:[%s1 + $0x7a4] sm:$0xf]
    %v336 = vld [vmem:[%s2] sm:$0x1f]
    %v338 = vlaneseq
    %v339 = vshrl.u32 %v338, 7
    %v340 = vsub.s32 0, %v339
    %v341 = vrot.slane %v336, %v340
    %v342 = vlaneseq
    %v343 = vshrl.u32 %v342, 7
    %v344 = vsub.s32 1, %v343
    %v345 = vrot.slane %v336, %v344
    %v346 = vlaneseq
    %v347 = vshrl.u32 %v346, 7
    %v348 = vsub.s32 2, %v347
    %v349 = vrot.slane %v336, %v348
    %v350 = vlaneseq
    %v351 = vshrl.u32 %v350, 7
    %v352 = vsub.s32 3, %v351
    %v353 = vrot.slane %v336, %v352
    %v354 = vlaneseq
    %v355 = vshrl.u32 %v354, 7
    %v356 = vsub.s32 4, %v355
    %v357 = vrot.slane %v336, %v356
    %v371 = vunpack.c.l.b16 %v34
    %v372 = vunpack.c.h.b16 %v34
    %v373 = vunpack.c.l.b16 %v35
    %v374 = vunpack.c.h.b16 %v35
    %v375 = vunpack.c.l.b16 %v36
    %v376 = vunpack.c.h.b16 %v36
    %v377 = vunpack.c.l.b16 %v37
    %v378 = vunpack.c.l.b16 %v38
    %v379 = vunpack.c.h.b16 %v38
    %v380 = vunpack.c.l.b16 %v39
    %v381 = vunpack.c.h.b16 %v39
    %v382 = vunpack.c.l.b16 %v40
    %v383 = vunpack.c.h.b16 %v40
    %v384 = vunpack.c.l.b16 %v41
    %v385 = vpack.c.b16 %v378, %v371
    %v386 = vpack.c.b16 %v379, %v372
    %v387 = vpack.c.b16 %v380, %v373
    %v388 = vpack.c.b16 %v381, %v374
    %v389 = vpack.c.b16 %v382, %v375
    %v390 = vpack.c.b16 %v383, %v376
    %v391 = vpack.c.b16 %v384, %v377
    %v692 = vunpack.c.l.b16 %v42
    %v693 = vunpack.c.h.b16 %v42
    %v694 = vunpack.c.l.b16 %v43
    %v695 = vunpack.c.h.b16 %v43
    %v696 = vunpack.c.l.b16 %v44
    %v697 = vunpack.c.l.b16 %v45
    %v698 = vunpack.c.h.b16 %v45
    %v699 = vunpack.c.l.b16 %v46
    %v700 = vunpack.c.h.b16 %v46
    %v701 = vunpack.c.l.b16 %v47
    %v702 = vunpack.c.l.b16 %v48
    %v703 = vunpack.c.h.b16 %v48
    %v704 = vunpack.c.l.b16 %v49
    %v705 = vunpack.c.h.b16 %v49
    %v706 = vunpack.c.l.b16 %v50
    %v707 = vunpack.c.l.b16 %v51
    %v708 = vunpack.c.h.b16 %v51
    %v709 = vunpack.c.l.b16 %v52
    %v710 = vunpack.c.h.b16 %v52
    %v711 = vunpack.c.l.b16 %v53
    %v712 = vunpack.c.l.b16 %v54
    %v713 = vunpack.c.h.b16 %v54
    %v714 = vunpack.c.l.b16 %v55
    %v715 = vunpack.c.h.b16 %v55
    %v716 = vunpack.c.l.b16 %v56
    %v717 = vunpack.c.l.b16 %v57
    %v718 = vunpack.c.h.b16 %v57
    %v719 = vunpack.c.l.b16 %v58
    %v720 = vunpack.c.h.b16 %v58
    %v721 = vunpack.c.l.b16 %v59
    %v722 = vunpack.c.l.b16 %v60
    %v723 = vunpack.c.h.b16 %v60
    %v724 = vunpack.c.l.b16 %v61
    %v725 = vunpack.c.h.b16 %v61
    %v726 = vunpack.c.l.b16 %v62
    %v727 = vunpack.c.l.b16 %v63
    %v728 = vunpack.c.h.b16 %v63
    %v729 = vunpack.c.l.b16 %v64
    %v730 = vunpack.c.h.b16 %v64
    %v731 = vunpack.c.l.b16 %v65
    %v732 = vunpack.c.l.b16 %v66
    %v733 = vunpack.c.h.b16 %v66
    %v734 = vunpack.c.l.b16 %v67
    %v735 = vunpack.c.h.b16 %v67
    %v736 = vunpack.c.l.b16 %v68
    %v737 = vunpack.c.l.b16 %v69
    %v738 = vunpack.c.h.b16 %v69
    %v739 = vunpack.c.l.b16 %v70
    %v740 = vunpack.c.h.b16 %v70
    %v741 = vunpack.c.l.b16 %v71
    %v742 = vunpack.c.l.b16 %v72
    %v743 = vunpack.c.h.b16 %v72
    %v744 = vunpack.c.l.b16 %v73
    %v745 = vunpack.c.h.b16 %v73
    %v746 = vunpack.c.l.b16 %v74
    %v747 = vunpack.c.l.b16 %v75
    %v748 = vunpack.c.h.b16 %v75
    %v749 = vunpack.c.l.b16 %v76
    %v750 = vunpack.c.h.b16 %v76
    %v751 = vunpack.c.l.b16 %v77
    %v752 = vunpack.c.l.b16 %v78
    %v753 = vunpack.c.h.b16 %v78
    %v754 = vunpack.c.l.b16 %v79
    %v755 = vunpack.c.h.b16 %v79
    %v756 = vunpack.c.l.b16 %v80
    %v757 = vunpack.c.l.b16 %v81
    %v758 = vunpack.c.h.b16 %v81
    %v759 = vunpack.c.l.b16 %v82
    %v760 = vunpack.c.h.b16 %v82
    %v761 = vunpack.c.l.b16 %v83
    %v762 = vunpack.c.l.b16 %v84
    %v763 = vunpack.c.h.b16 %v84
    %v764 = vunpack.c.l.b16 %v85
    %v765 = vunpack.c.h.b16 %v85
    %v766 = vunpack.c.l.b16 %v86
    %v767 = vunpack.c.l.b16 %v87
    %v768 = vunpack.c.h.b16 %v87
    %v769 = vunpack.c.l.b16 %v88
    %v770 = vunpack.c.h.b16 %v88
    %v771 = vunpack.c.l.b16 %v89
    %v772 = vunpack.c.l.b16 %v90
    %v773 = vunpack.c.h.b16 %v90
    %v774 = vunpack.c.l.b16 %v91
    %v775 = vunpack.c.h.b16 %v91
    %v776 = vunpack.c.l.b16 %v92
    %v777 = vunpack.c.l.b16 %v93
    %v778 = vunpack.c.h.b16 %v93
    %v779 = vunpack.c.l.b16 %v94
    %v780 = vunpack.c.h.b16 %v94
    %v781 = vunpack.c.l.b16 %v95
    %v782 = vunpack.c.l.b16 %v96
    %v783 = vunpack.c.h.b16 %v96
    %v784 = vunpack.c.l.b16 %v97
    %v785 = vunpack.c.h.b16 %v97
    %v786 = vunpack.c.l.b16 %v98
    %v787 = vunpack.c.l.b16 %v99
    %v788 = vunpack.c.h.b16 %v99
    %v789 = vunpack.c.l.b16 %v100
    %v790 = vunpack.c.h.b16 %v100
    %v791 = vunpack.c.l.b16 %v101
    %v792 = vunpack.c.l.b16 %v102
    %v793 = vunpack.c.h.b16 %v102
    %v794 = vunpack.c.l.b16 %v103
    %v795 = vunpack.c.h.b16 %v103
    %v796 = vunpack.c.l.b16 %v104
    %v797 = vunpack.c.l.b16 %v105
    %v798 = vunpack.c.h.b16 %v105
    %v799 = vunpack.c.l.b16 %v106
    %v800 = vunpack.c.h.b16 %v106
    %v801 = vunpack.c.l.b16 %v107
    %v802 = vunpack.c.l.b16 %v108
    %v803 = vunpack.c.h.b16 %v108
    %v804 = vunpack.c.l.b16 %v109
    %v805 = vunpack.c.h.b16 %v109
    %v806 = vunpack.c.l.b16 %v110
    %v807 = vunpack.c.l.b16 %v111
    %v808 = vunpack.c.h.b16 %v111
    %v809 = vunpack.c.l.b16 %v112
    %v810 = vunpack.c.h.b16 %v112
    %v811 = vunpack.c.l.b16 %v113
    %v812 = vunpack.c.l.b16 %v114
    %v813 = vunpack.c.h.b16 %v114
    %v814 = vunpack.c.l.b16 %v115
    %v815 = vunpack.c.h.b16 %v115
    %v816 = vunpack.c.l.b16 %v116
    %v817 = vunpack.c.l.b16 %v117
    %v818 = vunpack.c.h.b16 %v117
    %v819 = vunpack.c.l.b16 %v118
    %v820 = vunpack.c.h.b16 %v118
    %v821 = vunpack.c.l.b16 %v119
    %v822 = vunpack.c.l.b16 %v120
    %v823 = vunpack.c.h.b16 %v120
    %v824 = vunpack.c.l.b16 %v121
    %v825 = vunpack.c.h.b16 %v121
    %v826 = vunpack.c.l.b16 %v122
    %v827 = vunpack.c.l.b16 %v123
    %v828 = vunpack.c.h.b16 %v123
    %v829 = vunpack.c.l.b16 %v124
    %v830 = vunpack.c.h.b16 %v124
    %v831 = vunpack.c.l.b16 %v125
    %v832 = vunpack.c.l.b16 %v126
    %v833 = vunpack.c.h.b16 %v126
    %v834 = vunpack.c.l.b16 %v127
    %v835 = vunpack.c.h.b16 %v127
    %v836 = vunpack.c.l.b16 %v128
    %v837 = vunpack.c.l.b16 %v129
    %v838 = vunpack.c.h.b16 %v129
    %v839 = vunpack.c.l.b16 %v130
    %v840 = vunpack.c.h.b16 %v130
    %v841 = vunpack.c.l.b16 %v131
    %v842 = vunpack.c.l.b16 %v132
    %v843 = vunpack.c.h.b16 %v132
    %v844 = vunpack.c.l.b16 %v133
    %v845 = vunpack.c.h.b16 %v133
    %v846 = vunpack.c.l.b16 %v134
    %v847 = vunpack.c.l.b16 %v135
    %v848 = vunpack.c.h.b16 %v135
    %v849 = vunpack.c.l.b16 %v136
    %v850 = vunpack.c.h.b16 %v136
    %v851 = vunpack.c.l.b16 %v137
    %v852 = vunpack.c.l.b16 %v138
    %v853 = vunpack.c.h.b16 %v138
    %v854 = vunpack.c.l.b16 %v139
    %v855 = vunpack.c.h.b16 %v139
    %v856 = vunpack.c.l.b16 %v140
    %v857 = vunpack.c.l.b16 %v141
    %v858 = vunpack.c.h.b16 %v141
    %v859 = vunpack.c.l.b16 %v142
    %v860 = vunpack.c.h.b16 %v142
    %v861 = vunpack.c.l.b16 %v143
    %v862 = vunpack.c.l.b16 %v144
    %v863 = vunpack.c.h.b16 %v144
    %v864 = vunpack.c.l.b16 %v145
    %v865 = vunpack.c.h.b16 %v145
    %v866 = vunpack.c.l.b16 %v146
    %v867 = vunpack.c.l.b16 %v147
    %v868 = vunpack.c.h.b16 %v147
    %v869 = vunpack.c.l.b16 %v148
    %v870 = vunpack.c.h.b16 %v148
    %v871 = vunpack.c.l.b16 %v149
    %v872 = vunpack.c.l.b16 %v150
    %v873 = vunpack.c.h.b16 %v150
    %v874 = vunpack.c.l.b16 %v151
    %v875 = vunpack.c.h.b16 %v151
    %v876 = vunpack.c.l.b16 %v152
    %v877 = vunpack.c.l.b16 %v153
    %v878 = vunpack.c.h.b16 %v153
    %v879 = vunpack.c.l.b16 %v154
    %v880 = vunpack.c.h.b16 %v154
    %v881 = vunpack.c.l.b16 %v155
    %v882 = vunpack.c.l.b16 %v156
    %v883 = vunpack.c.h.b16 %v156
    %v884 = vunpack.c.l.b16 %v157
    %v885 = vunpack.c.h.b16 %v157
    %v886 = vunpack.c.l.b16 %v158
    %v887 = vunpack.c.l.b16 %v159
    %v888 = vunpack.c.h.b16 %v159
    %v889 = vunpack.c.l.b16 %v160
    %v890 = vunpack.c.h.b16 %v160
    %v891 = vunpack.c.l.b16 %v161
    %v892 = vunpack.c.l.b16 %v162
    %v893 = vunpack.c.h.b16 %v162
    %v894 = vunpack.c.l.b16 %v163
    %v895 = vunpack.c.h.b16 %v163
    %v896 = vunpack.c.l.b16 %v164
    %v897 = vunpack.c.l.b16 %v165
    %v898 = vunpack.c.h.b16 %v165
    %v899 = vunpack.c.l.b16 %v166
    %v900 = vunpack.c.h.b16 %v166
    %v901 = vunpack.c.l.b16 %v167
    %v902 = vunpack.c.l.b16 %v168
    %v903 = vunpack.c.h.b16 %v168
    %v904 = vunpack.c.l.b16 %v169
    %v905 = vunpack.c.h.b16 %v169
    %v906 = vunpack.c.l.b16 %v170
    %v907 = vunpack.c.l.b16 %v171
    %v908 = vunpack.c.h.b16 %v171
    %v909 = vunpack.c.l.b16 %v172
    %v910 = vunpack.c.h.b16 %v172
    %v911 = vunpack.c.l.b16 %v173
    %v912 = vunpack.c.l.b16 %v174
    %v913 = vunpack.c.h.b16 %v174
    %v914 = vunpack.c.l.b16 %v175
    %v915 = vunpack.c.h.b16 %v175
    %v916 = vunpack.c.l.b16 %v176
    %v917 = vunpack.c.l.b16 %v177
    %v918 = vunpack.c.h.b16 %v177
    %v919 = vunpack.c.l.b16 %v178
    %v920 = vunpack.c.h.b16 %v178
    %v921 = vunpack.c.l.b16 %v179
    %v922 = vunpack.c.l.b16 %v180
    %v923 = vunpack.c.h.b16 %v180
    %v924 = vunpack.c.l.b16 %v181
    %v925 = vunpack.c.h.b16 %v181
    %v926 = vunpack.c.l.b16 %v182
    %v927 = vunpack.c.l.b16 %v183
    %v928 = vunpack.c.h.b16 %v183
    %v929 = vunpack.c.l.b16 %v184
    %v930 = vunpack.c.h.b16 %v184
    %v931 = vunpack.c.l.b16 %v185
    %v932 = vunpack.c.l.b16 %v186
    %v933 = vunpack.c.h.b16 %v186
    %v934 = vunpack.c.l.b16 %v187
    %v935 = vunpack.c.h.b16 %v187
    %v936 = vunpack.c.l.b16 %v188
    %v937 = vunpack.c.l.b16 %v189
    %v938 = vunpack.c.h.b16 %v189
    %v939 = vunpack.c.l.b16 %v190
    %v940 = vunpack.c.h.b16 %v190
    %v941 = vunpack.c.l.b16 %v191
    %v942 = vunpack.c.l.b16 %v192
    %v943 = vunpack.c.h.b16 %v192
    %v944 = vunpack.c.l.b16 %v193
    %v945 = vunpack.c.h.b16 %v193
    %v946 = vunpack.c.l.b16 %v194
    %v947 = vunpack.c.l.b16 %v195
    %v948 = vunpack.c.h.b16 %v195
    %v949 = vunpack.c.l.b16 %v196
    %v950 = vunpack.c.h.b16 %v196
    %v951 = vunpack.c.l.b16 %v197
    %v952 = vunpack.c.l.b16 %v198
    %v953 = vunpack.c.h.b16 %v198
    %v954 = vunpack.c.l.b16 %v199
    %v955 = vunpack.c.h.b16 %v199
    %v956 = vunpack.c.l.b16 %v200
    %v957 = vunpack.c.l.b16 %v201
    %v958 = vunpack.c.h.b16 %v201
    %v959 = vunpack.c.l.b16 %v202
    %v960 = vunpack.c.h.b16 %v202
    %v961 = vunpack.c.l.b16 %v203
    %v962 = vunpack.c.l.b16 %v204
    %v963 = vunpack.c.h.b16 %v204
    %v964 = vunpack.c.l.b16 %v205
    %v965 = vunpack.c.h.b16 %v205
    %v966 = vunpack.c.l.b16 %v206
    %v967 = vunpack.c.l.b16 %v207
    %v968 = vunpack.c.h.b16 %v207
    %v969 = vunpack.c.l.b16 %v208
    %v970 = vunpack.c.h.b16 %v208
    %v971 = vunpack.c.l.b16 %v209
    %v972 = vunpack.c.l.b16 %v210
    %v973 = vunpack.c.h.b16 %v210
    %v974 = vunpack.c.l.b16 %v211
    %v975 = vunpack.c.h.b16 %v211
    %v976 = vunpack.c.l.b16 %v212
    %v977 = vunpack.c.l.b16 %v213
    %v978 = vunpack.c.h.b16 %v213
    %v979 = vunpack.c.l.b16 %v214
    %v980 = vunpack.c.h.b16 %v214
    %v981 = vunpack.c.l.b16 %v215
    %v982 = vunpack.c.l.b16 %v216
    %v983 = vunpack.c.h.b16 %v216
    %v984 = vunpack.c.l.b16 %v217
    %v985 = vunpack.c.h.b16 %v217
    %v986 = vunpack.c.l.b16 %v218
    %v987 = vunpack.c.l.b16 %v219
    %v988 = vunpack.c.h.b16 %v219
    %v989 = vunpack.c.l.b16 %v220
    %v990 = vunpack.c.h.b16 %v220
    %v991 = vunpack.c.l.b16 %v221
    %v992 = vunpack.c.l.b16 %v222
    %v993 = vunpack.c.h.b16 %v222
    %v994 = vunpack.c.l.b16 %v223
    %v995 = vunpack.c.h.b16 %v223
    %v996 = vunpack.c.l.b16 %v224
    %v997 = vunpack.c.l.b16 %v225
    %v998 = vunpack.c.h.b16 %v225
    %v999 = vunpack.c.l.b16 %v226
    %v1000 = vunpack.c.h.b16 %v226
    %v1001 = vunpack.c.l.b16 %v227
    %v1002 = vunpack.c.l.b16 %v228
    %v1003 = vunpack.c.h.b16 %v228
    %v1004 = vunpack.c.l.b16 %v229
    %v1005 = vunpack.c.h.b16 %v229
    %v1006 = vunpack.c.l.b16 %v230
    %v1007 = vunpack.c.l.b16 %v231
    %v1008 = vunpack.c.h.b16 %v231
    %v1009 = vunpack.c.l.b16 %v232
    %v1010 = vunpack.c.h.b16 %v232
    %v1011 = vunpack.c.l.b16 %v233
    %v1012 = vunpack.c.l.b16 %v234
    %v1013 = vunpack.c.h.b16 %v234
    %v1014 = vunpack.c.l.b16 %v235
    %v1015 = vunpack.c.h.b16 %v235
    %v1016 = vunpack.c.l.b16 %v236
    %v1017 = vunpack.c.l.b16 %v237
    %v1018 = vunpack.c.h.b16 %v237
    %v1019 = vunpack.c.l.b16 %v238
    %v1020 = vunpack.c.h.b16 %v238
    %v1021 = vunpack.c.l.b16 %v239
    %v1022 = vunpack.c.l.b16 %v240
    %v1023 = vunpack.c.h.b16 %v240
    %v1024 = vunpack.c.l.b16 %v241
    %v1025 = vunpack.c.h.b16 %v241
    %v1026 = vunpack.c.l.b16 %v242
    %v1027 = vunpack.c.l.b16 %v243
    %v1028 = vunpack.c.h.b16 %v243
    %v1029 = vunpack.c.l.b16 %v244
    %v1030 = vunpack.c.h.b16 %v244
    %v1031 = vunpack.c.l.b16 %v245
    %v1032 = vunpack.c.l.b16 %v246
    %v1033 = vunpack.c.h.b16 %v246
    %v1034 = vunpack.c.l.b16 %v247
    %v1035 = vunpack.c.h.b16 %v247
    %v1036 = vunpack.c.l.b16 %v248
    %v1037 = vunpack.c.l.b16 %v249
    %v1038 = vunpack.c.h.b16 %v249
    %v1039 = vunpack.c.l.b16 %v250
    %v1040 = vunpack.c.h.b16 %v250
    %v1041 = vunpack.c.l.b16 %v251
    %v1042 = vunpack.c.l.b16 %v252
    %v1043 = vunpack.c.h.b16 %v252
    %v1044 = vunpack.c.l.b16 %v253
    %v1045 = vunpack.c.h.b16 %v253
    %v1046 = vunpack.c.l.b16 %v254
    %v1047 = vunpack.c.l.b16 %v255
    %v1048 = vunpack.c.h.b16 %v255
    %v1049 = vunpack.c.l.b16 %v256
    %v1050 = vunpack.c.h.b16 %v256
    %v1051 = vunpack.c.l.b16 %v257
    %v1052 = vunpack.c.l.b16 %v258
    %v1053 = vunpack.c.h.b16 %v258
    %v1054 = vunpack.c.l.b16 %v259
    %v1055 = vunpack.c.h.b16 %v259
    %v1056 = vunpack.c.l.b16 %v260
    %v1057 = vunpack.c.l.b16 %v261
    %v1058 = vunpack.c.h.b16 %v261
    %v1059 = vunpack.c.l.b16 %v262
    %v1060 = vunpack.c.h.b16 %v262
    %v1061 = vunpack.c.l.b16 %v263
    %v1062 = vunpack.c.l.b16 %v264
    %v1063 = vunpack.c.h.b16 %v264
    %v1064 = vunpack.c.l.b16 %v265
    %v1065 = vunpack.c.h.b16 %v265
    %v1066 = vunpack.c.l.b16 %v266
    %v1067 = vunpack.c.l.b16 %v267
    %v1068 = vunpack.c.h.b16 %v267
    %v1069 = vunpack.c.l.b16 %v268
    %v1070 = vunpack.c.h.b16 %v268
    %v1071 = vunpack.c.l.b16 %v269
    %v1072 = vunpack.c.l.b16 %v270
    %v1073 = vunpack.c.h.b16 %v270
    %v1074 = vunpack.c.l.b16 %v271
    %v1075 = vunpack.c.h.b16 %v271
    %v1076 = vunpack.c.l.b16 %v272
    %v1077 = vunpack.c.l.b16 %v273
    %v1078 = vunpack.c.h.b16 %v273
    %v1079 = vunpack.c.l.b16 %v274
    %v1080 = vunpack.c.h.b16 %v274
    %v1081 = vunpack.c.l.b16 %v275
    %v1082 = vunpack.c.l.b16 %v276
    %v1083 = vunpack.c.h.b16 %v276
    %v1084 = vunpack.c.l.b16 %v277
    %v1085 = vunpack.c.h.b16 %v277
    %v1086 = vunpack.c.l.b16 %v278
    %v1087 = vunpack.c.l.b16 %v279
    %v1088 = vunpack.c.h.b16 %v279
    %v1089 = vunpack.c.l.b16 %v280
    %v1090 = vunpack.c.h.b16 %v280
    %v1091 = vunpack.c.l.b16 %v281
    %v1092 = vunpack.c.l.b16 %v282
    %v1093 = vunpack.c.h.b16 %v282
    %v1094 = vunpack.c.l.b16 %v283
    %v1095 = vunpack.c.h.b16 %v283
    %v1096 = vunpack.c.l.b16 %v284
    %v1097 = vunpack.c.l.b16 %v285
    %v1098 = vunpack.c.h.b16 %v285
    %v1099 = vunpack.c.l.b16 %v286
    %v1100 = vunpack.c.h.b16 %v286
    %v1101 = vunpack.c.l.b16 %v287
    %v1102 = vunpack.c.l.b16 %v288
    %v1103 = vunpack.c.h.b16 %v288
    %v1104 = vunpack.c.l.b16 %v289
    %v1105 = vunpack.c.h.b16 %v289
    %v1106 = vunpack.c.l.b16 %v290
    %v1107 = vunpack.c.l.b16 %v291
    %v1108 = vunpack.c.h.b16 %v291
    %v1109 = vunpack.c.l.b16 %v292
    %v1110 = vunpack.c.h.b16 %v292
    %v1111 = vunpack.c.l.b16 %v293
    %v1112 = vunpack.c.l.b16 %v294
    %v1113 = vunpack.c.h.b16 %v294
    %v1114 = vunpack.c.l.b16 %v295
    %v1115 = vunpack.c.h.b16 %v295
    %v1116 = vunpack.c.l.b16 %v296
    %v1117 = vunpack.c.l.b16 %v297
    %v1118 = vunpack.c.h.b16 %v297
    %v1119 = vunpack.c.l.b16 %v298
    %v1120 = vunpack.c.h.b16 %v298
    %v1121 = vunpack.c.l.b16 %v299
    %v1122 = vunpack.c.l.b16 %v300
    %v1123 = vunpack.c.h.b16 %v300
    %v1124 = vunpack.c.l.b16 %v301
    %v1125 = vunpack.c.h.b16 %v301
    %v1126 = vunpack.c.l.b16 %v302
    %v1127 = vunpack.c.l.b16 %v303
    %v1128 = vunpack.c.h.b16 %v303
    %v1129 = vunpack.c.l.b16 %v304
    %v1130 = vunpack.c.h.b16 %v304
    %v1131 = vunpack.c.l.b16 %v305
    %v1132 = vunpack.c.l.b16 %v306
    %v1133 = vunpack.c.h.b16 %v306
    %v1134 = vunpack.c.l.b16 %v307
    %v1135 = vunpack.c.h.b16 %v307
    %v1136 = vunpack.c.l.b16 %v308
    %v1137 = vunpack.c.l.b16 %v309
    %v1138 = vunpack.c.h.b16 %v309
    %v1139 = vunpack.c.l.b16 %v310
    %v1140 = vunpack.c.h.b16 %v310
    %v1141 = vunpack.c.l.b16 %v311
    %v1142 = vunpack.c.l.b16 %v312
    %v1143 = vunpack.c.h.b16 %v312
    %v1144 = vunpack.c.l.b16 %v313
    %v1145 = vunpack.c.h.b16 %v313
    %v1146 = vunpack.c.l.b16 %v314
    %v1147 = vunpack.c.l.b16 %v315
    %v1148 = vunpack.c.h.b16 %v315
    %v1149 = vunpack.c.l.b16 %v316
    %v1150 = vunpack.c.h.b16 %v316
    %v1151 = vunpack.c.l.b16 %v317
    %v1152 = vunpack.c.l.b16 %v318
    %v1153 = vunpack.c.h.b16 %v318
    %v1154 = vunpack.c.l.b16 %v319
    %v1155 = vunpack.c.h.b16 %v319
    %v1156 = vunpack.c.l.b16 %v320
    %v1157 = vunpack.c.l.b16 %v321
    %v1158 = vunpack.c.h.b16 %v321
    %v1159 = vunpack.c.l.b16 %v322
    %v1160 = vunpack.c.h.b16 %v322
    %v1161 = vunpack.c.l.b16 %v323
    %v1162 = vunpack.c.l.b16 %v324
    %v1163 = vunpack.c.h.b16 %v324
    %v1164 = vunpack.c.l.b16 %v325
    %v1165 = vunpack.c.h.b16 %v325
    %v1166 = vunpack.c.l.b16 %v326
    %v1167 = vunpack.c.l.b16 %v327
    %v1168 = vunpack.c.h.b16 %v327
    %v1169 = vunpack.c.l.b16 %v328
    %v1170 = vunpack.c.h.b16 %v328
    %v1171 = vunpack.c.l.b16 %v329
    %v1172 = vunpack.c.l.b16 %v330
    %v1173 = vunpack.c.h.b16 %v330
    %v1174 = vunpack.c.l.b16 %v331
    %v1175 = vunpack.c.h.b16 %v331
    %v1176 = vunpack.c.l.b16 %v332
    %v1177 = vunpack.c.l.b16 %v333
    %v1178 = vunpack.c.h.b16 %v333
    %v1179 = vunpack.c.l.b16 %v334
    %v1180 = vunpack.c.h.b16 %v334
    %v1181 = vunpack.c.l.b16 %v335
    %v1182 = vpack.c.b16 %v697, %v692
    %v1183 = vpack.c.b16 %v698, %v693
    %v1184 = vpack.c.b16 %v699, %v694
    %v1185 = vpack.c.b16 %v700, %v695
    %v1186 = vpack.c.b16 %v701, %v696
    %v1187 = vpack.c.b16 %v707, %v702
    %v1188 = vpack.c.b16 %v708, %v703
    %v1189 = vpack.c.b16 %v709, %v704
    %v1190 = vpack.c.b16 %v710, %v705
    %v1191 = vpack.c.b16 %v711, %v706
    %v1192 = vpack.c.b16 %v717, %v712
    %v1193 = vpack.c.b16 %v718, %v713
    %v1194 = vpack.c.b16 %v719, %v714
    %v1195 = vpack.c.b16 %v720, %v715
    %v1196 = vpack.c.b16 %v721, %v716
    %v1197 = vpack.c.b16 %v727, %v722
    %v1198 = vpack.c.b16 %v728, %v723
    %v1199 = vpack.c.b16 %v729, %v724
    %v1200 = vpack.c.b16 %v730, %v725
    %v1201 = vpack.c.b16 %v731, %v726
    %v1202 = vpack.c.b16 %v737, %v732
    %v1203 = vpack.c.b16 %v738, %v733
    %v1204 = vpack.c.b16 %v739, %v734
    %v1205 = vpack.c.b16 %v740, %v735
    %v1206 = vpack.c.b16 %v741, %v736
    %v1207 = vpack.c.b16 %v747, %v742
    %v1208 = vpack.c.b16 %v748, %v743
    %v1209 = vpack.c.b16 %v749, %v744
    %v1210 = vpack.c.b16 %v750, %v745
    %v1211 = vpack.c.b16 %v751, %v746
    %v1212 = vpack.c.b16 %v757, %v752
    %v1213 = vpack.c.b16 %v758, %v753
    %v1214 = vpack.c.b16 %v759, %v754
    %v1215 = vpack.c.b16 %v760, %v755
    %v1216 = vpack.c.b16 %v761, %v756
    %v1217 = vpack.c.b16 %v767, %v762
    %v1218 = vpack.c.b16 %v768, %v763
    %v1219 = vpack.c.b16 %v769, %v764
    %v1220 = vpack.c.b16 %v770, %v765
    %v1221 = vpack.c.b16 %v771, %v766
    %v1222 = vpack.c.b16 %v777, %v772
    %v1223 = vpack.c.b16 %v778, %v773
    %v1224 = vpack.c.b16 %v779, %v774
    %v1225 = vpack.c.b16 %v780, %v775
    %v1226 = vpack.c.b16 %v781, %v776
    %v1227 = vpack.c.b16 %v787, %v782
    %v1228 = vpack.c.b16 %v788, %v783
    %v1229 = vpack.c.b16 %v789, %v784
    %v1230 = vpack.c.b16 %v790, %v785
    %v1231 = vpack.c.b16 %v791, %v786
    %v1232 = vpack.c.b16 %v797, %v792
    %v1233 = vpack.c.b16 %v798, %v793
    %v1234 = vpack.c.b16 %v799, %v794
    %v1235 = vpack.c.b16 %v800, %v795
    %v1236 = vpack.c.b16 %v801, %v796
    %v1237 = vpack.c.b16 %v807, %v802
    %v1238 = vpack.c.b16 %v808, %v803
    %v1239 = vpack.c.b16 %v809, %v804
    %v1240 = vpack.c.b16 %v810, %v805
    %v1241 = vpack.c.b16 %v811, %v806
    %v1242 = vpack.c.b16 %v817, %v812
    %v1243 = vpack.c.b16 %v818, %v813
    %v1244 = vpack.c.b16 %v819, %v814
    %v1245 = vpack.c.b16 %v820, %v815
    %v1246 = vpack.c.b16 %v821, %v816
    %v1247 = vpack.c.b16 %v827, %v822
    %v1248 = vpack.c.b16 %v828, %v823
    %v1249 = vpack.c.b16 %v829, %v824
    %v1250 = vpack.c.b16 %v830, %v825
    %v1251 = vpack.c.b16 %v831, %v826
    %v1252 = vpack.c.b16 %v837, %v832
    %v1253 = vpack.c.b16 %v838, %v833
    %v1254 = vpack.c.b16 %v839, %v834
    %v1255 = vpack.c.b16 %v840, %v835
    %v1256 = vpack.c.b16 %v841, %v836
    %v1257 = vpack.c.b16 %v847, %v842
    %v1258 = vpack.c.b16 %v848, %v843
    %v1259 = vpack.c.b16 %v849, %v844
    %v1260 = vpack.c.b16 %v850, %v845
    %v1261 = vpack.c.b16 %v851, %v846
    %v1262 = vpack.c.b16 %v857, %v852
    %v1263 = vpack.c.b16 %v858, %v853
    %v1264 = vpack.c.b16 %v859, %v854
    %v1265 = vpack.c.b16 %v860, %v855
    %v1266 = vpack.c.b16 %v861, %v856
    %v1267 = vpack.c.b16 %v867, %v862
    %v1268 = vpack.c.b16 %v868, %v863
    %v1269 = vpack.c.b16 %v869, %v864
    %v1270 = vpack.c.b16 %v870, %v865
    %v1271 = vpack.c.b16 %v871, %v866
    %v1272 = vpack.c.b16 %v877, %v872
    %v1273 = vpack.c.b16 %v878, %v873
    %v1274 = vpack.c.b16 %v879, %v874
    %v1275 = vpack.c.b16 %v880, %v875
    %v1276 = vpack.c.b16 %v881, %v876
    %v1277 = vpack.c.b16 %v887, %v882
    %v1278 = vpack.c.b16 %v888, %v883
    %v1279 = vpack.c.b16 %v889, %v884
    %v1280 = vpack.c.b16 %v890, %v885
    %v1281 = vpack.c.b16 %v891, %v886
    %v1282 = vpack.c.b16 %v897, %v892
    %v1283 = vpack.c.b16 %v898, %v893
    %v1284 = vpack.c.b16 %v899, %v894
    %v1285 = vpack.c.b16 %v900, %v895
    %v1286 = vpack.c.b16 %v901, %v896
    %v1287 = vpack.c.b16 %v907, %v902
    %v1288 = vpack.c.b16 %v908, %v903
    %v1289 = vpack.c.b16 %v909, %v904
    %v1290 = vpack.c.b16 %v910, %v905
    %v1291 = vpack.c.b16 %v911, %v906
    %v1292 = vpack.c.b16 %v917, %v912
    %v1293 = vpack.c.b16 %v918, %v913
    %v1294 = vpack.c.b16 %v919, %v914
    %v1295 = vpack.c.b16 %v920, %v915
    %v1296 = vpack.c.b16 %v921, %v916
    %v1297 = vpack.c.b16 %v927, %v922
    %v1298 = vpack.c.b16 %v928, %v923
    %v1299 = vpack.c.b16 %v929, %v924
    %v1300 = vpack.c.b16 %v930, %v925
    %v1301 = vpack.c.b16 %v931, %v926
    %v1302 = vpack.c.b16 %v937, %v932
    %v1303 = vpack.c.b16 %v938, %v933
    %v1304 = vpack.c.b16 %v939, %v934
    %v1305 = vpack.c.b16 %v940, %v935
    %v1306 = vpack.c.b16 %v941, %v936
    %v1307 = vpack.c.b16 %v947, %v942
    %v1308 = vpack.c.b16 %v948, %v943
    %v1309 = vpack.c.b16 %v949, %v944
    %v1310 = vpack.c.b16 %v950, %v945
    %v1311 = vpack.c.b16 %v951, %v946
    %v1312 = vpack.c.b16 %v957, %v952
    %v1313 = vpack.c.b16 %v958, %v953
    %v1314 = vpack.c.b16 %v959, %v954
    %v1315 = vpack.c.b16 %v960, %v955
    %v1316 = vpack.c.b16 %v961, %v956
    %v1317 = vpack.c.b16 %v967, %v962
    %v1318 = vpack.c.b16 %v968, %v963
    %v1319 = vpack.c.b16 %v969, %v964
    %v1320 = vpack.c.b16 %v970, %v965
    %v1321 = vpack.c.b16 %v971, %v966
    %v1322 = vpack.c.b16 %v977, %v972
    %v1323 = vpack.c.b16 %v978, %v973
    %v1324 = vpack.c.b16 %v979, %v974
    %v1325 = vpack.c.b16 %v980, %v975
    %v1326 = vpack.c.b16 %v981, %v976
    %v1327 = vpack.c.b16 %v987, %v982
    %v1328 = vpack.c.b16 %v988, %v983
    %v1329 = vpack.c.b16 %v989, %v984
    %v1330 = vpack.c.b16 %v990, %v985
    %v1331 = vpack.c.b16 %v991, %v986
    %v1332 = vpack.c.b16 %v997, %v992
    %v1333 = vpack.c.b16 %v998, %v993
    %v1334 = vpack.c.b16 %v999, %v994
    %v1335 = vpack.c.b16 %v1000, %v995
    %v1336 = vpack.c.b16 %v1001, %v996
    %v1337 = vpack.c.b16 %v1007, %v1002
    %v1338 = vpack.c.b16 %v1008, %v1003
    %v1339 = vpack.c.b16 %v1009, %v1004
    %v1340 = vpack.c.b16 %v1010, %v1005
    %v1341 = vpack.c.b16 %v1011, %v1006
    %v1342 = vpack.c.b16 %v1017, %v1012
    %v1343 = vpack.c.b16 %v1018, %v1013
    %v1344 = vpack.c.b16 %v1019, %v1014
    %v1345 = vpack.c.b16 %v1020, %v1015
    %v1346 = vpack.c.b16 %v1021, %v1016
    %v1347 = vpack.c.b16 %v1027, %v1022
    %v1348 = vpack.c.b16 %v1028, %v1023
    %v1349 = vpack.c.b16 %v1029, %v1024
    %v1350 = vpack.c.b16 %v1030, %v1025
    %v1351 = vpack.c.b16 %v1031, %v1026
    %v1352 = vpack.c.b16 %v1037, %v1032
    %v1353 = vpack.c.b16 %v1038, %v1033
    %v1354 = vpack.c.b16 %v1039, %v1034
    %v1355 = vpack.c.b16 %v1040, %v1035
    %v1356 = vpack.c.b16 %v1041, %v1036
    %v1357 = vpack.c.b16 %v1047, %v1042
    %v1358 = vpack.c.b16 %v1048, %v1043
    %v1359 = vpack.c.b16 %v1049, %v1044
    %v1360 = vpack.c.b16 %v1050, %v1045
    %v1361 = vpack.c.b16 %v1051, %v1046
    %v1362 = vpack.c.b16 %v1057, %v1052
    %v1363 = vpack.c.b16 %v1058, %v1053
    %v1364 = vpack.c.b16 %v1059, %v1054
    %v1365 = vpack.c.b16 %v1060, %v1055
    %v1366 = vpack.c.b16 %v1061, %v1056
    %v1367 = vpack.c.b16 %v1067, %v1062
    %v1368 = vpack.c.b16 %v1068, %v1063
    %v1369 = vpack.c.b16 %v1069, %v1064
    %v1370 = vpack.c.b16 %v1070, %v1065
    %v1371 = vpack.c.b16 %v1071, %v1066
    %v1372 = vpack.c.b16 %v1077, %v1072
    %v1373 = vpack.c.b16 %v1078, %v1073
    %v1374 = vpack.c.b16 %v1079, %v1074
    %v1375 = vpack.c.b16 %v1080, %v1075
    %v1376 = vpack.c.b16 %v1081, %v1076
    %v1377 = vpack.c.b16 %v1087, %v1082
    %v1378 = vpack.c.b16 %v1088, %v1083
    %v1379 = vpack.c.b16 %v1089, %v1084
    %v1380 = vpack.c.b16 %v1090, %v1085
    %v1381 = vpack.c.b16 %v1091, %v1086
    %v1382 = vpack.c.b16 %v1097, %v1092
    %v1383 = vpack.c.b16 %v1098, %v1093
    %v1384 = vpack.c.b16 %v1099, %v1094
    %v1385 = vpack.c.b16 %v1100, %v1095
    %v1386 = vpack.c.b16 %v1101, %v1096
    %v1387 = vpack.c.b16 %v1107, %v1102
    %v1388 = vpack.c.b16 %v1108, %v1103
    %v1389 = vpack.c.b16 %v1109, %v1104
    %v1390 = vpack.c.b16 %v1110, %v1105
    %v1391 = vpack.c.b16 %v1111, %v1106
    %v1392 = vpack.c.b16 %v1117, %v1112
    %v1393 = vpack.c.b16 %v1118, %v1113
    %v1394 = vpack.c.b16 %v1119, %v1114
    %v1395 = vpack.c.b16 %v1120, %v1115
    %v1396 = vpack.c.b16 %v1121, %v1116
    %v1397 = vpack.c.b16 %v1127, %v1122
    %v1398 = vpack.c.b16 %v1128, %v1123
    %v1399 = vpack.c.b16 %v1129, %v1124
    %v1400 = vpack.c.b16 %v1130, %v1125
    %v1401 = vpack.c.b16 %v1131, %v1126
    %v1402 = vpack.c.b16 %v1137, %v1132
    %v1403 = vpack.c.b16 %v1138, %v1133
    %v1404 = vpack.c.b16 %v1139, %v1134
    %v1405 = vpack.c.b16 %v1140, %v1135
    %v1406 = vpack.c.b16 %v1141, %v1136
    %v1407 = vpack.c.b16 %v1147, %v1142
    %v1408 = vpack.c.b16 %v1148, %v1143
    %v1409 = vpack.c.b16 %v1149, %v1144
    %v1410 = vpack.c.b16 %v1150, %v1145
    %v1411 = vpack.c.b16 %v1151, %v1146
    %v1412 = vpack.c.b16 %v1157, %v1152
    %v1413 = vpack.c.b16 %v1158, %v1153
    %v1414 = vpack.c.b16 %v1159, %v1154
    %v1415 = vpack.c.b16 %v1160, %v1155
    %v1416 = vpack.c.b16 %v1161, %v1156
    %v1417 = vpack.c.b16 %v1167, %v1162
    %v1418 = vpack.c.b16 %v1168, %v1163
    %v1419 = vpack.c.b16 %v1169, %v1164
    %v1420 = vpack.c.b16 %v1170, %v1165
    %v1421 = vpack.c.b16 %v1171, %v1166
    %v1422 = vpack.c.b16 %v1177, %v1172
    %v1423 = vpack.c.b16 %v1178, %v1173
    %v1424 = vpack.c.b16 %v1179, %v1174
    %v1425 = vpack.c.b16 %v1180, %v1175
    %v1426 = vpack.c.b16 %v1181, %v1176
    %vm1672 = vcmask 130048
    %v1674 = vsel %vm1672, %v391, 0
    %1676 = vmatprep.subr.bf16.mxu0 %v1183
    %1677 = vmatpush1.bf16.msra.mxu0 %v1182
    %1678 = vmatprep.subr.bf16.mxu0 %v1188
    %1679 = vmatpush1.bf16.msra.mxu0 %v1187
    %1680 = vmatprep.subr.bf16.mxu0 %v1193
    %1681 = vmatpush1.bf16.msra.mxu0 %v1192
    %1682 = vmatprep.subr.bf16.mxu0 %v1198
    %1683 = vmatpush1.bf16.msra.mxu0 %v1197
    %1684 = vmatprep.subr.bf16.mxu0 %v1203
    %1685 = vmatpush1.bf16.msra.mxu0 %v1202
    %1686 = vmatprep.subr.bf16.mxu0 %v1208
    %1687 = vmatpush1.bf16.msra.mxu0 %v1207
    %1688 = vmatprep.subr.bf16.mxu0 %v1213
    %1689 = vmatpush1.bf16.msra.mxu0 %v1212
    %1690 = vmatprep.subr.bf16.mxu0 %v1218
    %1691 = vmatpush1.bf16.msra.mxu0 %v1217
    %1692 = vmatprep.subr.bf16.mxu0 %v1223
    %1693 = vmatpush1.bf16.msra.mxu0 %v1222
    %1694 = vmatprep.subr.bf16.mxu0 %v1228
    %1695 = vmatpush1.bf16.msra.mxu0 %v1227
    %1696 = vmatprep.subr.bf16.mxu0 %v1233
    %1697 = vmatpush1.bf16.msra.mxu0 %v1232
    %1698 = vmatprep.subr.bf16.mxu0 %v1238
    %1699 = vmatpush1.bf16.msra.mxu0 %v1237
    %1700 = vmatprep.subr.bf16.mxu0 %v1243
    %1701 = vmatpush1.bf16.msra.mxu0 %v1242
    %1702 = vmatprep.subr.bf16.mxu0 %v1248
    %1703 = vmatpush1.bf16.msra.mxu0 %v1247
    %1704 = vmatprep.subr.bf16.mxu0 %v1253
    %1705 = vmatpush1.bf16.msra.mxu0 %v1252
    %1706 = vmatprep.subr.bf16.mxu0 %v1258
    %1707 = vmatpush1.bf16.msra.mxu0 %v1257
    %1708 = vmatprep.mubr.bf16.mxu0 %v386
    %1709 = vmatmul.mubr.bf16.gmra.mrb[0].mxu0 %v385
    %v1710 = vpop.f32.mrb[0].mxu0
    %v1711 = vadd.f32 %v341, %v1710
    %v1712 = vpop.f32.mrb[0].mxu0
    %v1713 = vadd.f32 %v345, %v1712
    %v1714 = vpop.f32.mrb[0].mxu0
    %v1715 = vadd.f32 %v341, %v1714
    %v1716 = vpop.f32.mrb[0].mxu0
    %v1717 = vadd.f32 %v345, %v1716
    %1718 = vdwg.mxu0
    %1719 = vmatprep.subr.bf16.mxu0 %v1263
    %1720 = vmatpush1.bf16.msra.mxu0 %v1262
    %1721 = vmatprep.subr.bf16.mxu0 %v1268
    %1722 = vmatpush1.bf16.msra.mxu0 %v1267
    %1723 = vmatprep.subr.bf16.mxu0 %v1273
    %1724 = vmatpush1.bf16.msra.mxu0 %v1272
    %1725 = vmatprep.subr.bf16.mxu0 %v1278
    %1726 = vmatpush1.bf16.msra.mxu0 %v1277
    %1727 = vmatprep.subr.bf16.mxu0 %v1283
    %1728 = vmatpush1.bf16.msra.mxu0 %v1282
    %1729 = vmatprep.subr.bf16.mxu0 %v1288
    %1730 = vmatpush1.bf16.msra.mxu0 %v1287
    %1731 = vmatprep.subr.bf16.mxu0 %v1293
    %1732 = vmatpush1.bf16.msra.mxu0 %v1292
    %1733 = vmatprep.subr.bf16.mxu0 %v1298
    %1734 = vmatpush1.bf16.msra.mxu0 %v1297
    %1735 = vmatprep.subr.bf16.mxu0 %v1303
    %1736 = vmatpush1.bf16.msra.mxu0 %v1302
    %1737 = vmatprep.subr.bf16.mxu0 %v1308
    %1738 = vmatpush1.bf16.msra.mxu0 %v1307
    %1739 = vmatprep.subr.bf16.mxu0 %v1313
    %1740 = vmatpush1.bf16.msra.mxu0 %v1312
    %1741 = vmatprep.subr.bf16.mxu0 %v1318
    %1742 = vmatpush1.bf16.msra.mxu0 %v1317
    %1743 = vmatprep.subr.bf16.mxu0 %v1323
    %1744 = vmatpush1.bf16.msra.mxu0 %v1322
    %1745 = vmatprep.subr.bf16.mxu0 %v1328
    %1746 = vmatpush1.bf16.msra.mxu0 %v1327
    %1747 = vmatprep.subr.bf16.mxu0 %v1333
    %1748 = vmatpush1.bf16.msra.mxu0 %v1332
    %1749 = vmatprep.subr.bf16.mxu0 %v1338
    %1750 = vmatpush1.bf16.msra.mxu0 %v1337
    %1751 = vmatprep.mubr.bf16.mxu0 %v388
    %1752 = vmatmul.mubr.bf16.gmra.mrb[0].mxu0 %v387
    %v1753 = vpop.f32.mrb[0].mxu0
    %v1754 = vadd.f32 %v1711, %v1753
    %v1755 = vpop.f32.mrb[0].mxu0
    %v1756 = vadd.f32 %v1713, %v1755
    %v1757 = vpop.f32.mrb[0].mxu0
    %v1758 = vadd.f32 %v1715, %v1757
    %v1759 = vpop.f32.mrb[0].mxu0
    %v1760 = vadd.f32 %v1717, %v1759
    %1761 = vdwg.mxu0
    %1762 = vmatprep.subr.bf16.mxu0 %v1343
    %1763 = vmatpush1.bf16.msra.mxu0 %v1342
    %1764 = vmatprep.subr.bf16.mxu0 %v1348
    %1765 = vmatpush1.bf16.msra.mxu0 %v1347
    %1766 = vmatprep.subr.bf16.mxu0 %v1353
    %1767 = vmatpush1.bf16.msra.mxu0 %v1352
    %1768 = vmatprep.subr.bf16.mxu0 %v1358
    %1769 = vmatpush1.bf16.msra.mxu0 %v1357
    %1770 = vmatprep.subr.bf16.mxu0 %v1363
    %1771 = vmatpush1.bf16.msra.mxu0 %v1362
    %1772 = vmatprep.subr.bf16.mxu0 %v1368
    %1773 = vmatpush1.bf16.msra.mxu0 %v1367
    %1774 = vmatprep.subr.bf16.mxu0 %v1373
    %1775 = vmatpush1.bf16.msra.mxu0 %v1372
    %1776 = vmatprep.subr.bf16.mxu0 %v1378
    %1777 = vmatpush1.bf16.msra.mxu0 %v1377
    %1778 = vmatprep.subr.bf16.mxu0 %v1383
    %1779 = vmatpush1.bf16.msra.mxu0 %v1382
    %1780 = vmatprep.subr.bf16.mxu0 %v1388
    %1781 = vmatpush1.bf16.msra.mxu0 %v1387
    %1782 = vmatprep.subr.bf16.mxu0 %v1393
    %1783 = vmatpush1.bf16.msra.mxu0 %v1392
    %1784 = vmatprep.subr.bf16.mxu0 %v1398
    %1785 = vmatpush1.bf16.msra.mxu0 %v1397
    %1786 = vmatprep.subr.bf16.mxu0 %v1403
    %1787 = vmatpush1.bf16.msra.mxu0 %v1402
    %1788 = vmatprep.subr.bf16.mxu0 %v1408
    %1789 = vmatpush1.bf16.msra.mxu0 %v1407
    %1790 = vmatprep.subr.bf16.mxu0 %v1413
    %1791 = vmatpush1.bf16.msra.mxu0 %v1412
    %1792 = vmatprep.subr.bf16.mxu0 %v1418
    %1793 = vmatpush1.bf16.msra.mxu0 %v1417
    %1794 = vmatprep.mubr.bf16.mxu0 %v390
    %1795 = vmatmul.mubr.bf16.gmra.mrb[0].mxu0 %v389
    %v1796 = vpop.f32.mrb[0].mxu0
    %v1797 = vadd.f32 %v1754, %v1796
    %v1798 = vpop.f32.mrb[0].mxu0
    %v1799 = vadd.f32 %v1756, %v1798
    %v1800 = vpop.f32.mrb[0].mxu0
    %v1801 = vadd.f32 %v1758, %v1800
    %v1802 = vpop.f32.mrb[0].mxu0
    %v1803 = vadd.f32 %v1760, %v1802
    %1804 = vdwg.mxu0
    %1805 = vmatprep.subr.bf16.mxu0 %v1423
    %1806 = vmatpush1.bf16.msra.mxu0 %v1422
    %1807 = vmatprep.subr.bf16.mxu0 0
    %1808 = vmatpush1.bf16.msra.mxu0 0
    %1809 = vmatprep.subr.bf16.mxu0 0
    %1810 = vmatpush1.bf16.msra.mxu0 0
    %1811 = vmatprep.subr.bf16.mxu0 0
    %1812 = vmatpush1.bf16.msra.mxu0 0
    %1813 = vmatprep.subr.bf16.mxu0 0
    %1814 = vmatpush1.bf16.msra.mxu0 0
    %1815 = vmatprep.subr.bf16.mxu0 0
    %1816 = vmatpush1.bf16.msra.mxu0 0
    %1817 = vmatprep.subr.bf16.mxu0 0
    %1818 = vmatpush1.bf16.msra.mxu0 0
    %1819 = vmatprep.subr.bf16.mxu0 0
    %1820 = vmatpush1.bf16.msra.mxu0 0
    %1821 = vmatprep.subr.bf16.mxu0 0
    %1822 = vmatpush1.bf16.msra.mxu0 0
    %1823 = vmatprep.subr.bf16.mxu0 0
    %1824 = vmatpush1.bf16.msra.mxu0 0
    %1825 = vmatprep.subr.bf16.mxu0 0
    %1826 = vmatpush1.bf16.msra.mxu0 0
    %1827 = vmatprep.subr.bf16.mxu0 0
    %1828 = vmatpush1.bf16.msra.mxu0 0
    %1829 = vmatprep.subr.bf16.mxu0 0
    %1830 = vmatpush1.bf16.msra.mxu0 0
    %1831 = vmatprep.subr.bf16.mxu0 0
    %1832 = vmatpush1.bf16.msra.mxu0 0
    %1833 = vmatprep.subr.bf16.mxu0 0
    %1834 = vmatpush1.bf16.msra.mxu0 0
    %1835 = vmatprep.subr.bf16.mxu0 0
    %1836 = vmatpush1.bf16.msra.mxu0 0
    %1837 = vmatprep.mubr.bf16.mxu0 0
    %1838 = vmatmul.mubr.bf16.gmra.mrb[0].mxu0 %v1674
    %v1839 = vpop.f32.mrb[0].mxu0
    %v1840 = vadd.f32 %v1797, %v1839
    %v1841 = vpop.f32.mrb[0].mxu0
    %v1842 = vadd.f32 %v1799, %v1841
    %v1843 = vpop.f32.mrb[0].mxu0
    %v1844 = vadd.f32 %v1801, %v1843
    %v1845 = vpop.f32.mrb[0].mxu0
    %v1846 = vadd.f32 %v1803, %v1845
    %1847 = vdwg.mxu0
    %1848 = vmatprep.subr.bf16.mxu0 %v1185
    %1849 = vmatpush1.bf16.msra.mxu0 %v1184
    %1850 = vmatprep.subr.bf16.mxu0 %v1190
    %1851 = vmatpush1.bf16.msra.mxu0 %v1189
    %1852 = vmatprep.subr.bf16.mxu0 %v1195
    %1853 = vmatpush1.bf16.msra.mxu0 %v1194
    %1854 = vmatprep.subr.bf16.mxu0 %v1200
    %1855 = vmatpush1.bf16.msra.mxu0 %v1199
    %1856 = vmatprep.subr.bf16.mxu0 %v1205
    %1857 = vmatpush1.bf16.msra.mxu0 %v1204
    %1858 = vmatprep.subr.bf16.mxu0 %v1210
    %1859 = vmatpush1.bf16.msra.mxu0 %v1209
    %1860 = vmatprep.subr.bf16.mxu0 %v1215
    %1861 = vmatpush1.bf16.msra.mxu0 %v1214
    %1862 = vmatprep.subr.bf16.mxu0 %v1220
    %1863 = vmatpush1.bf16.msra.mxu0 %v1219
    %1864 = vmatprep.subr.bf16.mxu0 %v1225
    %1865 = vmatpush1.bf16.msra.mxu0 %v1224
    %1866 = vmatprep.subr.bf16.mxu0 %v1230
    %1867 = vmatpush1.bf16.msra.mxu0 %v1229
    %1868 = vmatprep.subr.bf16.mxu0 %v1235
    %1869 = vmatpush1.bf16.msra.mxu0 %v1234
    %1870 = vmatprep.subr.bf16.mxu0 %v1240
    %1871 = vmatpush1.bf16.msra.mxu0 %v1239
    %1872 = vmatprep.subr.bf16.mxu0 %v1245
    %1873 = vmatpush1.bf16.msra.mxu0 %v1244
    %1874 = vmatprep.subr.bf16.mxu0 %v1250
    %1875 = vmatpush1.bf16.msra.mxu0 %v1249
    %1876 = vmatprep.subr.bf16.mxu0 %v1255
    %1877 = vmatpush1.bf16.msra.mxu0 %v1254
    %1878 = vmatprep.subr.bf16.mxu0 %v1260
    %1879 = vmatpush1.bf16.msra.mxu0 %v1259
    %1880 = vmatprep.mubr.bf16.mxu0 %v386
    %1881 = vmatmul.mubr.bf16.gmra.mrb[0].mxu0 %v385
    %v1882 = vpop.f32.mrb[0].mxu0
    %v1883 = vadd.f32 %v349, %v1882
    %v1884 = vpop.f32.mrb[0].mxu0
    %v1885 = vadd.f32 %v353, %v1884
    %v1886 = vpop.f32.mrb[0].mxu0
    %v1887 = vadd.f32 %v349, %v1886
    %v1888 = vpop.f32.mrb[0].mxu0
    %v1889 = vadd.f32 %v353, %v1888
    %1890 = vdwg.mxu0
    %1891 = vmatprep.subr.bf16.mxu0 %v1265
    %1892 = vmatpush1.bf16.msra.mxu0 %v1264
    %1893 = vmatprep.subr.bf16.mxu0 %v1270
    %1894 = vmatpush1.bf16.msra.mxu0 %v1269
    %1895 = vmatprep.subr.bf16.mxu0 %v1275
    %1896 = vmatpush1.bf16.msra.mxu0 %v1274
    %1897 = vmatprep.subr.bf16.mxu0 %v1280
    %1898 = vmatpush1.bf16.msra.mxu0 %v1279
    %1899 = vmatprep.subr.bf16.mxu0 %v1285
    %1900 = vmatpush1.bf16.msra.mxu0 %v1284
    %1901 = vmatprep.subr.bf16.mxu0 %v1290
    %1902 = vmatpush1.bf16.msra.mxu0 %v1289
    %1903 = vmatprep.subr.bf16.mxu0 %v1295
    %1904 = vmatpush1.bf16.msra.mxu0 %v1294
    %1905 = vmatprep.subr.bf16.mxu0 %v1300
    %1906 = vmatpush1.bf16.msra.mxu0 %v1299
    %1907 = vmatprep.subr.bf16.mxu0 %v1305
    %1908 = vmatpush1.bf16.msra.mxu0 %v1304
    %1909 = vmatprep.subr.bf16.mxu0 %v1310
    %1910 = vmatpush1.bf16.msra.mxu0 %v1309
    %1911 = vmatprep.subr.bf16.mxu0 %v1315
    %1912 = vmatpush1.bf16.msra.mxu0 %v1314
    %1913 = vmatprep.subr.bf16.mxu0 %v1320
    %1914 = vmatpush1.bf16.msra.mxu0 %v1319
    %1915 = vmatprep.subr.bf16.mxu0 %v1325
    %1916 = vmatpush1.bf16.msra.mxu0 %v1324
    %1917 = vmatprep.subr.bf16.mxu0 %v1330
    %1918 = vmatpush1.bf16.msra.mxu0 %v1329
    %1919 = vmatprep.subr.bf16.mxu0 %v1335
    %1920 = vmatpush1.bf16.msra.mxu0 %v1334
    %1921 = vmatprep.subr.bf16.mxu0 %v1340
    %1922 = vmatpush1.bf16.msra.mxu0 %v1339
    %1923 = vmatprep.mubr.bf16.mxu0 %v388
    %1924 = vmatmul.mubr.bf16.gmra.mrb[0].mxu0 %v387
    %v1925 = vpop.f32.mrb[0].mxu0
    %v1926 = vadd.f32 %v1883, %v1925
    %v1927 = vpop.f32.mrb[0].mxu0
    %v1928 = vadd.f32 %v1885, %v1927
    %v1929 = vpop.f32.mrb[0].mxu0
    %v1930 = vadd.f32 %v1887, %v1929
    %v1931 = vpop.f32.mrb[0].mxu0
    %v1932 = vadd.f32 %v1889, %v1931
    %1933 = vdwg.mxu0
    %1934 = vmatprep.subr.bf16.mxu0 %v1345
    %1935 = vmatpush1.bf16.msra.mxu0 %v1344
    %1936 = vmatprep.subr.bf16.mxu0 %v1350
    %1937 = vmatpush1.bf16.msra.mxu0 %v1349
    %1938 = vmatprep.subr.bf16.mxu0 %v1355
    %1939 = vmatpush1.bf16.msra.mxu0 %v1354
    %1940 = vmatprep.subr.bf16.mxu0 %v1360
    %1941 = vmatpush1.bf16.msra.mxu0 %v1359
    %1942 = vmatprep.subr.bf16.mxu0 %v1365
    %1943 = vmatpush1.bf16.msra.mxu0 %v1364
    %1944 = vmatprep.subr.bf16.mxu0 %v1370
    %1945 = vmatpush1.bf16.msra.mxu0 %v1369
    %1946 = vmatprep.subr.bf16.mxu0 %v1375
    %1947 = vmatpush1.bf16.msra.mxu0 %v1374
    %1948 = vmatprep.subr.bf16.mxu0 %v1380
    %1949 = vmatpush1.bf16.msra.mxu0 %v1379
    %1950 = vmatprep.subr.bf16.mxu0 %v1385
    %1951 = vmatpush1.bf16.msra.mxu0 %v1384
    %1952 = vmatprep.subr.bf16.mxu0 %v1390
    %1953 = vmatpush1.bf16.msra.mxu0 %v1389
    %1954 = vmatprep.subr.bf16.mxu0 %v1395
    %1955 = vmatpush1.bf16.msra.mxu0 %v1394
    %1956 = vmatprep.subr.bf16.mxu0 %v1400
    %1957 = vmatpush1.bf16.msra.mxu0 %v1399
    %1958 = vmatprep.subr.bf16.mxu0 %v1405
    %1959 = vmatpush1.bf16.msra.mxu0 %v1404
    %1960 = vmatprep.subr.bf16.mxu0 %v1410
    %1961 = vmatpush1.bf16.msra.mxu0 %v1409
    %1962 = vmatprep.subr.bf16.mxu0 %v1415
    %1963 = vmatpush1.bf16.msra.mxu0 %v1414
    %1964 = vmatprep.subr.bf16.mxu0 %v1420
    %1965 = vmatpush1.bf16.msra.mxu0 %v1419
    %1966 = vmatprep.mubr.bf16.mxu0 %v390
    %1967 = vmatmul.mubr.bf16.gmra.mrb[0].mxu0 %v389
    %v1968 = vpop.f32.mrb[0].mxu0
    %v1969 = vadd.f32 %v1926, %v1968
    %v1970 = vpop.f32.mrb[0].mxu0
    %v1971 = vadd.f32 %v1928, %v1970
    %v1972 = vpop.f32.mrb[0].mxu0
    %v1973 = vadd.f32 %v1930, %v1972
    %v1974 = vpop.f32.mrb[0].mxu0
    %v1975 = vadd.f32 %v1932, %v1974
    %1976 = vdwg.mxu0
    %1977 = vmatprep.subr.bf16.mxu0 %v1425
    %1978 = vmatpush1.bf16.msra.mxu0 %v1424
    %1979 = vmatprep.subr.bf16.mxu0 0
    %1980 = vmatpush1.bf16.msra.mxu0 0
    %1981 = vmatprep.subr.bf16.mxu0 0
    %1982 = vmatpush1.bf16.msra.mxu0 0
    %1983 = vmatprep.subr.bf16.mxu0 0
    %1984 = vmatpush1.bf16.msra.mxu0 0
    %1985 = vmatprep.subr.bf16.mxu0 0
    %1986 = vmatpush1.bf16.msra.mxu0 0
    %1987 = vmatprep.subr.bf16.mxu0 0
    %1988 = vmatpush1.bf16.msra.mxu0 0
    %1989 = vmatprep.subr.bf16.mxu0 0
    %1990 = vmatpush1.bf16.msra.mxu0 0
    %1991 = vmatprep.subr.bf16.mxu0 0
    %1992 = vmatpush1.bf16.msra.mxu0 0
    %1993 = vmatprep.subr.bf16.mxu0 0
    %1994 = vmatpush1.bf16.msra.mxu0 0
    %1995 = vmatprep.subr.bf16.mxu0 0
    %1996 = vmatpush1.bf16.msra.mxu0 0
    %1997 = vmatprep.subr.bf16.mxu0 0
    %1998 = vmatpush1.bf16.msra.mxu0 0
    %1999 = vmatprep.subr.bf16.mxu0 0
    %2000 = vmatpush1.bf16.msra.mxu0 0
    %2001 = vmatprep.subr.bf16.mxu0 0
    %2002 = vmatpush1.bf16.msra.mxu0 0
    %2003 = vmatprep.subr.bf16.mxu0 0
    %2004 = vmatpush1.bf16.msra.mxu0 0
    %2005 = vmatprep.subr.bf16.mxu0 0
    %2006 = vmatpush1.bf16.msra.mxu0 0
    %2007 = vmatprep.subr.bf16.mxu0 0
    %2008 = vmatpush1.bf16.msra.mxu0 0
    %2009 = vmatprep.mubr.bf16.mxu0 0
    %2010 = vmatmul.mubr.bf16.gmra.mrb[0].mxu0 %v1674
    %v2011 = vpop.f32.mrb[0].mxu0
    %v2012 = vadd.f32 %v1969, %v2011
    %v2013 = vpop.f32.mrb[0].mxu0
    %v2014 = vadd.f32 %v1971, %v2013
    %v2015 = vpop.f32.mrb[0].mxu0
    %v2016 = vadd.f32 %v1973, %v2015
    %v2017 = vpop.f32.mrb[0].mxu0
    %v2018 = vadd.f32 %v1975, %v2017
    %2019 = vdwg.mxu0
    %2020 = vmatprep.subr.bf16.mxu0 0
    %2021 = vmatpush1.bf16.msra.mxu0 %v1186
    %2022 = vmatprep.subr.bf16.mxu0 0
    %2023 = vmatpush1.bf16.msra.mxu0 %v1191
    %2024 = vmatprep.subr.bf16.mxu0 0
    %2025 = vmatpush1.bf16.msra.mxu0 %v1196
    %2026 = vmatprep.subr.bf16.mxu0 0
    %2027 = vmatpush1.bf16.msra.mxu0 %v1201
    %2028 = vmatprep.subr.bf16.mxu0 0
    %2029 = vmatpush1.bf16.msra.mxu0 %v1206
    %2030 = vmatprep.subr.bf16.mxu0 0
    %2031 = vmatpush1.bf16.msra.mxu0 %v1211
    %2032 = vmatprep.subr.bf16.mxu0 0
    %2033 = vmatpush1.bf16.msra.mxu0 %v1216
    %2034 = vmatprep.subr.bf16.mxu0 0
    %2035 = vmatpush1.bf16.msra.mxu0 %v1221
    %2036 = vmatprep.subr.bf16.mxu0 0
    %2037 = vmatpush1.bf16.msra.mxu0 %v1226
    %2038 = vmatprep.subr.bf16.mxu0 0
    %2039 = vmatpush1.bf16.msra.mxu0 %v1231
    %2040 = vmatprep.subr.bf16.mxu0 0
    %2041 = vmatpush1.bf16.msra.mxu0 %v1236
    %2042 = vmatprep.subr.bf16.mxu0 0
    %2043 = vmatpush1.bf16.msra.mxu0 %v1241
    %2044 = vmatprep.subr.bf16.mxu0 0
    %2045 = vmatpush1.bf16.msra.mxu0 %v1246
    %2046 = vmatprep.subr.bf16.mxu0 0
    %2047 = vmatpush1.bf16.msra.mxu0 %v1251
    %2048 = vmatprep.subr.bf16.mxu0 0
    %2049 = vmatpush1.bf16.msra.mxu0 %v1256
    %2050 = vmatprep.subr.bf16.mxu0 0
    %2051 = vmatpush1.bf16.msra.mxu0 %v1261
    %2052 = vmatprep.mubr.bf16.mxu0 %v386
    %2053 = vmatmul.mubr.bf16.gmra.mrb[0].mxu0 %v385
    %v2054 = vpop.f32.mrb[0].mxu0
    %v2055 = vadd.f32 %v357, %v2054
    %v2056 = vpop.f32.mrb[0].mxu0
    %v2057 = vpop.f32.mrb[0].mxu0
    %v2058 = vadd.f32 %v357, %v2057
    %v2059 = vpop.f32.mrb[0].mxu0
    %2060 = vdwg.mxu0
    %2061 = vmatprep.subr.bf16.mxu0 0
    %2062 = vmatpush1.bf16.msra.mxu0 %v1266
    %2063 = vmatprep.subr.bf16.mxu0 0
    %2064 = vmatpush1.bf16.msra.mxu0 %v1271
    %2065 = vmatprep.subr.bf16.mxu0 0
    %2066 = vmatpush1.bf16.msra.mxu0 %v1276
    %2067 = vmatprep.subr.bf16.mxu0 0
    %2068 = vmatpush1.bf16.msra.mxu0 %v1281
    %2069 = vmatprep.subr.bf16.mxu0 0
    %2070 = vmatpush1.bf16.msra.mxu0 %v1286
    %2071 = vmatprep.subr.bf16.mxu0 0
    %2072 = vmatpush1.bf16.msra.mxu0 %v1291
    %2073 = vmatprep.subr.bf16.mxu0 0
    %2074 = vmatpush1.bf16.msra.mxu0 %v1296
    %2075 = vmatprep.subr.bf16.mxu0 0
    %2076 = vmatpush1.bf16.msra.mxu0 %v1301
    %2077 = vmatprep.subr.bf16.mxu0 0
    %2078 = vmatpush1.bf16.msra.mxu0 %v1306
    %2079 = vmatprep.subr.bf16.mxu0 0
    %2080 = vmatpush1.bf16.msra.mxu0 %v1311
    %2081 = vmatprep.subr.bf16.mxu0 0
    %2082 = vmatpush1.bf16.msra.mxu0 %v1316
    %2083 = vmatprep.subr.bf16.mxu0 0
    %2084 = vmatpush1.bf16.msra.mxu0 %v1321
    %2085 = vmatprep.subr.bf16.mxu0 0
    %2086 = vmatpush1.bf16.msra.mxu0 %v1326
    %2087 = vmatprep.subr.bf16.mxu0 0
    %2088 = vmatpush1.bf16.msra.mxu0 %v1331
    %2089 = vmatprep.subr.bf16.mxu0 0
    %2090 = vmatpush1.bf16.msra.mxu0 %v1336
    %2091 = vmatprep.subr.bf16.mxu0 0
    %2092 = vmatpush1.bf16.msra.mxu0 %v1341
    %2093 = vmatprep.mubr.bf16.mxu0 %v388
    %2094 = vmatmul.mubr.bf16.gmra.mrb[0].mxu0 %v387
    %v2095 = vpop.f32.mrb[0].mxu0
    %v2096 = vadd.f32 %v2055, %v2095
    %v2097 = vpop.f32.mrb[0].mxu0
    %v2098 = vpop.f32.mrb[0].mxu0
    %v2099 = vadd.f32 %v2058, %v2098
    %v2100 = vpop.f32.mrb[0].mxu0
    %2101 = vdwg.mxu0
    %2102 = vmatprep.subr.bf16.mxu0 0
    %2103 = vmatpush1.bf16.msra.mxu0 %v1346
    %2104 = vmatprep.subr.bf16.mxu0 0
    %2105 = vmatpush1.bf16.msra.mxu0 %v1351
    %2106 = vmatprep.subr.bf16.mxu0 0
    %2107 = vmatpush1.bf16.msra.mxu0 %v1356
    %2108 = vmatprep.subr.bf16.mxu0 0
    %2109 = vmatpush1.bf16.msra.mxu0 %v1361
    %2110 = vmatprep.subr.bf16.mxu0 0
    %2111 = vmatpush1.bf16.msra.mxu0 %v1366
    %2112 = vmatprep.subr.bf16.mxu0 0
    %2113 = vmatpush1.bf16.msra.mxu0 %v1371
    %2114 = vmatprep.subr.bf16.mxu0 0
    %2115 = vmatpush1.bf16.msra.mxu0 %v1376
    %2116 = vmatprep.subr.bf16.mxu0 0
    %2117 = vmatpush1.bf16.msra.mxu0 %v1381
    %2118 = vmatprep.subr.bf16.mxu0 0
    %2119 = vmatpush1.bf16.msra.mxu0 %v1386
    %2120 = vmatprep.subr.bf16.mxu0 0
    %2121 = vmatpush1.bf16.msra.mxu0 %v1391
    %2122 = vmatprep.subr.bf16.mxu0 0
    %2123 = vmatpush1.bf16.msra.mxu0 %v1396
    %2124 = vmatprep.subr.bf16.mxu0 0
    %2125 = vmatpush1.bf16.msra.mxu0 %v1401
    %2126 = vmatprep.subr.bf16.mxu0 0
    %2127 = vmatpush1.bf16.msra.mxu0 %v1406
    %2128 = vmatprep.subr.bf16.mxu0 0
    %2129 = vmatpush1.bf16.msra.mxu0 %v1411
    %2130 = vmatprep.subr.bf16.mxu0 0
    %2131 = vmatpush1.bf16.msra.mxu0 %v1416
    %2132 = vmatprep.subr.bf16.mxu0 0
    %2133 = vmatpush1.bf16.msra.mxu0 %v1421
    %2134 = vmatprep.mubr.bf16.mxu0 %v390
    %2135 = vmatmul.mubr.bf16.gmra.mrb[0].mxu0 %v389
    %v2136 = vpop.f32.mrb[0].mxu0
    %v2137 = vadd.f32 %v2096, %v2136
    %v2138 = vpop.f32.mrb[0].mxu0
    %v2139 = vpop.f32.mrb[0].mxu0
    %v2140 = vadd.f32 %v2099, %v2139
    %v2141 = vpop.f32.mrb[0].mxu0
    %2142 = vdwg.mxu0
    %2143 = vmatprep.subr.bf16.mxu0 0
    %2144 = vmatpush1.bf16.msra.mxu0 %v1426
    %2145 = vmatprep.subr.bf16.mxu0 0
    %2146 = vmatpush1.bf16.msra.mxu0 0
    %2147 = vmatprep.subr.bf16.mxu0 0
    %2148 = vmatpush1.bf16.msra.mxu0 0
    %2149 = vmatprep.subr.bf16.mxu0 0
    %2150 = vmatpush1.bf16.msra.mxu0 0
    %2151 = vmatprep.subr.bf16.mxu0 0
    %2152 = vmatpush1.bf16.msra.mxu0 0
    %2153 = vmatprep.subr.bf16.mxu0 0
    %2154 = vmatpush1.bf16.msra.mxu0 0
    %2155 = vmatprep.subr.bf16.mxu0 0
    %2156 = vmatpush1.bf16.msra.mxu0 0
    %2157 = vmatprep.subr.bf16.mxu0 0
    %2158 = vmatpush1.bf16.msra.mxu0 0
    %2159 = vmatprep.subr.bf16.mxu0 0
    %2160 = vmatpush1.bf16.msra.mxu0 0
    %2161 = vmatprep.subr.bf16.mxu0 0
    %2162 = vmatpush1.bf16.msra.mxu0 0
    %2163 = vmatprep.subr.bf16.mxu0 0
    %2164 = vmatpush1.bf16.msra.mxu0 0
    %2165 = vmatprep.subr.bf16.mxu0 0
    %2166 = vmatpush1.bf16.msra.mxu0 0
    %2167 = vmatprep.subr.bf16.mxu0 0
    %2168 = vmatpush1.bf16.msra.mxu0 0
    %2169 = vmatprep.subr.bf16.mxu0 0
    %2170 = vmatpush1.bf16.msra.mxu0 0
    %2171 = vmatprep.subr.bf16.mxu0 0
    %2172 = vmatpush1.bf16.msra.mxu0 0
    %2173 = vmatprep.subr.bf16.mxu0 0
    %2174 = vmatpush1.bf16.msra.mxu0 0
    %2175 = vmatprep.mubr.bf16.mxu0 0
    %2176 = vmatmul.mubr.bf16.gmra.mrb[0].mxu0 %v1674
    %v2177 = vpop.f32.mrb[0].mxu0
    %v2178 = vadd.f32 %v2137, %v2177
    %v2179 = vpop.f32.mrb[0].mxu0
    %v2180 = vpop.f32.mrb[0].mxu0
    %v2181 = vadd.f32 %v2140, %v2180
    %v2182 = vpop.f32.mrb[0].mxu0
    %2183 = vdwg.mxu0
    %v2184 = vmax.f32 %v1840, 0.0
    %v2185 = vmax.f32 %v1842, 0.0
    %v2186 = vmax.f32 %v2012, 0.0
    %v2187 = vmax.f32 %v2014, 0.0
    %v2188 = vmax.f32 %v2178, 0.0
    %v2189 = vmax.f32 %v1844, 0.0
    %v2190 = vmax.f32 %v1846, 0.0
    %v2191 = vmax.f32 %v2016, 0.0
    %v2192 = vmax.f32 %v2018, 0.0
    %v2193 = vmax.f32 %v2181, 0.0
    %v2194 = vpack.c.bf16 %v2189, %v2184
    %v2195 = vpack.c.bf16 %v2190, %v2185
    %v2196 = vpack.c.bf16 %v2191, %v2186
    %v2197 = vpack.c.bf16 %v2192, %v2187
    %v2198 = vpack.c.bf16 %v2193, %v2188
    %v2199 = vld [vmem:[%s3] sm:$0xf]
    %v2200 = vld [vmem:[%s3 + $0x4] sm:$0xf]
    %v2201 = vld [vmem:[%s3 + $0x8] sm:$0xf]
    %v2202 = vld [vmem:[%s3 + $0xc] sm:$0xf]
    %v2203 = vld [vmem:[%s3 + $0x10] sm:$0xf]
    %v2204 = vld [vmem:[%s3 + $0x14] sm:$0xf]
    %v2205 = vld [vmem:[%s3 + $0x18] sm:$0xf]
    %v2206 = vld [vmem:[%s3 + $0x1c] sm:$0xf]
    %v2207 = vld [vmem:[%s3 + $0x20] sm:$0xf]
    %v2208 = vld [vmem:[%s3 + $0x24] sm:$0xf]
    %v2209 = vld [vmem:[%s3 + $0x28] sm:$0xf]
    %v2210 = vld [vmem:[%s3 + $0x2c] sm:$0xf]
    %v2211 = vld [vmem:[%s3 + $0x30] sm:$0xf]
    %v2212 = vld [vmem:[%s3 + $0x34] sm:$0xf]
    %v2213 = vld [vmem:[%s3 + $0x38] sm:$0xf]
    %v2214 = vld [vmem:[%s3 + $0x3c] sm:$0xf]
    %v2215 = vld [vmem:[%s3 + $0x40] sm:$0xf]
    %v2216 = vld [vmem:[%s3 + $0x44] sm:$0xf]
    %v2217 = vld [vmem:[%s3 + $0x48] sm:$0xf]
    %v2218 = vld [vmem:[%s3 + $0x4c] sm:$0xf]
    %v2219 = vld [vmem:[%s3 + $0x50] sm:$0xf]
    %v2220 = vld [vmem:[%s3 + $0x54] sm:$0xf]
    %v2221 = vld [vmem:[%s3 + $0x58] sm:$0xf]
    %v2222 = vld [vmem:[%s3 + $0x5c] sm:$0xf]
    %v2223 = vld [vmem:[%s3 + $0x60] sm:$0xf]
    %v2224 = vld [vmem:[%s3 + $0x64] sm:$0xf]
    %v2225 = vld [vmem:[%s3 + $0x68] sm:$0xf]
    %v2226 = vld [vmem:[%s3 + $0x6c] sm:$0xf]
    %v2227 = vld [vmem:[%s3 + $0x70] sm:$0xf]
    %v2228 = vld [vmem:[%s3 + $0x74] sm:$0xf]
    %v2229 = vld [vmem:[%s3 + $0x78] sm:$0xf]
    %v2230 = vld [vmem:[%s3 + $0x7c] sm:$0xf]
    %v2231 = vld [vmem:[%s3 + $0x80] sm:$0xf]
    %v2232 = vld [vmem:[%s3 + $0x84] sm:$0xf]
    %v2233 = vld [vmem:[%s3 + $0x88] sm:$0xf]
    %v2234 = vld [vmem:[%s3 + $0x8c] sm:$0xf]
    %v2235 = vld [vmem:[%s3 + $0x90] sm:$0xf]
    %v2236 = vld [vmem:[%s3 + $0x94] sm:$0xf]
    %v2237 = vld [vmem:[%s3 + $0x98] sm:$0xf]
    %v2238 = vld [vmem:[%s3 + $0x9c] sm:$0xf]
    %v2239 = vld [vmem:[%s3 + $0xa0] sm:$0xf]
    %v2240 = vld [vmem:[%s3 + $0xa4] sm:$0xf]
    %v2241 = vld [vmem:[%s3 + $0xa8] sm:$0xf]
    %v2242 = vld [vmem:[%s3 + $0xac] sm:$0xf]
    %v2243 = vld [vmem:[%s3 + $0xb0] sm:$0xf]
    %v2244 = vld [vmem:[%s3 + $0xb4] sm:$0xf]
    %v2245 = vld [vmem:[%s3 + $0xb8] sm:$0xf]
    %v2246 = vld [vmem:[%s3 + $0xbc] sm:$0xf]
    %v2247 = vld [vmem:[%s3 + $0xc0] sm:$0xf]
    %v2248 = vld [vmem:[%s3 + $0xc4] sm:$0xf]
    %v2249 = vld [vmem:[%s3 + $0xc8] sm:$0xf]
    %v2250 = vld [vmem:[%s3 + $0xcc] sm:$0xf]
    %v2251 = vld [vmem:[%s3 + $0xd0] sm:$0xf]
    %v2252 = vld [vmem:[%s3 + $0xd4] sm:$0xf]
    %v2253 = vld [vmem:[%s3 + $0xd8] sm:$0xf]
    %v2254 = vld [vmem:[%s3 + $0xdc] sm:$0xf]
    %v2255 = vld [vmem:[%s3 + $0xe0] sm:$0xf]
    %v2256 = vld [vmem:[%s3 + $0xe4] sm:$0xf]
    %v2257 = vld [vmem:[%s3 + $0xe8] sm:$0xf]
    %v2258 = vld [vmem:[%s3 + $0xec] sm:$0xf]
    %v2259 = vld [vmem:[%s3 + $0xf0] sm:$0xf]
    %v2260 = vld [vmem:[%s3 + $0xf4] sm:$0xf]
    %v2261 = vld [vmem:[%s3 + $0xf8] sm:$0xf]
    %v2262 = vld [vmem:[%s3 + $0xfc] sm:$0xf]
    %v2263 = vld [vmem:[%s3 + $0x100] sm:$0xf]
    %v2264 = vld [vmem:[%s3 + $0x104] sm:$0xf]
    %v2265 = vld [vmem:[%s3 + $0x108] sm:$0xf]
    %v2266 = vld [vmem:[%s3 + $0x10c] sm:$0xf]
    %v2267 = vld [vmem:[%s3 + $0x110] sm:$0xf]
    %v2268 = vld [vmem:[%s3 + $0x114] sm:$0xf]
    %v2269 = vld [vmem:[%s3 + $0x118] sm:$0xf]
    %v2270 = vld [vmem:[%s3 + $0x11c] sm:$0xf]
    %v2271 = vld [vmem:[%s3 + $0x120] sm:$0xf]
    %v2272 = vld [vmem:[%s3 + $0x124] sm:$0xf]
    %v2273 = vld [vmem:[%s3 + $0x128] sm:$0xf]
    %v2274 = vld [vmem:[%s3 + $0x12c] sm:$0xf]
    %v2275 = vld [vmem:[%s3 + $0x130] sm:$0xf]
    %v2276 = vld [vmem:[%s3 + $0x134] sm:$0xf]
    %v2277 = vld [vmem:[%s3 + $0x138] sm:$0xf]
    %v2278 = vld [vmem:[%s3 + $0x13c] sm:$0xf]
    %v2279 = vld [vmem:[%s4] sm:$0x1]
    %v2281 = vlaneseq
    %v2282 = vshrl.u32 %v2281, 7
    %v2283 = vsub.s32 0, %v2282
    %v2284 = vrot.slane %v2279, %v2283
    %v2366 = vunpack.c.l.b16 %v2199
    %v2367 = vunpack.c.l.b16 %v2200
    %v2368 = vunpack.c.l.b16 %v2201
    %v2369 = vunpack.c.l.b16 %v2202
    %v2370 = vunpack.c.l.b16 %v2203
    %v2371 = vunpack.c.l.b16 %v2204
    %v2372 = vunpack.c.l.b16 %v2205
    %v2373 = vunpack.c.l.b16 %v2206
    %v2374 = vunpack.c.l.b16 %v2207
    %v2375 = vunpack.c.l.b16 %v2208
    %v2376 = vunpack.c.l.b16 %v2209
    %v2377 = vunpack.c.l.b16 %v2210
    %v2378 = vunpack.c.l.b16 %v2211
    %v2379 = vunpack.c.l.b16 %v2212
    %v2380 = vunpack.c.l.b16 %v2213
    %v2381 = vunpack.c.l.b16 %v2214
    %v2382 = vunpack.c.l.b16 %v2215
    %v2383 = vunpack.c.l.b16 %v2216
    %v2384 = vunpack.c.l.b16 %v2217
    %v2385 = vunpack.c.l.b16 %v2218
    %v2386 = vunpack.c.l.b16 %v2219
    %v2387 = vunpack.c.l.b16 %v2220
    %v2388 = vunpack.c.l.b16 %v2221
    %v2389 = vunpack.c.l.b16 %v2222
    %v2390 = vunpack.c.l.b16 %v2223
    %v2391 = vunpack.c.l.b16 %v2224
    %v2392 = vunpack.c.l.b16 %v2225
    %v2393 = vunpack.c.l.b16 %v2226
    %v2394 = vunpack.c.l.b16 %v2227
    %v2395 = vunpack.c.l.b16 %v2228
    %v2396 = vunpack.c.l.b16 %v2229
    %v2397 = vunpack.c.l.b16 %v2230
    %v2398 = vunpack.c.l.b16 %v2231
    %v2399 = vunpack.c.l.b16 %v2232
    %v2400 = vunpack.c.l.b16 %v2233
    %v2401 = vunpack.c.l.b16 %v2234
    %v2402 = vunpack.c.l.b16 %v2235
    %v2403 = vunpack.c.l.b16 %v2236
    %v2404 = vunpack.c.l.b16 %v2237
    %v2405 = vunpack.c.l.b16 %v2238
    %v2406 = vunpack.c.l.b16 %v2239
    %v2407 = vunpack.c.l.b16 %v2240
    %v2408 = vunpack.c.l.b16 %v2241
    %v2409 = vunpack.c.l.b16 %v2242
    %v2410 = vunpack.c.l.b16 %v2243
    %v2411 = vunpack.c.l.b16 %v2244
    %v2412 = vunpack.c.l.b16 %v2245
    %v2413 = vunpack.c.l.b16 %v2246
    %v2414 = vunpack.c.l.b16 %v2247
    %v2415 = vunpack.c.l.b16 %v2248
    %v2416 = vunpack.c.l.b16 %v2249
    %v2417 = vunpack.c.l.b16 %v2250
    %v2418 = vunpack.c.l.b16 %v2251
    %v2419 = vunpack.c.l.b16 %v2252
    %v2420 = vunpack.c.l.b16 %v2253
    %v2421 = vunpack.c.l.b16 %v2254
    %v2422 = vunpack.c.l.b16 %v2255
    %v2423 = vunpack.c.l.b16 %v2256
    %v2424 = vunpack.c.l.b16 %v2257
    %v2425 = vunpack.c.l.b16 %v2258
    %v2426 = vunpack.c.l.b16 %v2259
    %v2427 = vunpack.c.l.b16 %v2260
    %v2428 = vunpack.c.l.b16 %v2261
    %v2429 = vunpack.c.l.b16 %v2262
    %v2430 = vunpack.c.l.b16 %v2263
    %v2431 = vunpack.c.l.b16 %v2264
    %v2432 = vunpack.c.l.b16 %v2265
    %v2433 = vunpack.c.l.b16 %v2266
    %v2434 = vunpack.c.l.b16 %v2267
    %v2435 = vunpack.c.l.b16 %v2268
    %v2436 = vunpack.c.l.b16 %v2269
    %v2437 = vunpack.c.l.b16 %v2270
    %v2438 = vunpack.c.l.b16 %v2271
    %v2439 = vunpack.c.l.b16 %v2272
    %v2440 = vunpack.c.l.b16 %v2273
    %v2441 = vunpack.c.l.b16 %v2274
    %v2442 = vunpack.c.l.b16 %v2275
    %v2443 = vunpack.c.l.b16 %v2276
    %v2444 = vunpack.c.l.b16 %v2277
    %v2445 = vunpack.c.l.b16 %v2278
    %v2446 = vpack.c.b16 %v2367, %v2366
    %v2447 = vpack.c.b16 %v2369, %v2368
    %v2448 = vpack.c.b16 %v2371, %v2370
    %v2449 = vpack.c.b16 %v2373, %v2372
    %v2450 = vpack.c.b16 %v2375, %v2374
    %v2451 = vpack.c.b16 %v2377, %v2376
    %v2452 = vpack.c.b16 %v2379, %v2378
    %v2453 = vpack.c.b16 %v2381, %v2380
    %v2454 = vpack.c.b16 %v2383, %v2382
    %v2455 = vpack.c.b16 %v2385, %v2384
    %v2456 = vpack.c.b16 %v2387, %v2386
    %v2457 = vpack.c.b16 %v2389, %v2388
    %v2458 = vpack.c.b16 %v2391, %v2390
    %v2459 = vpack.c.b16 %v2393, %v2392
    %v2460 = vpack.c.b16 %v2395, %v2394
    %v2461 = vpack.c.b16 %v2397, %v2396
    %v2462 = vpack.c.b16 %v2399, %v2398
    %v2463 = vpack.c.b16 %v2401, %v2400
    %v2464 = vpack.c.b16 %v2403, %v2402
    %v2465 = vpack.c.b16 %v2405, %v2404
    %v2466 = vpack.c.b16 %v2407, %v2406
    %v2467 = vpack.c.b16 %v2409, %v2408
    %v2468 = vpack.c.b16 %v2411, %v2410
    %v2469 = vpack.c.b16 %v2413, %v2412
    %v2470 = vpack.c.b16 %v2415, %v2414
    %v2471 = vpack.c.b16 %v2417, %v2416
    %v2472 = vpack.c.b16 %v2419, %v2418
    %v2473 = vpack.c.b16 %v2421, %v2420
    %v2474 = vpack.c.b16 %v2423, %v2422
    %v2475 = vpack.c.b16 %v2425, %v2424
    %v2476 = vpack.c.b16 %v2427, %v2426
    %v2477 = vpack.c.b16 %v2429, %v2428
    %v2478 = vpack.c.b16 %v2431, %v2430
    %v2479 = vpack.c.b16 %v2433, %v2432
    %v2480 = vpack.c.b16 %v2435, %v2434
    %v2481 = vpack.c.b16 %v2437, %v2436
    %v2482 = vpack.c.b16 %v2439, %v2438
    %v2483 = vpack.c.b16 %v2441, %v2440
    %v2484 = vpack.c.b16 %v2443, %v2442
    %v2485 = vpack.c.b16 %v2445, %v2444
    %2526 = vmatprep.subr.bf16.mxu0 0
    %2527 = vmatpush1.bf16.msra.mxu0 %v2446
    %2528 = vmatprep.subr.bf16.mxu0 0
    %2529 = vmatpush1.bf16.msra.mxu0 %v2447
    %2530 = vmatprep.subr.bf16.mxu0 0
    %2531 = vmatpush1.bf16.msra.mxu0 %v2448
    %2532 = vmatprep.subr.bf16.mxu0 0
    %2533 = vmatpush1.bf16.msra.mxu0 %v2449
    %2534 = vmatprep.subr.bf16.mxu0 0
    %2535 = vmatpush1.bf16.msra.mxu0 %v2450
    %2536 = vmatprep.subr.bf16.mxu0 0
    %2537 = vmatpush1.bf16.msra.mxu0 %v2451
    %2538 = vmatprep.subr.bf16.mxu0 0
    %2539 = vmatpush1.bf16.msra.mxu0 %v2452
    %2540 = vmatprep.subr.bf16.mxu0 0
    %2541 = vmatpush1.bf16.msra.mxu0 %v2453
    %2542 = vmatprep.subr.bf16.mxu0 0
    %2543 = vmatpush1.bf16.msra.mxu0 %v2454
    %2544 = vmatprep.subr.bf16.mxu0 0
    %2545 = vmatpush1.bf16.msra.mxu0 %v2455
    %2546 = vmatprep.subr.bf16.mxu0 0
    %2547 = vmatpush1.bf16.msra.mxu0 %v2456
    %2548 = vmatprep.subr.bf16.mxu0 0
    %2549 = vmatpush1.bf16.msra.mxu0 %v2457
    %2550 = vmatprep.subr.bf16.mxu0 0
    %2551 = vmatpush1.bf16.msra.mxu0 %v2458
    %2552 = vmatprep.subr.bf16.mxu0 0
    %2553 = vmatpush1.bf16.msra.mxu0 %v2459
    %2554 = vmatprep.subr.bf16.mxu0 0
    %2555 = vmatpush1.bf16.msra.mxu0 %v2460
    %2556 = vmatprep.subr.bf16.mxu0 0
    %2557 = vmatpush1.bf16.msra.mxu0 %v2461
    %2558 = vmatprep.mubr.bf16.mxu0 %v2195
    %2559 = vmatmul.mubr.bf16.gmra.mrb[0].mxu0 %v2194
    %v2560 = vpop.f32.mrb[0].mxu0
    %v2561 = vadd.f32 %v2284, %v2560
    %v2562 = vpop.f32.mrb[0].mxu0
    %v2563 = vpop.f32.mrb[0].mxu0
    %v2564 = vadd.f32 %v2284, %v2563
    %v2565 = vpop.f32.mrb[0].mxu0
    %2566 = vdwg.mxu0
    %2567 = vmatprep.subr.bf16.mxu0 0
    %2568 = vmatpush1.bf16.msra.mxu0 %v2462
    %2569 = vmatprep.subr.bf16.mxu0 0
    %2570 = vmatpush1.bf16.msra.mxu0 %v2463
    %2571 = vmatprep.subr.bf16.mxu0 0
    %2572 = vmatpush1.bf16.msra.mxu0 %v2464
    %2573 = vmatprep.subr.bf16.mxu0 0
    %2574 = vmatpush1.bf16.msra.mxu0 %v2465
    %2575 = vmatprep.subr.bf16.mxu0 0
    %2576 = vmatpush1.bf16.msra.mxu0 %v2466
    %2577 = vmatprep.subr.bf16.mxu0 0
    %2578 = vmatpush1.bf16.msra.mxu0 %v2467
    %2579 = vmatprep.subr.bf16.mxu0 0
    %2580 = vmatpush1.bf16.msra.mxu0 %v2468
    %2581 = vmatprep.subr.bf16.mxu0 0
    %2582 = vmatpush1.bf16.msra.mxu0 %v2469
    %2583 = vmatprep.subr.bf16.mxu0 0
    %2584 = vmatpush1.bf16.msra.mxu0 %v2470
    %2585 = vmatprep.subr.bf16.mxu0 0
    %2586 = vmatpush1.bf16.msra.mxu0 %v2471
    %2587 = vmatprep.subr.bf16.mxu0 0
    %2588 = vmatpush1.bf16.msra.mxu0 %v2472
    %2589 = vmatprep.subr.bf16.mxu0 0
    %2590 = vmatpush1.bf16.msra.mxu0 %v2473
    %2591 = vmatprep.subr.bf16.mxu0 0
    %2592 = vmatpush1.bf16.msra.mxu0 %v2474
    %2593 = vmatprep.subr.bf16.mxu0 0
    %2594 = vmatpush1.bf16.msra.mxu0 %v2475
    %2595 = vmatprep.subr.bf16.mxu0 0
    %2596 = vmatpush1.bf16.msra.mxu0 %v2476
    %2597 = vmatprep.subr.bf16.mxu0 0
    %2598 = vmatpush1.bf16.msra.mxu0 %v2477
    %2599 = vmatprep.mubr.bf16.mxu0 %v2197
    %2600 = vmatmul.mubr.bf16.gmra.mrb[0].mxu0 %v2196
    %v2601 = vpop.f32.mrb[0].mxu0
    %v2602 = vadd.f32 %v2561, %v2601
    %v2603 = vpop.f32.mrb[0].mxu0
    %v2604 = vpop.f32.mrb[0].mxu0
    %v2605 = vadd.f32 %v2564, %v2604
    %v2606 = vpop.f32.mrb[0].mxu0
    %2607 = vdwg.mxu0
    %2608 = vmatprep.subr.bf16.mxu0 0
    %2609 = vmatpush1.bf16.msra.mxu0 %v2478
    %2610 = vmatprep.subr.bf16.mxu0 0
    %2611 = vmatpush1.bf16.msra.mxu0 %v2479
    %2612 = vmatprep.subr.bf16.mxu0 0
    %2613 = vmatpush1.bf16.msra.mxu0 %v2480
    %2614 = vmatprep.subr.bf16.mxu0 0
    %2615 = vmatpush1.bf16.msra.mxu0 %v2481
    %2616 = vmatprep.subr.bf16.mxu0 0
    %2617 = vmatpush1.bf16.msra.mxu0 %v2482
    %2618 = vmatprep.subr.bf16.mxu0 0
    %2619 = vmatpush1.bf16.msra.mxu0 %v2483
    %2620 = vmatprep.subr.bf16.mxu0 0
    %2621 = vmatpush1.bf16.msra.mxu0 %v2484
    %2622 = vmatprep.subr.bf16.mxu0 0
    %2623 = vmatpush1.bf16.msra.mxu0 %v2485
    %2624 = vmatprep.subr.bf16.mxu0 0
    %2625 = vmatpush1.bf16.msra.mxu0 0
    %2626 = vmatprep.subr.bf16.mxu0 0
    %2627 = vmatpush1.bf16.msra.mxu0 0
    %2628 = vmatprep.subr.bf16.mxu0 0
    %2629 = vmatpush1.bf16.msra.mxu0 0
    %2630 = vmatprep.subr.bf16.mxu0 0
    %2631 = vmatpush1.bf16.msra.mxu0 0
    %2632 = vmatprep.subr.bf16.mxu0 0
    %2633 = vmatpush1.bf16.msra.mxu0 0
    %2634 = vmatprep.subr.bf16.mxu0 0
    %2635 = vmatpush1.bf16.msra.mxu0 0
    %2636 = vmatprep.subr.bf16.mxu0 0
    %2637 = vmatpush1.bf16.msra.mxu0 0
    %2638 = vmatprep.subr.bf16.mxu0 0
    %2639 = vmatpush1.bf16.msra.mxu0 0
    %2640 = vmatprep.mubr.bf16.mxu0 0
    %2641 = vmatmul.mubr.bf16.gmra.mrb[0].mxu0 %v2198
    %v2642 = vpop.f32.mrb[0].mxu0
    %v2643 = vadd.f32 %v2602, %v2642
    %v2644 = vpop.f32.mrb[0].mxu0
    %v2645 = vpop.f32.mrb[0].mxu0
    %v2646 = vadd.f32 %v2605, %v2645
    %v2647 = vpop.f32.mrb[0].mxu0
    %2648 = vdwg.mxu0
    %v2649 = vmul.f32 %v2643, 0.5
    %v2650 = vmul.f32 %v2646, 0.5
    %v2651 = vtanh.pop %v2649
    %v2652 = vtanh.pop %v2650
    %v2653 = vmul.f32 %v2651, 0.5
    %v2654 = vmul.f32 %v2652, 0.5
    %v2655 = vadd.f32 %v2653, 0.5
    %v2656 = vadd.f32 %v2654, 0.5
    %v2657 = vpack.c.bf16 %v2656, %v2655
    %v2658 = vld [vmem:[%s5] sm:$0xff]
    %v2659 = vld [vmem:[%s5 + $0x8] sm:$0xff]
    %v2660 = vld [vmem:[%s5 + $0x10] sm:$0xf]
    %v2661 = vld [vmem:[%s5 + $0x14] sm:$0xff]
    %v2662 = vld [vmem:[%s5 + $0x1c] sm:$0xff]
    %v2663 = vld [vmem:[%s5 + $0x24] sm:$0xf]
    %v2664 = vld [vmem:[%s5 + $0x28] sm:$0xff]
    %v2665 = vld [vmem:[%s5 + $0x30] sm:$0xff]
    %v2666 = vld [vmem:[%s5 + $0x38] sm:$0xf]
    %v2667 = vld [vmem:[%s5 + $0x3c] sm:$0xff]
    %v2668 = vld [vmem:[%s5 + $0x44] sm:$0xff]
    %v2669 = vld [vmem:[%s5 + $0x4c] sm:$0xf]
    %v2670 = vld [vmem:[%s5 + $0x50] sm:$0xff]
    %v2671 = vld [vmem:[%s5 + $0x58] sm:$0xff]
    %v2672 = vld [vmem:[%s5 + $0x60] sm:$0xf]
    %v2673 = vld [vmem:[%s5 + $0x64] sm:$0xff]
    %v2674 = vld [vmem:[%s5 + $0x6c] sm:$0xff]
    %v2675 = vld [vmem:[%s5 + $0x74] sm:$0xf]
    %v2676 = vld [vmem:[%s5 + $0x78] sm:$0xff]
    %v2677 = vld [vmem:[%s5 + $0x80] sm:$0xff]
    %v2678 = vld [vmem:[%s5 + $0x88] sm:$0xf]
    %v2679 = vld [vmem:[%s5 + $0x8c] sm:$0xff]
    %v2680 = vld [vmem:[%s5 + $0x94] sm:$0xff]
    %v2681 = vld [vmem:[%s5 + $0x9c] sm:$0xf]
    %v2682 = vld [vmem:[%s5 + $0xa0] sm:$0xff]
    %v2683 = vld [vmem:[%s5 + $0xa8] sm:$0xff]
    %v2684 = vld [vmem:[%s5 + $0xb0] sm:$0xf]
    %v2685 = vld [vmem:[%s5 + $0xb4] sm:$0xff]
    %v2686 = vld [vmem:[%s5 + $0xbc] sm:$0xff]
    %v2687 = vld [vmem:[%s5 + $0xc4] sm:$0xf]
    %v2688 = vld [vmem:[%s5 + $0xc8] sm:$0xff]
    %v2689 = vld [vmem:[%s5 + $0xd0] sm:$0xff]
    %v2690 = vld [vmem:[%s5 + $0xd8] sm:$0xf]
    %v2691 = vld [vmem:[%s5 + $0xdc] sm:$0xff]
    %v2692 = vld [vmem:[%s5 + $0xe4] sm:$0xff]
    %v2693 = vld [vmem:[%s5 + $0xec] sm:$0xf]
    %v2694 = vld [vmem:[%s5 + $0xf0] sm:$0xff]
    %v2695 = vld [vmem:[%s5 + $0xf8] sm:$0xff]
    %v2696 = vld [vmem:[%s5 + $0x100] sm:$0xf]
    %v2697 = vld [vmem:[%s5 + $0x104] sm:$0xff]
    %v2698 = vld [vmem:[%s5 + $0x10c] sm:$0xff]
    %v2699 = vld [vmem:[%s5 + $0x114] sm:$0xf]
    %v2700 = vld [vmem:[%s5 + $0x118] sm:$0xff]
    %v2701 = vld [vmem:[%s5 + $0x120] sm:$0xff]
    %v2702 = vld [vmem:[%s5 + $0x128] sm:$0xf]
    %v2703 = vld [vmem:[%s5 + $0x12c] sm:$0xff]
    %v2704 = vld [vmem:[%s5 + $0x134] sm:$0xff]
    %v2705 = vld [vmem:[%s5 + $0x13c] sm:$0xf]
    %v2706 = vld [vmem:[%s6] sm:$0x1f]
    %v2708 = vlaneseq
    %v2709 = vshrl.u32 %v2708, 7
    %v2710 = vsub.s32 0, %v2709
    %v2711 = vrot.slane %v2706, %v2710
    %v2712 = vlaneseq
    %v2713 = vshrl.u32 %v2712, 7
    %v2714 = vsub.s32 1, %v2713
    %v2715 = vrot.slane %v2706, %v2714
    %v2716 = vlaneseq
    %v2717 = vshrl.u32 %v2716, 7
    %v2718 = vsub.s32 2, %v2717
    %v2719 = vrot.slane %v2706, %v2718
    %v2720 = vlaneseq
    %v2721 = vshrl.u32 %v2720, 7
    %v2722 = vsub.s32 3, %v2721
    %v2723 = vrot.slane %v2706, %v2722
    %v2724 = vlaneseq
    %v2725 = vshrl.u32 %v2724, 7
    %v2726 = vsub.s32 4, %v2725
    %v2727 = vrot.slane %v2706, %v2726
    %v2781 = vunpack.c.l.b16 %v2658
    %v2782 = vunpack.c.h.b16 %v2658
    %v2783 = vunpack.c.l.b16 %v2659
    %v2784 = vunpack.c.h.b16 %v2659
    %v2785 = vunpack.c.l.b16 %v2660
    %v2786 = vunpack.c.l.b16 %v2661
    %v2787 = vunpack.c.h.b16 %v2661
    %v2788 = vunpack.c.l.b16 %v2662
    %v2789 = vunpack.c.h.b16 %v2662
    %v2790 = vunpack.c.l.b16 %v2663
    %v2791 = vunpack.c.l.b16 %v2664
    %v2792 = vunpack.c.h.b16 %v2664
    %v2793 = vunpack.c.l.b16 %v2665
    %v2794 = vunpack.c.h.b16 %v2665
    %v2795 = vunpack.c.l.b16 %v2666
    %v2796 = vunpack.c.l.b16 %v2667
    %v2797 = vunpack.c.h.b16 %v2667
    %v2798 = vunpack.c.l.b16 %v2668
    %v2799 = vunpack.c.h.b16 %v2668
    %v2800 = vunpack.c.l.b16 %v2669
    %v2801 = vunpack.c.l.b16 %v2670
    %v2802 = vunpack.c.h.b16 %v2670
    %v2803 = vunpack.c.l.b16 %v2671
    %v2804 = vunpack.c.h.b16 %v2671
    %v2805 = vunpack.c.l.b16 %v2672
    %v2806 = vunpack.c.l.b16 %v2673
    %v2807 = vunpack.c.h.b16 %v2673
    %v2808 = vunpack.c.l.b16 %v2674
    %v2809 = vunpack.c.h.b16 %v2674
    %v2810 = vunpack.c.l.b16 %v2675
    %v2811 = vunpack.c.l.b16 %v2676
    %v2812 = vunpack.c.h.b16 %v2676
    %v2813 = vunpack.c.l.b16 %v2677
    %v2814 = vunpack.c.h.b16 %v2677
    %v2815 = vunpack.c.l.b16 %v2678
    %v2816 = vunpack.c.l.b16 %v2679
    %v2817 = vunpack.c.h.b16 %v2679
    %v2818 = vunpack.c.l.b16 %v2680
    %v2819 = vunpack.c.h.b16 %v2680
    %v2820 = vunpack.c.l.b16 %v2681
    %v2821 = vunpack.c.l.b16 %v2682
    %v2822 = vunpack.c.h.b16 %v2682
    %v2823 = vunpack.c.l.b16 %v2683
    %v2824 = vunpack.c.h.b16 %v2683
    %v2825 = vunpack.c.l.b16 %v2684
    %v2826 = vunpack.c.l.b16 %v2685
    %v2827 = vunpack.c.h.b16 %v2685
    %v2828 = vunpack.c.l.b16 %v2686
    %v2829 = vunpack.c.h.b16 %v2686
    %v2830 = vunpack.c.l.b16 %v2687
    %v2831 = vunpack.c.l.b16 %v2688
    %v2832 = vunpack.c.h.b16 %v2688
    %v2833 = vunpack.c.l.b16 %v2689
    %v2834 = vunpack.c.h.b16 %v2689
    %v2835 = vunpack.c.l.b16 %v2690
    %v2836 = vunpack.c.l.b16 %v2691
    %v2837 = vunpack.c.h.b16 %v2691
    %v2838 = vunpack.c.l.b16 %v2692
    %v2839 = vunpack.c.h.b16 %v2692
    %v2840 = vunpack.c.l.b16 %v2693
    %v2841 = vunpack.c.l.b16 %v2694
    %v2842 = vunpack.c.h.b16 %v2694
    %v2843 = vunpack.c.l.b16 %v2695
    %v2844 = vunpack.c.h.b16 %v2695
    %v2845 = vunpack.c.l.b16 %v2696
    %v2846 = vunpack.c.l.b16 %v2697
    %v2847 = vunpack.c.h.b16 %v2697
    %v2848 = vunpack.c.l.b16 %v2698
    %v2849 = vunpack.c.h.b16 %v2698
    %v2850 = vunpack.c.l.b16 %v2699
    %v2851 = vunpack.c.l.b16 %v2700
    %v2852 = vunpack.c.h.b16 %v2700
    %v2853 = vunpack.c.l.b16 %v2701
    %v2854 = vunpack.c.h.b16 %v2701
    %v2855 = vunpack.c.l.b16 %v2702
    %v2856 = vunpack.c.l.b16 %v2703
    %v2857 = vunpack.c.h.b16 %v2703
    %v2858 = vunpack.c.l.b16 %v2704
    %v2859 = vunpack.c.h.b16 %v2704
    %v2860 = vunpack.c.l.b16 %v2705
    %v2861 = vpack.c.b16 %v2786, %v2781
    %v2862 = vpack.c.b16 %v2787, %v2782
    %v2863 = vpack.c.b16 %v2788, %v2783
    %v2864 = vpack.c.b16 %v2789, %v2784
    %v2865 = vpack.c.b16 %v2790, %v2785
    %v2866 = vpack.c.b16 %v2796, %v2791
    %v2867 = vpack.c.b16 %v2797, %v2792
    %v2868 = vpack.c.b16 %v2798, %v2793
    %v2869 = vpack.c.b16 %v2799, %v2794
    %v2870 = vpack.c.b16 %v2800, %v2795
    %v2871 = vpack.c.b16 %v2806, %v2801
    %v2872 = vpack.c.b16 %v2807, %v2802
    %v2873 = vpack.c.b16 %v2808, %v2803
    %v2874 = vpack.c.b16 %v2809, %v2804
    %v2875 = vpack.c.b16 %v2810, %v2805
    %v2876 = vpack.c.b16 %v2816, %v2811
    %v2877 = vpack.c.b16 %v2817, %v2812
    %v2878 = vpack.c.b16 %v2818, %v2813
    %v2879 = vpack.c.b16 %v2819, %v2814
    %v2880 = vpack.c.b16 %v2820, %v2815
    %v2881 = vpack.c.b16 %v2826, %v2821
    %v2882 = vpack.c.b16 %v2827, %v2822
    %v2883 = vpack.c.b16 %v2828, %v2823
    %v2884 = vpack.c.b16 %v2829, %v2824
    %v2885 = vpack.c.b16 %v2830, %v2825
    %v2886 = vpack.c.b16 %v2836, %v2831
    %v2887 = vpack.c.b16 %v2837, %v2832
    %v2888 = vpack.c.b16 %v2838, %v2833
    %v2889 = vpack.c.b16 %v2839, %v2834
    %v2890 = vpack.c.b16 %v2840, %v2835
    %v2891 = vpack.c.b16 %v2846, %v2841
    %v2892 = vpack.c.b16 %v2847, %v2842
    %v2893 = vpack.c.b16 %v2848, %v2843
    %v2894 = vpack.c.b16 %v2849, %v2844
    %v2895 = vpack.c.b16 %v2850, %v2845
    %v2896 = vpack.c.b16 %v2856, %v2851
    %v2897 = vpack.c.b16 %v2857, %v2852
    %v2898 = vpack.c.b16 %v2858, %v2853
    %v2899 = vpack.c.b16 %v2859, %v2854
    %v2900 = vpack.c.b16 %v2860, %v2855
    %2941 = vmatprep.subr.bf16.mxu0 %v2862
    %2942 = vmatpush1.bf16.msra.mxu0 %v2861
    %2943 = vmatprep.subr.bf16.mxu0 %v2867
    %2944 = vmatpush1.bf16.msra.mxu0 %v2866
    %2945 = vmatprep.subr.bf16.mxu0 %v2872
    %2946 = vmatpush1.bf16.msra.mxu0 %v2871
    %2947 = vmatprep.subr.bf16.mxu0 %v2877
    %2948 = vmatpush1.bf16.msra.mxu0 %v2876
    %2949 = vmatprep.subr.bf16.mxu0 %v2882
    %2950 = vmatpush1.bf16.msra.mxu0 %v2881
    %2951 = vmatprep.subr.bf16.mxu0 %v2887
    %2952 = vmatpush1.bf16.msra.mxu0 %v2886
    %2953 = vmatprep.subr.bf16.mxu0 %v2892
    %2954 = vmatpush1.bf16.msra.mxu0 %v2891
    %2955 = vmatprep.subr.bf16.mxu0 %v2897
    %2956 = vmatpush1.bf16.msra.mxu0 %v2896
    %2957 = vmatprep.subr.bf16.mxu0 0
    %2958 = vmatpush1.bf16.msra.mxu0 0
    %2959 = vmatprep.subr.bf16.mxu0 0
    %2960 = vmatpush1.bf16.msra.mxu0 0
    %2961 = vmatprep.subr.bf16.mxu0 0
    %2962 = vmatpush1.bf16.msra.mxu0 0
    %2963 = vmatprep.subr.bf16.mxu0 0
    %2964 = vmatpush1.bf16.msra.mxu0 0
    %2965 = vmatprep.subr.bf16.mxu0 0
    %2966 = vmatpush1.bf16.msra.mxu0 0
    %2967 = vmatprep.subr.bf16.mxu0 0
    %2968 = vmatpush1.bf16.msra.mxu0 0
    %2969 = vmatprep.subr.bf16.mxu0 0
    %2970 = vmatpush1.bf16.msra.mxu0 0
    %2971 = vmatprep.subr.bf16.mxu0 0
    %2972 = vmatpush1.bf16.msra.mxu0 0
    %2973 = vmatprep.mubr.bf16.mxu0 0
    %2974 = vmatmul.mubr.bf16.gmra.mrb[0].mxu0 %v2657
    %v2975 = vpop.f32.mrb[0].mxu0
    %v2976 = vadd.f32 %v2711, %v2975
    %v2977 = vpop.f32.mrb[0].mxu0
    %v2978 = vadd.f32 %v2715, %v2977
    %v2979 = vpop.f32.mrb[0].mxu0
    %v2980 = vadd.f32 %v2711, %v2979
    %v2981 = vpop.f32.mrb[0].mxu0
    %v2982 = vadd.f32 %v2715, %v2981
    %2983 = vdwg.mxu0
    %2984 = vmatprep.subr.bf16.mxu0 %v2864
    %2985 = vmatpush1.bf16.msra.mxu0 %v2863
    %2986 = vmatprep.subr.bf16.mxu0 %v2869
    %2987 = vmatpush1.bf16.msra.mxu0 %v2868
    %2988 = vmatprep.subr.bf16.mxu0 %v2874
    %2989 = vmatpush1.bf16.msra.mxu0 %v2873
    %2990 = vmatprep.subr.bf16.mxu0 %v2879
    %2991 = vmatpush1.bf16.msra.mxu0 %v2878
    %2992 = vmatprep.subr.bf16.mxu0 %v2884
    %2993 = vmatpush1.bf16.msra.mxu0 %v2883
    %2994 = vmatprep.subr.bf16.mxu0 %v2889
    %2995 = vmatpush1.bf16.msra.mxu0 %v2888
    %2996 = vmatprep.subr.bf16.mxu0 %v2894
    %2997 = vmatpush1.bf16.msra.mxu0 %v2893
    %2998 = vmatprep.subr.bf16.mxu0 %v2899
    %2999 = vmatpush1.bf16.msra.mxu0 %v2898
    %3000 = vmatprep.subr.bf16.mxu0 0
    %3001 = vmatpush1.bf16.msra.mxu0 0
    %3002 = vmatprep.subr.bf16.mxu0 0
    %3003 = vmatpush1.bf16.msra.mxu0 0
    %3004 = vmatprep.subr.bf16.mxu0 0
    %3005 = vmatpush1.bf16.msra.mxu0 0
    %3006 = vmatprep.subr.bf16.mxu0 0
    %3007 = vmatpush1.bf16.msra.mxu0 0
    %3008 = vmatprep.subr.bf16.mxu0 0
    %3009 = vmatpush1.bf16.msra.mxu0 0
    %3010 = vmatprep.subr.bf16.mxu0 0
    %3011 = vmatpush1.bf16.msra.mxu0 0
    %3012 = vmatprep.subr.bf16.mxu0 0
    %3013 = vmatpush1.bf16.msra.mxu0 0
    %3014 = vmatprep.subr.bf16.mxu0 0
    %3015 = vmatpush1.bf16.msra.mxu0 0
    %3016 = vmatprep.mubr.bf16.mxu0 0
    %3017 = vmatmul.mubr.bf16.gmra.mrb[0].mxu0 %v2657
    %v3018 = vpop.f32.mrb[0].mxu0
    %v3019 = vadd.f32 %v2719, %v3018
    %v3020 = vpop.f32.mrb[0].mxu0
    %v3021 = vadd.f32 %v2723, %v3020
    %v3022 = vpop.f32.mrb[0].mxu0
    %v3023 = vadd.f32 %v2719, %v3022
    %v3024 = vpop.f32.mrb[0].mxu0
    %v3025 = vadd.f32 %v2723, %v3024
    %3026 = vdwg.mxu0
    %3027 = vmatprep.subr.bf16.mxu0 0
    %3028 = vmatpush1.bf16.msra.mxu0 %v2865
    %3029 = vmatprep.subr.bf16.mxu0 0
    %3030 = vmatpush1.bf16.msra.mxu0 %v2870
    %3031 = vmatprep.subr.bf16.mxu0 0
    %3032 = vmatpush1.bf16.msra.mxu0 %v2875
    %3033 = vmatprep.subr.bf16.mxu0 0
    %3034 = vmatpush1.bf16.msra.mxu0 %v2880
    %3035 = vmatprep.subr.bf16.mxu0 0
    %3036 = vmatpush1.bf16.msra.mxu0 %v2885
    %3037 = vmatprep.subr.bf16.mxu0 0
    %3038 = vmatpush1.bf16.msra.mxu0 %v2890
    %3039 = vmatprep.subr.bf16.mxu0 0
    %3040 = vmatpush1.bf16.msra.mxu0 %v2895
    %3041 = vmatprep.subr.bf16.mxu0 0
    %3042 = vmatpush1.bf16.msra.mxu0 %v2900
    %3043 = vmatprep.subr.bf16.mxu0 0
    %3044 = vmatpush1.bf16.msra.mxu0 0
    %3045 = vmatprep.subr.bf16.mxu0 0
    %3046 = vmatpush1.bf16.msra.mxu0 0
    %3047 = vmatprep.subr.bf16.mxu0 0
    %3048 = vmatpush1.bf16.msra.mxu0 0
    %3049 = vmatprep.subr.bf16.mxu0 0
    %3050 = vmatpush1.bf16.msra.mxu0 0
    %3051 = vmatprep.subr.bf16.mxu0 0
    %3052 = vmatpush1.bf16.msra.mxu0 0
    %3053 = vmatprep.subr.bf16.mxu0 0
    %3054 = vmatpush1.bf16.msra.mxu0 0
    %3055 = vmatprep.subr.bf16.mxu0 0
    %3056 = vmatpush1.bf16.msra.mxu0 0
    %3057 = vmatprep.subr.bf16.mxu0 0
    %3058 = vmatpush1.bf16.msra.mxu0 0
    %3059 = vmatprep.mubr.bf16.mxu0 0
    %3060 = vmatmul.mubr.bf16.gmra.mrb[0].mxu0 %v2657
    %v3061 = vpop.f32.mrb[0].mxu0
    %v3062 = vadd.f32 %v2727, %v3061
    %v3063 = vpop.f32.mrb[0].mxu0
    %v3064 = vpop.f32.mrb[0].mxu0
    %v3065 = vadd.f32 %v2727, %v3064
    %v3066 = vpop.f32.mrb[0].mxu0
    %3067 = vdwg.mxu0
    %v3068 = vmax.f32 %v2976, 0.0
    %v3069 = vmax.f32 %v2978, 0.0
    %v3070 = vmax.f32 %v3019, 0.0
    %v3071 = vmax.f32 %v3021, 0.0
    %v3072 = vmax.f32 %v3062, 0.0
    %v3073 = vmax.f32 %v2980, 0.0
    %v3074 = vmax.f32 %v2982, 0.0
    %v3075 = vmax.f32 %v3023, 0.0
    %v3076 = vmax.f32 %v3025, 0.0
    %v3077 = vmax.f32 %v3065, 0.0
    %v3078 = vpack.c.bf16 %v3073, %v3068
    %v3079 = vpack.c.bf16 %v3074, %v3069
    %v3080 = vpack.c.bf16 %v3075, %v3070
    %v3081 = vpack.c.bf16 %v3076, %v3071
    %v3082 = vpack.c.bf16 %v3077, %v3072
    %v3083 = vld [vmem:[%s7] sm:$0xff]
    %v3084 = vld [vmem:[%s7 + $0x8] sm:$0xff]
    %v3085 = vld [vmem:[%s7 + $0x10] sm:$0xff]
    %v3086 = vld [vmem:[%s7 + $0x18] sm:$0xf]
    %v3087 = vld [vmem:[%s7 + $0x1c] sm:$0xff]
    %v3088 = vld [vmem:[%s7 + $0x24] sm:$0xff]
    %v3089 = vld [vmem:[%s7 + $0x2c] sm:$0xff]
    %v3090 = vld [vmem:[%s7 + $0x34] sm:$0xf]
    %v3091 = vld [vmem:[%s7 + $0x38] sm:$0xff]
    %v3092 = vld [vmem:[%s7 + $0x40] sm:$0xff]
    %v3093 = vld [vmem:[%s7 + $0x48] sm:$0xff]
    %v3094 = vld [vmem:[%s7 + $0x50] sm:$0xf]
    %v3095 = vld [vmem:[%s7 + $0x54] sm:$0xff]
    %v3096 = vld [vmem:[%s7 + $0x5c] sm:$0xff]
    %v3097 = vld [vmem:[%s7 + $0x64] sm:$0xff]
    %v3098 = vld [vmem:[%s7 + $0x6c] sm:$0xf]
    %v3099 = vld [vmem:[%s7 + $0x70] sm:$0xff]
    %v3100 = vld [vmem:[%s7 + $0x78] sm:$0xff]
    %v3101 = vld [vmem:[%s7 + $0x80] sm:$0xff]
    %v3102 = vld [vmem:[%s7 + $0x88] sm:$0xf]
    %v3103 = vld [vmem:[%s7 + $0x8c] sm:$0xff]
    %v3104 = vld [vmem:[%s7 + $0x94] sm:$0xff]
    %v3105 = vld [vmem:[%s7 + $0x9c] sm:$0xff]
    %v3106 = vld [vmem:[%s7 + $0xa4] sm:$0xf]
    %v3107 = vld [vmem:[%s7 + $0xa8] sm:$0xff]
    %v3108 = vld [vmem:[%s7 + $0xb0] sm:$0xff]
    %v3109 = vld [vmem:[%s7 + $0xb8] sm:$0xff]
    %v3110 = vld [vmem:[%s7 + $0xc0] sm:$0xf]
    %v3111 = vld [vmem:[%s7 + $0xc4] sm:$0xff]
    %v3112 = vld [vmem:[%s7 + $0xcc] sm:$0xff]
    %v3113 = vld [vmem:[%s7 + $0xd4] sm:$0xff]
    %v3114 = vld [vmem:[%s7 + $0xdc] sm:$0xf]
    %v3115 = vld [vmem:[%s7 + $0xe0] sm:$0xff]
    %v3116 = vld [vmem:[%s7 + $0xe8] sm:$0xff]
    %v3117 = vld [vmem:[%s7 + $0xf0] sm:$0xff]
    %v3118 = vld [vmem:[%s7 + $0xf8] sm:$0xf]
    %v3119 = vld [vmem:[%s7 + $0xfc] sm:$0xff]
    %v3120 = vld [vmem:[%s7 + $0x104] sm:$0xff]
    %v3121 = vld [vmem:[%s7 + $0x10c] sm:$0xff]
    %v3122 = vld [vmem:[%s7 + $0x114] sm:$0xf]
    %v3123 = vld [vmem:[%s7 + $0x118] sm:$0xff]
    %v3124 = vld [vmem:[%s7 + $0x120] sm:$0xff]
    %v3125 = vld [vmem:[%s7 + $0x128] sm:$0xff]
    %v3126 = vld [vmem:[%s7 + $0x130] sm:$0xf]
    %v3127 = vld [vmem:[%s7 + $0x134] sm:$0xff]
    %v3128 = vld [vmem:[%s7 + $0x13c] sm:$0xff]
    %v3129 = vld [vmem:[%s7 + $0x144] sm:$0xff]
    %v3130 = vld [vmem:[%s7 + $0x14c] sm:$0xf]
    %v3131 = vld [vmem:[%s7 + $0x150] sm:$0xff]
    %v3132 = vld [vmem:[%s7 + $0x158] sm:$0xff]
    %v3133 = vld [vmem:[%s7 + $0x160] sm:$0xff]
    %v3134 = vld [vmem:[%s7 + $0x168] sm:$0xf]
    %v3135 = vld [vmem:[%s7 + $0x16c] sm:$0xff]
    %v3136 = vld [vmem:[%s7 + $0x174] sm:$0xff]
    %v3137 = vld [vmem:[%s7 + $0x17c] sm:$0xff]
    %v3138 = vld [vmem:[%s7 + $0x184] sm:$0xf]
    %v3139 = vld [vmem:[%s7 + $0x188] sm:$0xff]
    %v3140 = vld [vmem:[%s7 + $0x190] sm:$0xff]
    %v3141 = vld [vmem:[%s7 + $0x198] sm:$0xff]
    %v3142 = vld [vmem:[%s7 + $0x1a0] sm:$0xf]
    %v3143 = vld [vmem:[%s7 + $0x1a4] sm:$0xff]
    %v3144 = vld [vmem:[%s7 + $0x1ac] sm:$0xff]
    %v3145 = vld [vmem:[%s7 + $0x1b4] sm:$0xff]
    %v3146 = vld [vmem:[%s7 + $0x1bc] sm:$0xf]
    %v3147 = vld [vmem:[%s7 + $0x1c0] sm:$0xff]
    %v3148 = vld [vmem:[%s7 + $0x1c8] sm:$0xff]
    %v3149 = vld [vmem:[%s7 + $0x1d0] sm:$0xff]
    %v3150 = vld [vmem:[%s7 + $0x1d8] sm:$0xf]
    %v3151 = vld [vmem:[%s7 + $0x1dc] sm:$0xff]
    %v3152 = vld [vmem:[%s7 + $0x1e4] sm:$0xff]
    %v3153 = vld [vmem:[%s7 + $0x1ec] sm:$0xff]
    %v3154 = vld [vmem:[%s7 + $0x1f4] sm:$0xf]
    %v3155 = vld [vmem:[%s7 + $0x1f8] sm:$0xff]
    %v3156 = vld [vmem:[%s7 + $0x200] sm:$0xff]
    %v3157 = vld [vmem:[%s7 + $0x208] sm:$0xff]
    %v3158 = vld [vmem:[%s7 + $0x210] sm:$0xf]
    %v3159 = vld [vmem:[%s7 + $0x214] sm:$0xff]
    %v3160 = vld [vmem:[%s7 + $0x21c] sm:$0xff]
    %v3161 = vld [vmem:[%s7 + $0x224] sm:$0xff]
    %v3162 = vld [vmem:[%s7 + $0x22c] sm:$0xf]
    %v3163 = vld [vmem:[%s7 + $0x230] sm:$0xff]
    %v3164 = vld [vmem:[%s7 + $0x238] sm:$0xff]
    %v3165 = vld [vmem:[%s7 + $0x240] sm:$0xff]
    %v3166 = vld [vmem:[%s7 + $0x248] sm:$0xf]
    %v3167 = vld [vmem:[%s7 + $0x24c] sm:$0xff]
    %v3168 = vld [vmem:[%s7 + $0x254] sm:$0xff]
    %v3169 = vld [vmem:[%s7 + $0x25c] sm:$0xff]
    %v3170 = vld [vmem:[%s7 + $0x264] sm:$0xf]
    %v3171 = vld [vmem:[%s7 + $0x268] sm:$0xff]
    %v3172 = vld [vmem:[%s7 + $0x270] sm:$0xff]
    %v3173 = vld [vmem:[%s7 + $0x278] sm:$0xff]
    %v3174 = vld [vmem:[%s7 + $0x280] sm:$0xf]
    %v3175 = vld [vmem:[%s7 + $0x284] sm:$0xff]
    %v3176 = vld [vmem:[%s7 + $0x28c] sm:$0xff]
    %v3177 = vld [vmem:[%s7 + $0x294] sm:$0xff]
    %v3178 = vld [vmem:[%s7 + $0x29c] sm:$0xf]
    %v3179 = vld [vmem:[%s7 + $0x2a0] sm:$0xff]
    %v3180 = vld [vmem:[%s7 + $0x2a8] sm:$0xff]
    %v3181 = vld [vmem:[%s7 + $0x2b0] sm:$0xff]
    %v3182 = vld [vmem:[%s7 + $0x2b8] sm:$0xf]
    %v3183 = vld [vmem:[%s7 + $0x2bc] sm:$0xff]
    %v3184 = vld [vmem:[%s7 + $0x2c4] sm:$0xff]
    %v3185 = vld [vmem:[%s7 + $0x2cc] sm:$0xff]
    %v3186 = vld [vmem:[%s7 + $0x2d4] sm:$0xf]
    %v3187 = vld [vmem:[%s7 + $0x2d8] sm:$0xff]
    %v3188 = vld [vmem:[%s7 + $0x2e0] sm:$0xff]
    %v3189 = vld [vmem:[%s7 + $0x2e8] sm:$0xff]
    %v3190 = vld [vmem:[%s7 + $0x2f0] sm:$0xf]
    %v3191 = vld [vmem:[%s7 + $0x2f4] sm:$0xff]
    %v3192 = vld [vmem:[%s7 + $0x2fc] sm:$0xff]
    %v3193 = vld [vmem:[%s7 + $0x304] sm:$0xff]
    %v3194 = vld [vmem:[%s7 + $0x30c] sm:$0xf]
    %v3195 = vld [vmem:[%s7 + $0x310] sm:$0xff]
    %v3196 = vld [vmem:[%s7 + $0x318] sm:$0xff]
    %v3197 = vld [vmem:[%s7 + $0x320] sm:$0xff]
    %v3198 = vld [vmem:[%s7 + $0x328] sm:$0xf]
    %v3199 = vld [vmem:[%s7 + $0x32c] sm:$0xff]
    %v3200 = vld [vmem:[%s7 + $0x334] sm:$0xff]
    %v3201 = vld [vmem:[%s7 + $0x33c] sm:$0xff]
    %v3202 = vld [vmem:[%s7 + $0x344] sm:$0xf]
    %v3203 = vld [vmem:[%s7 + $0x348] sm:$0xff]
    %v3204 = vld [vmem:[%s7 + $0x350] sm:$0xff]
    %v3205 = vld [vmem:[%s7 + $0x358] sm:$0xff]
    %v3206 = vld [vmem:[%s7 + $0x360] sm:$0xf]
    %v3207 = vld [vmem:[%s7 + $0x364] sm:$0xff]
    %v3208 = vld [vmem:[%s7 + $0x36c] sm:$0xff]
    %v3209 = vld [vmem:[%s7 + $0x374] sm:$0xff]
    %v3210 = vld [vmem:[%s7 + $0x37c] sm:$0xf]
    %v3211 = vld [vmem:[%s7 + $0x380] sm:$0xff]
    %v3212 = vld [vmem:[%s7 + $0x388] sm:$0xff]
    %v3213 = vld [vmem:[%s7 + $0x390] sm:$0xff]
    %v3214 = vld [vmem:[%s7 + $0x398] sm:$0xf]
    %v3215 = vld [vmem:[%s7 + $0x39c] sm:$0xff]
    %v3216 = vld [vmem:[%s7 + $0x3a4] sm:$0xff]
    %v3217 = vld [vmem:[%s7 + $0x3ac] sm:$0xff]
    %v3218 = vld [vmem:[%s7 + $0x3b4] sm:$0xf]
    %v3219 = vld [vmem:[%s7 + $0x3b8] sm:$0xff]
    %v3220 = vld [vmem:[%s7 + $0x3c0] sm:$0xff]
    %v3221 = vld [vmem:[%s7 + $0x3c8] sm:$0xff]
    %v3222 = vld [vmem:[%s7 + $0x3d0] sm:$0xf]
    %v3223 = vld [vmem:[%s7 + $0x3d4] sm:$0xff]
    %v3224 = vld [vmem:[%s7 + $0x3dc] sm:$0xff]
    %v3225 = vld [vmem:[%s7 + $0x3e4] sm:$0xff]
    %v3226 = vld [vmem:[%s7 + $0x3ec] sm:$0xf]
    %v3227 = vld [vmem:[%s7 + $0x3f0] sm:$0xff]
    %v3228 = vld [vmem:[%s7 + $0x3f8] sm:$0xff]
    %v3229 = vld [vmem:[%s7 + $0x400] sm:$0xff]
    %v3230 = vld [vmem:[%s7 + $0x408] sm:$0xf]
    %v3231 = vld [vmem:[%s7 + $0x40c] sm:$0xff]
    %v3232 = vld [vmem:[%s7 + $0x414] sm:$0xff]
    %v3233 = vld [vmem:[%s7 + $0x41c] sm:$0xff]
    %v3234 = vld [vmem:[%s7 + $0x424] sm:$0xf]
    %v3235 = vld [vmem:[%s7 + $0x428] sm:$0xff]
    %v3236 = vld [vmem:[%s7 + $0x430] sm:$0xff]
    %v3237 = vld [vmem:[%s7 + $0x438] sm:$0xff]
    %v3238 = vld [vmem:[%s7 + $0x440] sm:$0xf]
    %v3239 = vld [vmem:[%s7 + $0x444] sm:$0xff]
    %v3240 = vld [vmem:[%s7 + $0x44c] sm:$0xff]
    %v3241 = vld [vmem:[%s7 + $0x454] sm:$0xff]
    %v3242 = vld [vmem:[%s7 + $0x45c] sm:$0xf]
    %v3243 = vld [vmem:[%s7 + $0x460] sm:$0xff]
    %v3244 = vld [vmem:[%s7 + $0x468] sm:$0xff]
    %v3245 = vld [vmem:[%s7 + $0x470] sm:$0xff]
    %v3246 = vld [vmem:[%s7 + $0x478] sm:$0xf]
    %v3247 = vld [vmem:[%s7 + $0x47c] sm:$0xff]
    %v3248 = vld [vmem:[%s7 + $0x484] sm:$0xff]
    %v3249 = vld [vmem:[%s7 + $0x48c] sm:$0xff]
    %v3250 = vld [vmem:[%s7 + $0x494] sm:$0xf]
    %v3251 = vld [vmem:[%s7 + $0x498] sm:$0xff]
    %v3252 = vld [vmem:[%s7 + $0x4a0] sm:$0xff]
    %v3253 = vld [vmem:[%s7 + $0x4a8] sm:$0xff]
    %v3254 = vld [vmem:[%s7 + $0x4b0] sm:$0xf]
    %v3255 = vld [vmem:[%s7 + $0x4b4] sm:$0xff]
    %v3256 = vld [vmem:[%s7 + $0x4bc] sm:$0xff]
    %v3257 = vld [vmem:[%s7 + $0x4c4] sm:$0xff]
    %v3258 = vld [vmem:[%s7 + $0x4cc] sm:$0xf]
    %v3259 = vld [vmem:[%s7 + $0x4d0] sm:$0xff]
    %v3260 = vld [vmem:[%s7 + $0x4d8] sm:$0xff]
    %v3261 = vld [vmem:[%s7 + $0x4e0] sm:$0xff]
    %v3262 = vld [vmem:[%s7 + $0x4e8] sm:$0xf]
    %v3263 = vld [vmem:[%s7 + $0x4ec] sm:$0xff]
    %v3264 = vld [vmem:[%s7 + $0x4f4] sm:$0xff]
    %v3265 = vld [vmem:[%s7 + $0x4fc] sm:$0xff]
    %v3266 = vld [vmem:[%s7 + $0x504] sm:$0xf]
    %v3267 = vld [vmem:[%s7 + $0x508] sm:$0xff]
    %v3268 = vld [vmem:[%s7 + $0x510] sm:$0xff]
    %v3269 = vld [vmem:[%s7 + $0x518] sm:$0xff]
    %v3270 = vld [vmem:[%s7 + $0x520] sm:$0xf]
    %v3271 = vld [vmem:[%s7 + $0x524] sm:$0xff]
    %v3272 = vld [vmem:[%s7 + $0x52c] sm:$0xff]
    %v3273 = vld [vmem:[%s7 + $0x534] sm:$0xff]
    %v3274 = vld [vmem:[%s7 + $0x53c] sm:$0xf]
    %v3275 = vld [vmem:[%s7 + $0x540] sm:$0xff]
    %v3276 = vld [vmem:[%s7 + $0x548] sm:$0xff]
    %v3277 = vld [vmem:[%s7 + $0x550] sm:$0xff]
    %v3278 = vld [vmem:[%s7 + $0x558] sm:$0xf]
    %v3279 = vld [vmem:[%s7 + $0x55c] sm:$0xff]
    %v3280 = vld [vmem:[%s7 + $0x564] sm:$0xff]
    %v3281 = vld [vmem:[%s7 + $0x56c] sm:$0xff]
    %v3282 = vld [vmem:[%s7 + $0x574] sm:$0xf]
    %v3283 = vld [vmem:[%s7 + $0x578] sm:$0xff]
    %v3284 = vld [vmem:[%s7 + $0x580] sm:$0xff]
    %v3285 = vld [vmem:[%s7 + $0x588] sm:$0xff]
    %v3286 = vld [vmem:[%s7 + $0x590] sm:$0xf]
    %v3287 = vld [vmem:[%s7 + $0x594] sm:$0xff]
    %v3288 = vld [vmem:[%s7 + $0x59c] sm:$0xff]
    %v3289 = vld [vmem:[%s7 + $0x5a4] sm:$0xff]
    %v3290 = vld [vmem:[%s7 + $0x5ac] sm:$0xf]
    %v3291 = vld [vmem:[%s7 + $0x5b0] sm:$0xff]
    %v3292 = vld [vmem:[%s7 + $0x5b8] sm:$0xff]
    %v3293 = vld [vmem:[%s7 + $0x5c0] sm:$0xff]
    %v3294 = vld [vmem:[%s7 + $0x5c8] sm:$0xf]
    %v3295 = vld [vmem:[%s7 + $0x5cc] sm:$0xff]
    %v3296 = vld [vmem:[%s7 + $0x5d4] sm:$0xff]
    %v3297 = vld [vmem:[%s7 + $0x5dc] sm:$0xff]
    %v3298 = vld [vmem:[%s7 + $0x5e4] sm:$0xf]
    %v3299 = vld [vmem:[%s7 + $0x5e8] sm:$0xff]
    %v3300 = vld [vmem:[%s7 + $0x5f0] sm:$0xff]
    %v3301 = vld [vmem:[%s7 + $0x5f8] sm:$0xff]
    %v3302 = vld [vmem:[%s7 + $0x600] sm:$0xf]
    %v3303 = vld [vmem:[%s7 + $0x604] sm:$0xff]
    %v3304 = vld [vmem:[%s7 + $0x60c] sm:$0xff]
    %v3305 = vld [vmem:[%s7 + $0x614] sm:$0xff]
    %v3306 = vld [vmem:[%s7 + $0x61c] sm:$0xf]
    %v3307 = vld [vmem:[%s7 + $0x620] sm:$0xff]
    %v3308 = vld [vmem:[%s7 + $0x628] sm:$0xff]
    %v3309 = vld [vmem:[%s7 + $0x630] sm:$0xff]
    %v3310 = vld [vmem:[%s7 + $0x638] sm:$0xf]
    %v3311 = vld [vmem:[%s7 + $0x63c] sm:$0xff]
    %v3312 = vld [vmem:[%s7 + $0x644] sm:$0xff]
    %v3313 = vld [vmem:[%s7 + $0x64c] sm:$0xff]
    %v3314 = vld [vmem:[%s7 + $0x654] sm:$0xf]
    %v3315 = vld [vmem:[%s7 + $0x658] sm:$0xff]
    %v3316 = vld [vmem:[%s7 + $0x660] sm:$0xff]
    %v3317 = vld [vmem:[%s7 + $0x668] sm:$0xff]
    %v3318 = vld [vmem:[%s7 + $0x670] sm:$0xf]
    %v3319 = vld [vmem:[%s7 + $0x674] sm:$0xff]
    %v3320 = vld [vmem:[%s7 + $0x67c] sm:$0xff]
    %v3321 = vld [vmem:[%s7 + $0x684] sm:$0xff]
    %v3322 = vld [vmem:[%s7 + $0x68c] sm:$0xf]
    %v3323 = vld [vmem:[%s7 + $0x690] sm:$0xff]
    %v3324 = vld [vmem:[%s7 + $0x698] sm:$0xff]
    %v3325 = vld [vmem:[%s7 + $0x6a0] sm:$0xff]
    %v3326 = vld [vmem:[%s7 + $0x6a8] sm:$0xf]
    %v3327 = vld [vmem:[%s7 + $0x6ac] sm:$0xff]
    %v3328 = vld [vmem:[%s7 + $0x6b4] sm:$0xff]
    %v3329 = vld [vmem:[%s7 + $0x6bc] sm:$0xff]
    %v3330 = vld [vmem:[%s7 + $0x6c4] sm:$0xf]
    %v3331 = vld [vmem:[%s7 + $0x6c8] sm:$0xff]
    %v3332 = vld [vmem:[%s7 + $0x6d0] sm:$0xff]
    %v3333 = vld [vmem:[%s7 + $0x6d8] sm:$0xff]
    %v3334 = vld [vmem:[%s7 + $0x6e0] sm:$0xf]
    %v3335 = vld [vmem:[%s7 + $0x6e4] sm:$0xff]
    %v3336 = vld [vmem:[%s7 + $0x6ec] sm:$0xff]
    %v3337 = vld [vmem:[%s7 + $0x6f4] sm:$0xff]
    %v3338 = vld [vmem:[%s7 + $0x6fc] sm:$0xf]
    %v3339 = vld [vmem:[%s7 + $0x700] sm:$0xff]
    %v3340 = vld [vmem:[%s7 + $0x708] sm:$0xff]
    %v3341 = vld [vmem:[%s7 + $0x710] sm:$0xff]
    %v3342 = vld [vmem:[%s7 + $0x718] sm:$0xf]
    %v3343 = vld [vmem:[%s7 + $0x71c] sm:$0xff]
    %v3344 = vld [vmem:[%s7 + $0x724] sm:$0xff]
    %v3345 = vld [vmem:[%s7 + $0x72c] sm:$0xff]
    %v3346 = vld [vmem:[%s7 + $0x734] sm:$0xf]
    %v3347 = vld [vmem:[%s7 + $0x738] sm:$0xff]
    %v3348 = vld [vmem:[%s7 + $0x740] sm:$0xff]
    %v3349 = vld [vmem:[%s7 + $0x748] sm:$0xff]
    %v3350 = vld [vmem:[%s7 + $0x750] sm:$0xf]
    %v3351 = vld [vmem:[%s7 + $0x754] sm:$0xff]
    %v3352 = vld [vmem:[%s7 + $0x75c] sm:$0xff]
    %v3353 = vld [vmem:[%s7 + $0x764] sm:$0xff]
    %v3354 = vld [vmem:[%s7 + $0x76c] sm:$0xf]
    %v3355 = vld [vmem:[%s7 + $0x770] sm:$0xff]
    %v3356 = vld [vmem:[%s7 + $0x778] sm:$0xff]
    %v3357 = vld [vmem:[%s7 + $0x780] sm:$0xff]
    %v3358 = vld [vmem:[%s7 + $0x788] sm:$0xf]
    %v3359 = vld [vmem:[%s7 + $0x78c] sm:$0xff]
    %v3360 = vld [vmem:[%s7 + $0x794] sm:$0xff]
    %v3361 = vld [vmem:[%s7 + $0x79c] sm:$0xff]
    %v3362 = vld [vmem:[%s7 + $0x7a4] sm:$0xf]
    %v3363 = vld [vmem:[%s7 + $0x7a8] sm:$0xff]
    %v3364 = vld [vmem:[%s7 + $0x7b0] sm:$0xff]
    %v3365 = vld [vmem:[%s7 + $0x7b8] sm:$0xff]
    %v3366 = vld [vmem:[%s7 + $0x7c0] sm:$0xf]
    %v3367 = vld [vmem:[%s7 + $0x7c4] sm:$0xff]
    %v3368 = vld [vmem:[%s7 + $0x7cc] sm:$0xff]
    %v3369 = vld [vmem:[%s7 + $0x7d4] sm:$0xff]
    %v3370 = vld [vmem:[%s7 + $0x7dc] sm:$0xf]
    %v3371 = vld [vmem:[%s7 + $0x7e0] sm:$0xff]
    %v3372 = vld [vmem:[%s7 + $0x7e8] sm:$0xff]
    %v3373 = vld [vmem:[%s7 + $0x7f0] sm:$0xff]
    %v3374 = vld [vmem:[%s7 + $0x7f8] sm:$0xf]
    %v3375 = vld [vmem:[%s7 + $0x7fc] sm:$0xff]
    %v3376 = vld [vmem:[%s7 + $0x804] sm:$0xff]
    %v3377 = vld [vmem:[%s7 + $0x80c] sm:$0xff]
    %v3378 = vld [vmem:[%s7 + $0x814] sm:$0xf]
    %v3379 = vld [vmem:[%s7 + $0x818] sm:$0xff]
    %v3380 = vld [vmem:[%s7 + $0x820] sm:$0xff]
    %v3381 = vld [vmem:[%s7 + $0x828] sm:$0xff]
    %v3382 = vld [vmem:[%s7 + $0x830] sm:$0xf]
    %v3383 = vld [vmem:[%s7 + $0x834] sm:$0xff]
    %v3384 = vld [vmem:[%s7 + $0x83c] sm:$0xff]
    %v3385 = vld [vmem:[%s7 + $0x844] sm:$0xff]
    %v3386 = vld [vmem:[%s7 + $0x84c] sm:$0xf]
    %v3387 = vld [vmem:[%s7 + $0x850] sm:$0xff]
    %v3388 = vld [vmem:[%s7 + $0x858] sm:$0xff]
    %v3389 = vld [vmem:[%s7 + $0x860] sm:$0xff]
    %v3390 = vld [vmem:[%s7 + $0x868] sm:$0xf]
    %v3391 = vld [vmem:[%s7 + $0x86c] sm:$0xff]
    %v3392 = vld [vmem:[%s7 + $0x874] sm:$0xff]
    %v3393 = vld [vmem:[%s7 + $0x87c] sm:$0xff]
    %v3394 = vld [vmem:[%s7 + $0x884] sm:$0xf]
    %v3395 = vld [vmem:[%s7 + $0x888] sm:$0xff]
    %v3396 = vld [vmem:[%s7 + $0x890] sm:$0xff]
    %v3397 = vld [vmem:[%s7 + $0x898] sm:$0xff]
    %v3398 = vld [vmem:[%s7 + $0x8a0] sm:$0xf]
    %v3399 = vld [vmem:[%s7 + $0x8a4] sm:$0xff]
    %v3400 = vld [vmem:[%s7 + $0x8ac] sm:$0xff]
    %v3401 = vld [vmem:[%s7 + $0x8b4] sm:$0xff]
    %v3402 = vld [vmem:[%s7 + $0x8bc] sm:$0xf]
    %v3403 = vld [vmem:[%s8] sm:$0x7f]
    %v3405 = vlaneseq
    %v3406 = vshrl.u32 %v3405, 7
    %v3407 = vsub.s32 0, %v3406
    %v3408 = vrot.slane %v3403, %v3407
    %v3409 = vlaneseq
    %v3410 = vshrl.u32 %v3409, 7
    %v3411 = vsub.s32 1, %v3410
    %v3412 = vrot.slane %v3403, %v3411
    %v3413 = vlaneseq
    %v3414 = vshrl.u32 %v3413, 7
    %v3415 = vsub.s32 2, %v3414
    %v3416 = vrot.slane %v3403, %v3415
    %v3417 = vlaneseq
    %v3418 = vshrl.u32 %v3417, 7
    %v3419 = vsub.s32 3, %v3418
    %v3420 = vrot.slane %v3403, %v3419
    %v3421 = vlaneseq
    %v3422 = vshrl.u32 %v3421, 7
    %v3423 = vsub.s32 4, %v3422
    %v3424 = vrot.slane %v3403, %v3423
    %v3425 = vlaneseq
    %v3426 = vshrl.u32 %v3425, 7
    %v3427 = vsub.s32 5, %v3426
    %v3428 = vrot.slane %v3403, %v3427
    %v3429 = vlaneseq
    %v3430 = vshrl.u32 %v3429, 7
    %v3431 = vsub.s32 6, %v3430
    %v3432 = vrot.slane %v3403, %v3431
    %v3760 = vunpack.c.l.b16 %v3083
    %v3761 = vunpack.c.h.b16 %v3083
    %v3762 = vunpack.c.l.b16 %v3084
    %v3763 = vunpack.c.h.b16 %v3084
    %v3764 = vunpack.c.l.b16 %v3085
    %v3765 = vunpack.c.h.b16 %v3085
    %v3766 = vunpack.c.l.b16 %v3086
    %v3767 = vunpack.c.l.b16 %v3087
    %v3768 = vunpack.c.h.b16 %v3087
    %v3769 = vunpack.c.l.b16 %v3088
    %v3770 = vunpack.c.h.b16 %v3088
    %v3771 = vunpack.c.l.b16 %v3089
    %v3772 = vunpack.c.h.b16 %v3089
    %v3773 = vunpack.c.l.b16 %v3090
    %v3774 = vunpack.c.l.b16 %v3091
    %v3775 = vunpack.c.h.b16 %v3091
    %v3776 = vunpack.c.l.b16 %v3092
    %v3777 = vunpack.c.h.b16 %v3092
    %v3778 = vunpack.c.l.b16 %v3093
    %v3779 = vunpack.c.h.b16 %v3093
    %v3780 = vunpack.c.l.b16 %v3094
    %v3781 = vunpack.c.l.b16 %v3095
    %v3782 = vunpack.c.h.b16 %v3095
    %v3783 = vunpack.c.l.b16 %v3096
    %v3784 = vunpack.c.h.b16 %v3096
    %v3785 = vunpack.c.l.b16 %v3097
    %v3786 = vunpack.c.h.b16 %v3097
    %v3787 = vunpack.c.l.b16 %v3098
    %v3788 = vunpack.c.l.b16 %v3099
    %v3789 = vunpack.c.h.b16 %v3099
    %v3790 = vunpack.c.l.b16 %v3100
    %v3791 = vunpack.c.h.b16 %v3100
    %v3792 = vunpack.c.l.b16 %v3101
    %v3793 = vunpack.c.h.b16 %v3101
    %v3794 = vunpack.c.l.b16 %v3102
    %v3795 = vunpack.c.l.b16 %v3103
    %v3796 = vunpack.c.h.b16 %v3103
    %v3797 = vunpack.c.l.b16 %v3104
    %v3798 = vunpack.c.h.b16 %v3104
    %v3799 = vunpack.c.l.b16 %v3105
    %v3800 = vunpack.c.h.b16 %v3105
    %v3801 = vunpack.c.l.b16 %v3106
    %v3802 = vunpack.c.l.b16 %v3107
    %v3803 = vunpack.c.h.b16 %v3107
    %v3804 = vunpack.c.l.b16 %v3108
    %v3805 = vunpack.c.h.b16 %v3108
    %v3806 = vunpack.c.l.b16 %v3109
    %v3807 = vunpack.c.h.b16 %v3109
    %v3808 = vunpack.c.l.b16 %v3110
    %v3809 = vunpack.c.l.b16 %v3111
    %v3810 = vunpack.c.h.b16 %v3111
    %v3811 = vunpack.c.l.b16 %v3112
    %v3812 = vunpack.c.h.b16 %v3112
    %v3813 = vunpack.c.l.b16 %v3113
    %v3814 = vunpack.c.h.b16 %v3113
    %v3815 = vunpack.c.l.b16 %v3114
    %v3816 = vunpack.c.l.b16 %v3115
    %v3817 = vunpack.c.h.b16 %v3115
    %v3818 = vunpack.c.l.b16 %v3116
    %v3819 = vunpack.c.h.b16 %v3116
    %v3820 = vunpack.c.l.b16 %v3117
    %v3821 = vunpack.c.h.b16 %v3117
    %v3822 = vunpack.c.l.b16 %v3118
    %v3823 = vunpack.c.l.b16 %v3119
    %v3824 = vunpack.c.h.b16 %v3119
    %v3825 = vunpack.c.l.b16 %v3120
    %v3826 = vunpack.c.h.b16 %v3120
    %v3827 = vunpack.c.l.b16 %v3121
    %v3828 = vunpack.c.h.b16 %v3121
    %v3829 = vunpack.c.l.b16 %v3122
    %v3830 = vunpack.c.l.b16 %v3123
    %v3831 = vunpack.c.h.b16 %v3123
    %v3832 = vunpack.c.l.b16 %v3124
    %v3833 = vunpack.c.h.b16 %v3124
    %v3834 = vunpack.c.l.b16 %v3125
    %v3835 = vunpack.c.h.b16 %v3125
    %v3836 = vunpack.c.l.b16 %v3126
    %v3837 = vunpack.c.l.b16 %v3127
    %v3838 = vunpack.c.h.b16 %v3127
    %v3839 = vunpack.c.l.b16 %v3128
    %v3840 = vunpack.c.h.b16 %v3128
    %v3841 = vunpack.c.l.b16 %v3129
    %v3842 = vunpack.c.h.b16 %v3129
    %v3843 = vunpack.c.l.b16 %v3130
    %v3844 = vunpack.c.l.b16 %v3131
    %v3845 = vunpack.c.h.b16 %v3131
    %v3846 = vunpack.c.l.b16 %v3132
    %v3847 = vunpack.c.h.b16 %v3132
    %v3848 = vunpack.c.l.b16 %v3133
    %v3849 = vunpack.c.h.b16 %v3133
    %v3850 = vunpack.c.l.b16 %v3134
    %v3851 = vunpack.c.l.b16 %v3135
    %v3852 = vunpack.c.h.b16 %v3135
    %v3853 = vunpack.c.l.b16 %v3136
    %v3854 = vunpack.c.h.b16 %v3136
    %v3855 = vunpack.c.l.b16 %v3137
    %v3856 = vunpack.c.h.b16 %v3137
    %v3857 = vunpack.c.l.b16 %v3138
    %v3858 = vunpack.c.l.b16 %v3139
    %v3859 = vunpack.c.h.b16 %v3139
    %v3860 = vunpack.c.l.b16 %v3140
    %v3861 = vunpack.c.h.b16 %v3140
    %v3862 = vunpack.c.l.b16 %v3141
    %v3863 = vunpack.c.h.b16 %v3141
    %v3864 = vunpack.c.l.b16 %v3142
    %v3865 = vunpack.c.l.b16 %v3143
    %v3866 = vunpack.c.h.b16 %v3143
    %v3867 = vunpack.c.l.b16 %v3144
    %v3868 = vunpack.c.h.b16 %v3144
    %v3869 = vunpack.c.l.b16 %v3145
    %v3870 = vunpack.c.h.b16 %v3145
    %v3871 = vunpack.c.l.b16 %v3146
    %v3872 = vunpack.c.l.b16 %v3147
    %v3873 = vunpack.c.h.b16 %v3147
    %v3874 = vunpack.c.l.b16 %v3148
    %v3875 = vunpack.c.h.b16 %v3148
    %v3876 = vunpack.c.l.b16 %v3149
    %v3877 = vunpack.c.h.b16 %v3149
    %v3878 = vunpack.c.l.b16 %v3150
    %v3879 = vunpack.c.l.b16 %v3151
    %v3880 = vunpack.c.h.b16 %v3151
    %v3881 = vunpack.c.l.b16 %v3152
    %v3882 = vunpack.c.h.b16 %v3152
    %v3883 = vunpack.c.l.b16 %v3153
    %v3884 = vunpack.c.h.b16 %v3153
    %v3885 = vunpack.c.l.b16 %v3154
    %v3886 = vunpack.c.l.b16 %v3155
    %v3887 = vunpack.c.h.b16 %v3155
    %v3888 = vunpack.c.l.b16 %v3156
    %v3889 = vunpack.c.h.b16 %v3156
    %v3890 = vunpack.c.l.b16 %v3157
    %v3891 = vunpack.c.h.b16 %v3157
    %v3892 = vunpack.c.l.b16 %v3158
    %v3893 = vunpack.c.l.b16 %v3159
    %v3894 = vunpack.c.h.b16 %v3159
    %v3895 = vunpack.c.l.b16 %v3160
    %v3896 = vunpack.c.h.b16 %v3160
    %v3897 = vunpack.c.l.b16 %v3161
    %v3898 = vunpack.c.h.b16 %v3161
    %v3899 = vunpack.c.l.b16 %v3162
    %v3900 = vunpack.c.l.b16 %v3163
    %v3901 = vunpack.c.h.b16 %v3163
    %v3902 = vunpack.c.l.b16 %v3164
    %v3903 = vunpack.c.h.b16 %v3164
    %v3904 = vunpack.c.l.b16 %v3165
    %v3905 = vunpack.c.h.b16 %v3165
    %v3906 = vunpack.c.l.b16 %v3166
    %v3907 = vunpack.c.l.b16 %v3167
    %v3908 = vunpack.c.h.b16 %v3167
    %v3909 = vunpack.c.l.b16 %v3168
    %v3910 = vunpack.c.h.b16 %v3168
    %v3911 = vunpack.c.l.b16 %v3169
    %v3912 = vunpack.c.h.b16 %v3169
    %v3913 = vunpack.c.l.b16 %v3170
    %v3914 = vunpack.c.l.b16 %v3171
    %v3915 = vunpack.c.h.b16 %v3171
    %v3916 = vunpack.c.l.b16 %v3172
    %v3917 = vunpack.c.h.b16 %v3172
    %v3918 = vunpack.c.l.b16 %v3173
    %v3919 = vunpack.c.h.b16 %v3173
    %v3920 = vunpack.c.l.b16 %v3174
    %v3921 = vunpack.c.l.b16 %v3175
    %v3922 = vunpack.c.h.b16 %v3175
    %v3923 = vunpack.c.l.b16 %v3176
    %v3924 = vunpack.c.h.b16 %v3176
    %v3925 = vunpack.c.l.b16 %v3177
    %v3926 = vunpack.c.h.b16 %v3177
    %v3927 = vunpack.c.l.b16 %v3178
    %v3928 = vunpack.c.l.b16 %v3179
    %v3929 = vunpack.c.h.b16 %v3179
    %v3930 = vunpack.c.l.b16 %v3180
    %v3931 = vunpack.c.h.b16 %v3180
    %v3932 = vunpack.c.l.b16 %v3181
    %v3933 = vunpack.c.h.b16 %v3181
    %v3934 = vunpack.c.l.b16 %v3182
    %v3935 = vunpack.c.l.b16 %v3183
    %v3936 = vunpack.c.h.b16 %v3183
    %v3937 = vunpack.c.l.b16 %v3184
    %v3938 = vunpack.c.h.b16 %v3184
    %v3939 = vunpack.c.l.b16 %v3185
    %v3940 = vunpack.c.h.b16 %v3185
    %v3941 = vunpack.c.l.b16 %v3186
    %v3942 = vunpack.c.l.b16 %v3187
    %v3943 = vunpack.c.h.b16 %v3187
    %v3944 = vunpack.c.l.b16 %v3188
    %v3945 = vunpack.c.h.b16 %v3188
    %v3946 = vunpack.c.l.b16 %v3189
    %v3947 = vunpack.c.h.b16 %v3189
    %v3948 = vunpack.c.l.b16 %v3190
    %v3949 = vunpack.c.l.b16 %v3191
    %v3950 = vunpack.c.h.b16 %v3191
    %v3951 = vunpack.c.l.b16 %v3192
    %v3952 = vunpack.c.h.b16 %v3192
    %v3953 = vunpack.c.l.b16 %v3193
    %v3954 = vunpack.c.h.b16 %v3193
    %v3955 = vunpack.c.l.b16 %v3194
    %v3956 = vunpack.c.l.b16 %v3195
    %v3957 = vunpack.c.h.b16 %v3195
    %v3958 = vunpack.c.l.b16 %v3196
    %v3959 = vunpack.c.h.b16 %v3196
    %v3960 = vunpack.c.l.b16 %v3197
    %v3961 = vunpack.c.h.b16 %v3197
    %v3962 = vunpack.c.l.b16 %v3198
    %v3963 = vunpack.c.l.b16 %v3199
    %v3964 = vunpack.c.h.b16 %v3199
    %v3965 = vunpack.c.l.b16 %v3200
    %v3966 = vunpack.c.h.b16 %v3200
    %v3967 = vunpack.c.l.b16 %v3201
    %v3968 = vunpack.c.h.b16 %v3201
    %v3969 = vunpack.c.l.b16 %v3202
    %v3970 = vunpack.c.l.b16 %v3203
    %v3971 = vunpack.c.h.b16 %v3203
    %v3972 = vunpack.c.l.b16 %v3204
    %v3973 = vunpack.c.h.b16 %v3204
    %v3974 = vunpack.c.l.b16 %v3205
    %v3975 = vunpack.c.h.b16 %v3205
    %v3976 = vunpack.c.l.b16 %v3206
    %v3977 = vunpack.c.l.b16 %v3207
    %v3978 = vunpack.c.h.b16 %v3207
    %v3979 = vunpack.c.l.b16 %v3208
    %v3980 = vunpack.c.h.b16 %v3208
    %v3981 = vunpack.c.l.b16 %v3209
    %v3982 = vunpack.c.h.b16 %v3209
    %v3983 = vunpack.c.l.b16 %v3210
    %v3984 = vunpack.c.l.b16 %v3211
    %v3985 = vunpack.c.h.b16 %v3211
    %v3986 = vunpack.c.l.b16 %v3212
    %v3987 = vunpack.c.h.b16 %v3212
    %v3988 = vunpack.c.l.b16 %v3213
    %v3989 = vunpack.c.h.b16 %v3213
    %v3990 = vunpack.c.l.b16 %v3214
    %v3991 = vunpack.c.l.b16 %v3215
    %v3992 = vunpack.c.h.b16 %v3215
    %v3993 = vunpack.c.l.b16 %v3216
    %v3994 = vunpack.c.h.b16 %v3216
    %v3995 = vunpack.c.l.b16 %v3217
    %v3996 = vunpack.c.h.b16 %v3217
    %v3997 = vunpack.c.l.b16 %v3218
    %v3998 = vunpack.c.l.b16 %v3219
    %v3999 = vunpack.c.h.b16 %v3219
    %v4000 = vunpack.c.l.b16 %v3220
    %v4001 = vunpack.c.h.b16 %v3220
    %v4002 = vunpack.c.l.b16 %v3221
    %v4003 = vunpack.c.h.b16 %v3221
    %v4004 = vunpack.c.l.b16 %v3222
    %v4005 = vunpack.c.l.b16 %v3223
    %v4006 = vunpack.c.h.b16 %v3223
    %v4007 = vunpack.c.l.b16 %v3224
    %v4008 = vunpack.c.h.b16 %v3224
    %v4009 = vunpack.c.l.b16 %v3225
    %v4010 = vunpack.c.h.b16 %v3225
    %v4011 = vunpack.c.l.b16 %v3226
    %v4012 = vunpack.c.l.b16 %v3227
    %v4013 = vunpack.c.h.b16 %v3227
    %v4014 = vunpack.c.l.b16 %v3228
    %v4015 = vunpack.c.h.b16 %v3228
    %v4016 = vunpack.c.l.b16 %v3229
    %v4017 = vunpack.c.h.b16 %v3229
    %v4018 = vunpack.c.l.b16 %v3230
    %v4019 = vunpack.c.l.b16 %v3231
    %v4020 = vunpack.c.h.b16 %v3231
    %v4021 = vunpack.c.l.b16 %v3232
    %v4022 = vunpack.c.h.b16 %v3232
    %v4023 = vunpack.c.l.b16 %v3233
    %v4024 = vunpack.c.h.b16 %v3233
    %v4025 = vunpack.c.l.b16 %v3234
    %v4026 = vunpack.c.l.b16 %v3235
    %v4027 = vunpack.c.h.b16 %v3235
    %v4028 = vunpack.c.l.b16 %v3236
    %v4029 = vunpack.c.h.b16 %v3236
    %v4030 = vunpack.c.l.b16 %v3237
    %v4031 = vunpack.c.h.b16 %v3237
    %v4032 = vunpack.c.l.b16 %v3238
    %v4033 = vunpack.c.l.b16 %v3239
    %v4034 = vunpack.c.h.b16 %v3239
    %v4035 = vunpack.c.l.b16 %v3240
    %v4036 = vunpack.c.h.b16 %v3240
    %v4037 = vunpack.c.l.b16 %v3241
    %v4038 = vunpack.c.h.b16 %v3241
    %v4039 = vunpack.c.l.b16 %v3242
    %v4040 = vunpack.c.l.b16 %v3243
    %v4041 = vunpack.c.h.b16 %v3243
    %v4042 = vunpack.c.l.b16 %v3244
    %v4043 = vunpack.c.h.b16 %v3244
    %v4044 = vunpack.c.l.b16 %v3245
    %v4045 = vunpack.c.h.b16 %v3245
    %v4046 = vunpack.c.l.b16 %v3246
    %v4047 = vunpack.c.l.b16 %v3247
    %v4048 = vunpack.c.h.b16 %v3247
    %v4049 = vunpack.c.l.b16 %v3248
    %v4050 = vunpack.c.h.b16 %v3248
    %v4051 = vunpack.c.l.b16 %v3249
    %v4052 = vunpack.c.h.b16 %v3249
    %v4053 = vunpack.c.l.b16 %v3250
    %v4054 = vunpack.c.l.b16 %v3251
    %v4055 = vunpack.c.h.b16 %v3251
    %v4056 = vunpack.c.l.b16 %v3252
    %v4057 = vunpack.c.h.b16 %v3252
    %v4058 = vunpack.c.l.b16 %v3253
    %v4059 = vunpack.c.h.b16 %v3253
    %v4060 = vunpack.c.l.b16 %v3254
    %v4061 = vunpack.c.l.b16 %v3255
    %v4062 = vunpack.c.h.b16 %v3255
    %v4063 = vunpack.c.l.b16 %v3256
    %v4064 = vunpack.c.h.b16 %v3256
    %v4065 = vunpack.c.l.b16 %v3257
    %v4066 = vunpack.c.h.b16 %v3257
    %v4067 = vunpack.c.l.b16 %v3258
    %v4068 = vunpack.c.l.b16 %v3259
    %v4069 = vunpack.c.h.b16 %v3259
    %v4070 = vunpack.c.l.b16 %v3260
    %v4071 = vunpack.c.h.b16 %v3260
    %v4072 = vunpack.c.l.b16 %v3261
    %v4073 = vunpack.c.h.b16 %v3261
    %v4074 = vunpack.c.l.b16 %v3262
    %v4075 = vunpack.c.l.b16 %v3263
    %v4076 = vunpack.c.h.b16 %v3263
    %v4077 = vunpack.c.l.b16 %v3264
    %v4078 = vunpack.c.h.b16 %v3264
    %v4079 = vunpack.c.l.b16 %v3265
    %v4080 = vunpack.c.h.b16 %v3265
    %v4081 = vunpack.c.l.b16 %v3266
    %v4082 = vunpack.c.l.b16 %v3267
    %v4083 = vunpack.c.h.b16 %v3267
    %v4084 = vunpack.c.l.b16 %v3268
    %v4085 = vunpack.c.h.b16 %v3268
    %v4086 = vunpack.c.l.b16 %v3269
    %v4087 = vunpack.c.h.b16 %v3269
    %v4088 = vunpack.c.l.b16 %v3270
    %v4089 = vunpack.c.l.b16 %v3271
    %v4090 = vunpack.c.h.b16 %v3271
    %v4091 = vunpack.c.l.b16 %v3272
    %v4092 = vunpack.c.h.b16 %v3272
    %v4093 = vunpack.c.l.b16 %v3273
    %v4094 = vunpack.c.h.b16 %v3273
    %v4095 = vunpack.c.l.b16 %v3274
    %v4096 = vunpack.c.l.b16 %v3275
    %v4097 = vunpack.c.h.b16 %v3275
    %v4098 = vunpack.c.l.b16 %v3276
    %v4099 = vunpack.c.h.b16 %v3276
    %v4100 = vunpack.c.l.b16 %v3277
    %v4101 = vunpack.c.h.b16 %v3277
    %v4102 = vunpack.c.l.b16 %v3278
    %v4103 = vunpack.c.l.b16 %v3279
    %v4104 = vunpack.c.h.b16 %v3279
    %v4105 = vunpack.c.l.b16 %v3280
    %v4106 = vunpack.c.h.b16 %v3280
    %v4107 = vunpack.c.l.b16 %v3281
    %v4108 = vunpack.c.h.b16 %v3281
    %v4109 = vunpack.c.l.b16 %v3282
    %v4110 = vunpack.c.l.b16 %v3283
    %v4111 = vunpack.c.h.b16 %v3283
    %v4112 = vunpack.c.l.b16 %v3284
    %v4113 = vunpack.c.h.b16 %v3284
    %v4114 = vunpack.c.l.b16 %v3285
    %v4115 = vunpack.c.h.b16 %v3285
    %v4116 = vunpack.c.l.b16 %v3286
    %v4117 = vunpack.c.l.b16 %v3287
    %v4118 = vunpack.c.h.b16 %v3287
    %v4119 = vunpack.c.l.b16 %v3288
    %v4120 = vunpack.c.h.b16 %v3288
    %v4121 = vunpack.c.l.b16 %v3289
    %v4122 = vunpack.c.h.b16 %v3289
    %v4123 = vunpack.c.l.b16 %v3290
    %v4124 = vunpack.c.l.b16 %v3291
    %v4125 = vunpack.c.h.b16 %v3291
    %v4126 = vunpack.c.l.b16 %v3292
    %v4127 = vunpack.c.h.b16 %v3292
    %v4128 = vunpack.c.l.b16 %v3293
    %v4129 = vunpack.c.h.b16 %v3293
    %v4130 = vunpack.c.l.b16 %v3294
    %v4131 = vunpack.c.l.b16 %v3295
    %v4132 = vunpack.c.h.b16 %v3295
    %v4133 = vunpack.c.l.b16 %v3296
    %v4134 = vunpack.c.h.b16 %v3296
    %v4135 = vunpack.c.l.b16 %v3297
    %v4136 = vunpack.c.h.b16 %v3297
    %v4137 = vunpack.c.l.b16 %v3298
    %v4138 = vunpack.c.l.b16 %v3299
    %v4139 = vunpack.c.h.b16 %v3299
    %v4140 = vunpack.c.l.b16 %v3300
    %v4141 = vunpack.c.h.b16 %v3300
    %v4142 = vunpack.c.l.b16 %v3301
    %v4143 = vunpack.c.h.b16 %v3301
    %v4144 = vunpack.c.l.b16 %v3302
    %v4145 = vunpack.c.l.b16 %v3303
    %v4146 = vunpack.c.h.b16 %v3303
    %v4147 = vunpack.c.l.b16 %v3304
    %v4148 = vunpack.c.h.b16 %v3304
    %v4149 = vunpack.c.l.b16 %v3305
    %v4150 = vunpack.c.h.b16 %v3305
    %v4151 = vunpack.c.l.b16 %v3306
    %v4152 = vunpack.c.l.b16 %v3307
    %v4153 = vunpack.c.h.b16 %v3307
    %v4154 = vunpack.c.l.b16 %v3308
    %v4155 = vunpack.c.h.b16 %v3308
    %v4156 = vunpack.c.l.b16 %v3309
    %v4157 = vunpack.c.h.b16 %v3309
    %v4158 = vunpack.c.l.b16 %v3310
    %v4159 = vunpack.c.l.b16 %v3311
    %v4160 = vunpack.c.h.b16 %v3311
    %v4161 = vunpack.c.l.b16 %v3312
    %v4162 = vunpack.c.h.b16 %v3312
    %v4163 = vunpack.c.l.b16 %v3313
    %v4164 = vunpack.c.h.b16 %v3313
    %v4165 = vunpack.c.l.b16 %v3314
    %v4166 = vunpack.c.l.b16 %v3315
    %v4167 = vunpack.c.h.b16 %v3315
    %v4168 = vunpack.c.l.b16 %v3316
    %v4169 = vunpack.c.h.b16 %v3316
    %v4170 = vunpack.c.l.b16 %v3317
    %v4171 = vunpack.c.h.b16 %v3317
    %v4172 = vunpack.c.l.b16 %v3318
    %v4173 = vunpack.c.l.b16 %v3319
    %v4174 = vunpack.c.h.b16 %v3319
    %v4175 = vunpack.c.l.b16 %v3320
    %v4176 = vunpack.c.h.b16 %v3320
    %v4177 = vunpack.c.l.b16 %v3321
    %v4178 = vunpack.c.h.b16 %v3321
    %v4179 = vunpack.c.l.b16 %v3322
    %v4180 = vunpack.c.l.b16 %v3323
    %v4181 = vunpack.c.h.b16 %v3323
    %v4182 = vunpack.c.l.b16 %v3324
    %v4183 = vunpack.c.h.b16 %v3324
    %v4184 = vunpack.c.l.b16 %v3325
    %v4185 = vunpack.c.h.b16 %v3325
    %v4186 = vunpack.c.l.b16 %v3326
    %v4187 = vunpack.c.l.b16 %v3327
    %v4188 = vunpack.c.h.b16 %v3327
    %v4189 = vunpack.c.l.b16 %v3328
    %v4190 = vunpack.c.h.b16 %v3328
    %v4191 = vunpack.c.l.b16 %v3329
    %v4192 = vunpack.c.h.b16 %v3329
    %v4193 = vunpack.c.l.b16 %v3330
    %v4194 = vunpack.c.l.b16 %v3331
    %v4195 = vunpack.c.h.b16 %v3331
    %v4196 = vunpack.c.l.b16 %v3332
    %v4197 = vunpack.c.h.b16 %v3332
    %v4198 = vunpack.c.l.b16 %v3333
    %v4199 = vunpack.c.h.b16 %v3333
    %v4200 = vunpack.c.l.b16 %v3334
    %v4201 = vunpack.c.l.b16 %v3335
    %v4202 = vunpack.c.h.b16 %v3335
    %v4203 = vunpack.c.l.b16 %v3336
    %v4204 = vunpack.c.h.b16 %v3336
    %v4205 = vunpack.c.l.b16 %v3337
    %v4206 = vunpack.c.h.b16 %v3337
    %v4207 = vunpack.c.l.b16 %v3338
    %v4208 = vunpack.c.l.b16 %v3339
    %v4209 = vunpack.c.h.b16 %v3339
    %v4210 = vunpack.c.l.b16 %v3340
    %v4211 = vunpack.c.h.b16 %v3340
    %v4212 = vunpack.c.l.b16 %v3341
    %v4213 = vunpack.c.h.b16 %v3341
    %v4214 = vunpack.c.l.b16 %v3342
    %v4215 = vunpack.c.l.b16 %v3343
    %v4216 = vunpack.c.h.b16 %v3343
    %v4217 = vunpack.c.l.b16 %v3344
    %v4218 = vunpack.c.h.b16 %v3344
    %v4219 = vunpack.c.l.b16 %v3345
    %v4220 = vunpack.c.h.b16 %v3345
    %v4221 = vunpack.c.l.b16 %v3346
    %v4222 = vunpack.c.l.b16 %v3347
    %v4223 = vunpack.c.h.b16 %v3347
    %v4224 = vunpack.c.l.b16 %v3348
    %v4225 = vunpack.c.h.b16 %v3348
    %v4226 = vunpack.c.l.b16 %v3349
    %v4227 = vunpack.c.h.b16 %v3349
    %v4228 = vunpack.c.l.b16 %v3350
    %v4229 = vunpack.c.l.b16 %v3351
    %v4230 = vunpack.c.h.b16 %v3351
    %v4231 = vunpack.c.l.b16 %v3352
    %v4232 = vunpack.c.h.b16 %v3352
    %v4233 = vunpack.c.l.b16 %v3353
    %v4234 = vunpack.c.h.b16 %v3353
    %v4235 = vunpack.c.l.b16 %v3354
    %v4236 = vunpack.c.l.b16 %v3355
    %v4237 = vunpack.c.h.b16 %v3355
    %v4238 = vunpack.c.l.b16 %v3356
    %v4239 = vunpack.c.h.b16 %v3356
    %v4240 = vunpack.c.l.b16 %v3357
    %v4241 = vunpack.c.h.b16 %v3357
    %v4242 = vunpack.c.l.b16 %v3358
    %v4243 = vunpack.c.l.b16 %v3359
    %v4244 = vunpack.c.h.b16 %v3359
    %v4245 = vunpack.c.l.b16 %v3360
    %v4246 = vunpack.c.h.b16 %v3360
    %v4247 = vunpack.c.l.b16 %v3361
    %v4248 = vunpack.c.h.b16 %v3361
    %v4249 = vunpack.c.l.b16 %v3362
    %v4250 = vunpack.c.l.b16 %v3363
    %v4251 = vunpack.c.h.b16 %v3363
    %v4252 = vunpack.c.l.b16 %v3364
    %v4253 = vunpack.c.h.b16 %v3364
    %v4254 = vunpack.c.l.b16 %v3365
    %v4255 = vunpack.c.h.b16 %v3365
    %v4256 = vunpack.c.l.b16 %v3366
    %v4257 = vunpack.c.l.b16 %v3367
    %v4258 = vunpack.c.h.b16 %v3367
    %v4259 = vunpack.c.l.b16 %v3368
    %v4260 = vunpack.c.h.b16 %v3368
    %v4261 = vunpack.c.l.b16 %v3369
    %v4262 = vunpack.c.h.b16 %v3369
    %v4263 = vunpack.c.l.b16 %v3370
    %v4264 = vunpack.c.l.b16 %v3371
    %v4265 = vunpack.c.h.b16 %v3371
    %v4266 = vunpack.c.l.b16 %v3372
    %v4267 = vunpack.c.h.b16 %v3372
    %v4268 = vunpack.c.l.b16 %v3373
    %v4269 = vunpack.c.h.b16 %v3373
    %v4270 = vunpack.c.l.b16 %v3374
    %v4271 = vunpack.c.l.b16 %v3375
    %v4272 = vunpack.c.h.b16 %v3375
    %v4273 = vunpack.c.l.b16 %v3376
    %v4274 = vunpack.c.h.b16 %v3376
    %v4275 = vunpack.c.l.b16 %v3377
    %v4276 = vunpack.c.h.b16 %v3377
    %v4277 = vunpack.c.l.b16 %v3378
    %v4278 = vunpack.c.l.b16 %v3379
    %v4279 = vunpack.c.h.b16 %v3379
    %v4280 = vunpack.c.l.b16 %v3380
    %v4281 = vunpack.c.h.b16 %v3380
    %v4282 = vunpack.c.l.b16 %v3381
    %v4283 = vunpack.c.h.b16 %v3381
    %v4284 = vunpack.c.l.b16 %v3382
    %v4285 = vunpack.c.l.b16 %v3383
    %v4286 = vunpack.c.h.b16 %v3383
    %v4287 = vunpack.c.l.b16 %v3384
    %v4288 = vunpack.c.h.b16 %v3384
    %v4289 = vunpack.c.l.b16 %v3385
    %v4290 = vunpack.c.h.b16 %v3385
    %v4291 = vunpack.c.l.b16 %v3386
    %v4292 = vunpack.c.l.b16 %v3387
    %v4293 = vunpack.c.h.b16 %v3387
    %v4294 = vunpack.c.l.b16 %v3388
    %v4295 = vunpack.c.h.b16 %v3388
    %v4296 = vunpack.c.l.b16 %v3389
    %v4297 = vunpack.c.h.b16 %v3389
    %v4298 = vunpack.c.l.b16 %v3390
    %v4299 = vunpack.c.l.b16 %v3391
    %v4300 = vunpack.c.h.b16 %v3391
    %v4301 = vunpack.c.l.b16 %v3392
    %v4302 = vunpack.c.h.b16 %v3392
    %v4303 = vunpack.c.l.b16 %v3393
    %v4304 = vunpack.c.h.b16 %v3393
    %v4305 = vunpack.c.l.b16 %v3394
    %v4306 = vunpack.c.l.b16 %v3395
    %v4307 = vunpack.c.h.b16 %v3395
    %v4308 = vunpack.c.l.b16 %v3396
    %v4309 = vunpack.c.h.b16 %v3396
    %v4310 = vunpack.c.l.b16 %v3397
    %v4311 = vunpack.c.h.b16 %v3397
    %v4312 = vunpack.c.l.b16 %v3398
    %v4313 = vunpack.c.l.b16 %v3399
    %v4314 = vunpack.c.h.b16 %v3399
    %v4315 = vunpack.c.l.b16 %v3400
    %v4316 = vunpack.c.h.b16 %v3400
    %v4317 = vunpack.c.l.b16 %v3401
    %v4318 = vunpack.c.h.b16 %v3401
    %v4319 = vunpack.c.l.b16 %v3402
    %v4320 = vpack.c.b16 %v3767, %v3760
    %v4321 = vpack.c.b16 %v3768, %v3761
    %v4322 = vpack.c.b16 %v3769, %v3762
    %v4323 = vpack.c.b16 %v3770, %v3763
    %v4324 = vpack.c.b16 %v3771, %v3764
    %v4325 = vpack.c.b16 %v3772, %v3765
    %v4326 = vpack.c.b16 %v3773, %v3766
    %v4327 = vpack.c.b16 %v3781, %v3774
    %v4328 = vpack.c.b16 %v3782, %v3775
    %v4329 = vpack.c.b16 %v3783, %v3776
    %v4330 = vpack.c.b16 %v3784, %v3777
    %v4331 = vpack.c.b16 %v3785, %v3778
    %v4332 = vpack.c.b16 %v3786, %v3779
    %v4333 = vpack.c.b16 %v3787, %v3780
    %v4334 = vpack.c.b16 %v3795, %v3788
    %v4335 = vpack.c.b16 %v3796, %v3789
    %v4336 = vpack.c.b16 %v3797, %v3790
    %v4337 = vpack.c.b16 %v3798, %v3791
    %v4338 = vpack.c.b16 %v3799, %v3792
    %v4339 = vpack.c.b16 %v3800, %v3793
    %v4340 = vpack.c.b16 %v3801, %v3794
    %v4341 = vpack.c.b16 %v3809, %v3802
    %v4342 = vpack.c.b16 %v3810, %v3803
    %v4343 = vpack.c.b16 %v3811, %v3804
    %v4344 = vpack.c.b16 %v3812, %v3805
    %v4345 = vpack.c.b16 %v3813, %v3806
    %v4346 = vpack.c.b16 %v3814, %v3807
    %v4347 = vpack.c.b16 %v3815, %v3808
    %v4348 = vpack.c.b16 %v3823, %v3816
    %v4349 = vpack.c.b16 %v3824, %v3817
    %v4350 = vpack.c.b16 %v3825, %v3818
    %v4351 = vpack.c.b16 %v3826, %v3819
    %v4352 = vpack.c.b16 %v3827, %v3820
    %v4353 = vpack.c.b16 %v3828, %v3821
    %v4354 = vpack.c.b16 %v3829, %v3822
    %v4355 = vpack.c.b16 %v3837, %v3830
    %v4356 = vpack.c.b16 %v3838, %v3831
    %v4357 = vpack.c.b16 %v3839, %v3832
    %v4358 = vpack.c.b16 %v3840, %v3833
    %v4359 = vpack.c.b16 %v3841, %v3834
    %v4360 = vpack.c.b16 %v3842, %v3835
    %v4361 = vpack.c.b16 %v3843, %v3836
    %v4362 = vpack.c.b16 %v3851, %v3844
    %v4363 = vpack.c.b16 %v3852, %v3845
    %v4364 = vpack.c.b16 %v3853, %v3846
    %v4365 = vpack.c.b16 %v3854, %v3847
    %v4366 = vpack.c.b16 %v3855, %v3848
    %v4367 = vpack.c.b16 %v3856, %v3849
    %v4368 = vpack.c.b16 %v3857, %v3850
    %v4369 = vpack.c.b16 %v3865, %v3858
    %v4370 = vpack.c.b16 %v3866, %v3859
    %v4371 = vpack.c.b16 %v3867, %v3860
    %v4372 = vpack.c.b16 %v3868, %v3861
    %v4373 = vpack.c.b16 %v3869, %v3862
    %v4374 = vpack.c.b16 %v3870, %v3863
    %v4375 = vpack.c.b16 %v3871, %v3864
    %v4376 = vpack.c.b16 %v3879, %v3872
    %v4377 = vpack.c.b16 %v3880, %v3873
    %v4378 = vpack.c.b16 %v3881, %v3874
    %v4379 = vpack.c.b16 %v3882, %v3875
    %v4380 = vpack.c.b16 %v3883, %v3876
    %v4381 = vpack.c.b16 %v3884, %v3877
    %v4382 = vpack.c.b16 %v3885, %v3878
    %v4383 = vpack.c.b16 %v3893, %v3886
    %v4384 = vpack.c.b16 %v3894, %v3887
    %v4385 = vpack.c.b16 %v3895, %v3888
    %v4386 = vpack.c.b16 %v3896, %v3889
    %v4387 = vpack.c.b16 %v3897, %v3890
    %v4388 = vpack.c.b16 %v3898, %v3891
    %v4389 = vpack.c.b16 %v3899, %v3892
    %v4390 = vpack.c.b16 %v3907, %v3900
    %v4391 = vpack.c.b16 %v3908, %v3901
    %v4392 = vpack.c.b16 %v3909, %v3902
    %v4393 = vpack.c.b16 %v3910, %v3903
    %v4394 = vpack.c.b16 %v3911, %v3904
    %v4395 = vpack.c.b16 %v3912, %v3905
    %v4396 = vpack.c.b16 %v3913, %v3906
    %v4397 = vpack.c.b16 %v3921, %v3914
    %v4398 = vpack.c.b16 %v3922, %v3915
    %v4399 = vpack.c.b16 %v3923, %v3916
    %v4400 = vpack.c.b16 %v3924, %v3917
    %v4401 = vpack.c.b16 %v3925, %v3918
    %v4402 = vpack.c.b16 %v3926, %v3919
    %v4403 = vpack.c.b16 %v3927, %v3920
    %v4404 = vpack.c.b16 %v3935, %v3928
    %v4405 = vpack.c.b16 %v3936, %v3929
    %v4406 = vpack.c.b16 %v3937, %v3930
    %v4407 = vpack.c.b16 %v3938, %v3931
    %v4408 = vpack.c.b16 %v3939, %v3932
    %v4409 = vpack.c.b16 %v3940, %v3933
    %v4410 = vpack.c.b16 %v3941, %v3934
    %v4411 = vpack.c.b16 %v3949, %v3942
    %v4412 = vpack.c.b16 %v3950, %v3943
    %v4413 = vpack.c.b16 %v3951, %v3944
    %v4414 = vpack.c.b16 %v3952, %v3945
    %v4415 = vpack.c.b16 %v3953, %v3946
    %v4416 = vpack.c.b16 %v3954, %v3947
    %v4417 = vpack.c.b16 %v3955, %v3948
    %v4418 = vpack.c.b16 %v3963, %v3956
    %v4419 = vpack.c.b16 %v3964, %v3957
    %v4420 = vpack.c.b16 %v3965, %v3958
    %v4421 = vpack.c.b16 %v3966, %v3959
    %v4422 = vpack.c.b16 %v3967, %v3960
    %v4423 = vpack.c.b16 %v3968, %v3961
    %v4424 = vpack.c.b16 %v3969, %v3962
    %v4425 = vpack.c.b16 %v3977, %v3970
    %v4426 = vpack.c.b16 %v3978, %v3971
    %v4427 = vpack.c.b16 %v3979, %v3972
    %v4428 = vpack.c.b16 %v3980, %v3973
    %v4429 = vpack.c.b16 %v3981, %v3974
    %v4430 = vpack.c.b16 %v3982, %v3975
    %v4431 = vpack.c.b16 %v3983, %v3976
    %v4432 = vpack.c.b16 %v3991, %v3984
    %v4433 = vpack.c.b16 %v3992, %v3985
    %v4434 = vpack.c.b16 %v3993, %v3986
    %v4435 = vpack.c.b16 %v3994, %v3987
    %v4436 = vpack.c.b16 %v3995, %v3988
    %v4437 = vpack.c.b16 %v3996, %v3989
    %v4438 = vpack.c.b16 %v3997, %v3990
    %v4439 = vpack.c.b16 %v4005, %v3998
    %v4440 = vpack.c.b16 %v4006, %v3999
    %v4441 = vpack.c.b16 %v4007, %v4000
    %v4442 = vpack.c.b16 %v4008, %v4001
    %v4443 = vpack.c.b16 %v4009, %v4002
    %v4444 = vpack.c.b16 %v4010, %v4003
    %v4445 = vpack.c.b16 %v4011, %v4004
    %v4446 = vpack.c.b16 %v4019, %v4012
    %v4447 = vpack.c.b16 %v4020, %v4013
    %v4448 = vpack.c.b16 %v4021, %v4014
    %v4449 = vpack.c.b16 %v4022, %v4015
    %v4450 = vpack.c.b16 %v4023, %v4016
    %v4451 = vpack.c.b16 %v4024, %v4017
    %v4452 = vpack.c.b16 %v4025, %v4018
    %v4453 = vpack.c.b16 %v4033, %v4026
    %v4454 = vpack.c.b16 %v4034, %v4027
    %v4455 = vpack.c.b16 %v4035, %v4028
    %v4456 = vpack.c.b16 %v4036, %v4029
    %v4457 = vpack.c.b16 %v4037, %v4030
    %v4458 = vpack.c.b16 %v4038, %v4031
    %v4459 = vpack.c.b16 %v4039, %v4032
    %v4460 = vpack.c.b16 %v4047, %v4040
    %v4461 = vpack.c.b16 %v4048, %v4041
    %v4462 = vpack.c.b16 %v4049, %v4042
    %v4463 = vpack.c.b16 %v4050, %v4043
    %v4464 = vpack.c.b16 %v4051, %v4044
    %v4465 = vpack.c.b16 %v4052, %v4045
    %v4466 = vpack.c.b16 %v4053, %v4046
    %v4467 = vpack.c.b16 %v4061, %v4054
    %v4468 = vpack.c.b16 %v4062, %v4055
    %v4469 = vpack.c.b16 %v4063, %v4056
    %v4470 = vpack.c.b16 %v4064, %v4057
    %v4471 = vpack.c.b16 %v4065, %v4058
    %v4472 = vpack.c.b16 %v4066, %v4059
    %v4473 = vpack.c.b16 %v4067, %v4060
    %v4474 = vpack.c.b16 %v4075, %v4068
    %v4475 = vpack.c.b16 %v4076, %v4069
    %v4476 = vpack.c.b16 %v4077, %v4070
    %v4477 = vpack.c.b16 %v4078, %v4071
    %v4478 = vpack.c.b16 %v4079, %v4072
    %v4479 = vpack.c.b16 %v4080, %v4073
    %v4480 = vpack.c.b16 %v4081, %v4074
    %v4481 = vpack.c.b16 %v4089, %v4082
    %v4482 = vpack.c.b16 %v4090, %v4083
    %v4483 = vpack.c.b16 %v4091, %v4084
    %v4484 = vpack.c.b16 %v4092, %v4085
    %v4485 = vpack.c.b16 %v4093, %v4086
    %v4486 = vpack.c.b16 %v4094, %v4087
    %v4487 = vpack.c.b16 %v4095, %v4088
    %v4488 = vpack.c.b16 %v4103, %v4096
    %v4489 = vpack.c.b16 %v4104, %v4097
    %v4490 = vpack.c.b16 %v4105, %v4098
    %v4491 = vpack.c.b16 %v4106, %v4099
    %v4492 = vpack.c.b16 %v4107, %v4100
    %v4493 = vpack.c.b16 %v4108, %v4101
    %v4494 = vpack.c.b16 %v4109, %v4102
    %v4495 = vpack.c.b16 %v4117, %v4110
    %v4496 = vpack.c.b16 %v4118, %v4111
    %v4497 = vpack.c.b16 %v4119, %v4112
    %v4498 = vpack.c.b16 %v4120, %v4113
    %v4499 = vpack.c.b16 %v4121, %v4114
    %v4500 = vpack.c.b16 %v4122, %v4115
    %v4501 = vpack.c.b16 %v4123, %v4116
    %v4502 = vpack.c.b16 %v4131, %v4124
    %v4503 = vpack.c.b16 %v4132, %v4125
    %v4504 = vpack.c.b16 %v4133, %v4126
    %v4505 = vpack.c.b16 %v4134, %v4127
    %v4506 = vpack.c.b16 %v4135, %v4128
    %v4507 = vpack.c.b16 %v4136, %v4129
    %v4508 = vpack.c.b16 %v4137, %v4130
    %v4509 = vpack.c.b16 %v4145, %v4138
    %v4510 = vpack.c.b16 %v4146, %v4139
    %v4511 = vpack.c.b16 %v4147, %v4140
    %v4512 = vpack.c.b16 %v4148, %v4141
    %v4513 = vpack.c.b16 %v4149, %v4142
    %v4514 = vpack.c.b16 %v4150, %v4143
    %v4515 = vpack.c.b16 %v4151, %v4144
    %v4516 = vpack.c.b16 %v4159, %v4152
    %v4517 = vpack.c.b16 %v4160, %v4153
    %v4518 = vpack.c.b16 %v4161, %v4154
    %v4519 = vpack.c.b16 %v4162, %v4155
    %v4520 = vpack.c.b16 %v4163, %v4156
    %v4521 = vpack.c.b16 %v4164, %v4157
    %v4522 = vpack.c.b16 %v4165, %v4158
    %v4523 = vpack.c.b16 %v4173, %v4166
    %v4524 = vpack.c.b16 %v4174, %v4167
    %v4525 = vpack.c.b16 %v4175, %v4168
    %v4526 = vpack.c.b16 %v4176, %v4169
    %v4527 = vpack.c.b16 %v4177, %v4170
    %v4528 = vpack.c.b16 %v4178, %v4171
    %v4529 = vpack.c.b16 %v4179, %v4172
    %v4530 = vpack.c.b16 %v4187, %v4180
    %v4531 = vpack.c.b16 %v4188, %v4181
    %v4532 = vpack.c.b16 %v4189, %v4182
    %v4533 = vpack.c.b16 %v4190, %v4183
    %v4534 = vpack.c.b16 %v4191, %v4184
    %v4535 = vpack.c.b16 %v4192, %v4185
    %v4536 = vpack.c.b16 %v4193, %v4186
    %v4537 = vpack.c.b16 %v4201, %v4194
    %v4538 = vpack.c.b16 %v4202, %v4195
    %v4539 = vpack.c.b16 %v4203, %v4196
    %v4540 = vpack.c.b16 %v4204, %v4197
    %v4541 = vpack.c.b16 %v4205, %v4198
    %v4542 = vpack.c.b16 %v4206, %v4199
    %v4543 = vpack.c.b16 %v4207, %v4200
    %v4544 = vpack.c.b16 %v4215, %v4208
    %v4545 = vpack.c.b16 %v4216, %v4209
    %v4546 = vpack.c.b16 %v4217, %v4210
    %v4547 = vpack.c.b16 %v4218, %v4211
    %v4548 = vpack.c.b16 %v4219, %v4212
    %v4549 = vpack.c.b16 %v4220, %v4213
    %v4550 = vpack.c.b16 %v4221, %v4214
    %v4551 = vpack.c.b16 %v4229, %v4222
    %v4552 = vpack.c.b16 %v4230, %v4223
    %v4553 = vpack.c.b16 %v4231, %v4224
    %v4554 = vpack.c.b16 %v4232, %v4225
    %v4555 = vpack.c.b16 %v4233, %v4226
    %v4556 = vpack.c.b16 %v4234, %v4227
    %v4557 = vpack.c.b16 %v4235, %v4228
    %v4558 = vpack.c.b16 %v4243, %v4236
    %v4559 = vpack.c.b16 %v4244, %v4237
    %v4560 = vpack.c.b16 %v4245, %v4238
    %v4561 = vpack.c.b16 %v4246, %v4239
    %v4562 = vpack.c.b16 %v4247, %v4240
    %v4563 = vpack.c.b16 %v4248, %v4241
    %v4564 = vpack.c.b16 %v4249, %v4242
    %v4565 = vpack.c.b16 %v4257, %v4250
    %v4566 = vpack.c.b16 %v4258, %v4251
    %v4567 = vpack.c.b16 %v4259, %v4252
    %v4568 = vpack.c.b16 %v4260, %v4253
    %v4569 = vpack.c.b16 %v4261, %v4254
    %v4570 = vpack.c.b16 %v4262, %v4255
    %v4571 = vpack.c.b16 %v4263, %v4256
    %v4572 = vpack.c.b16 %v4271, %v4264
    %v4573 = vpack.c.b16 %v4272, %v4265
    %v4574 = vpack.c.b16 %v4273, %v4266
    %v4575 = vpack.c.b16 %v4274, %v4267
    %v4576 = vpack.c.b16 %v4275, %v4268
    %v4577 = vpack.c.b16 %v4276, %v4269
    %v4578 = vpack.c.b16 %v4277, %v4270
    %v4579 = vpack.c.b16 %v4285, %v4278
    %v4580 = vpack.c.b16 %v4286, %v4279
    %v4581 = vpack.c.b16 %v4287, %v4280
    %v4582 = vpack.c.b16 %v4288, %v4281
    %v4583 = vpack.c.b16 %v4289, %v4282
    %v4584 = vpack.c.b16 %v4290, %v4283
    %v4585 = vpack.c.b16 %v4291, %v4284
    %v4586 = vpack.c.b16 %v4299, %v4292
    %v4587 = vpack.c.b16 %v4300, %v4293
    %v4588 = vpack.c.b16 %v4301, %v4294
    %v4589 = vpack.c.b16 %v4302, %v4295
    %v4590 = vpack.c.b16 %v4303, %v4296
    %v4591 = vpack.c.b16 %v4304, %v4297
    %v4592 = vpack.c.b16 %v4305, %v4298
    %v4593 = vpack.c.b16 %v4313, %v4306
    %v4594 = vpack.c.b16 %v4314, %v4307
    %v4595 = vpack.c.b16 %v4315, %v4308
    %v4596 = vpack.c.b16 %v4316, %v4309
    %v4597 = vpack.c.b16 %v4317, %v4310
    %v4598 = vpack.c.b16 %v4318, %v4311
    %v4599 = vpack.c.b16 %v4319, %v4312
    %4880 = vmatprep.subr.bf16.mxu0 %v4321
    %4881 = vmatpush1.bf16.msra.mxu0 %v4320
    %4882 = vmatprep.subr.bf16.mxu0 %v4328
    %4883 = vmatpush1.bf16.msra.mxu0 %v4327
    %4884 = vmatprep.subr.bf16.mxu0 %v4335
    %4885 = vmatpush1.bf16.msra.mxu0 %v4334
    %4886 = vmatprep.subr.bf16.mxu0 %v4342
    %4887 = vmatpush1.bf16.msra.mxu0 %v4341
    %4888 = vmatprep.subr.bf16.mxu0 %v4349
    %4889 = vmatpush1.bf16.msra.mxu0 %v4348
    %4890 = vmatprep.subr.bf16.mxu0 %v4356
    %4891 = vmatpush1.bf16.msra.mxu0 %v4355
    %4892 = vmatprep.subr.bf16.mxu0 %v4363
    %4893 = vmatpush1.bf16.msra.mxu0 %v4362
    %4894 = vmatprep.subr.bf16.mxu0 %v4370
    %4895 = vmatpush1.bf16.msra.mxu0 %v4369
    %4896 = vmatprep.subr.bf16.mxu0 %v4377
    %4897 = vmatpush1.bf16.msra.mxu0 %v4376
    %4898 = vmatprep.subr.bf16.mxu0 %v4384
    %4899 = vmatpush1.bf16.msra.mxu0 %v4383
    %4900 = vmatprep.subr.bf16.mxu0 %v4391
    %4901 = vmatpush1.bf16.msra.mxu0 %v4390
    %4902 = vmatprep.subr.bf16.mxu0 %v4398
    %4903 = vmatpush1.bf16.msra.mxu0 %v4397
    %4904 = vmatprep.subr.bf16.mxu0 %v4405
    %4905 = vmatpush1.bf16.msra.mxu0 %v4404
    %4906 = vmatprep.subr.bf16.mxu0 %v4412
    %4907 = vmatpush1.bf16.msra.mxu0 %v4411
    %4908 = vmatprep.subr.bf16.mxu0 %v4419
    %4909 = vmatpush1.bf16.msra.mxu0 %v4418
    %4910 = vmatprep.subr.bf16.mxu0 %v4426
    %4911 = vmatpush1.bf16.msra.mxu0 %v4425
    %4912 = vmatprep.mubr.bf16.mxu0 %v3079
    %4913 = vmatmul.mubr.bf16.gmra.mrb[0].mxu0 %v3078
    %v4914 = vpop.f32.mrb[0].mxu0
    %v4915 = vadd.f32 %v3408, %v4914
    %v4916 = vpop.f32.mrb[0].mxu0
    %v4917 = vadd.f32 %v3412, %v4916
    %v4918 = vpop.f32.mrb[0].mxu0
    %v4919 = vadd.f32 %v3408, %v4918
    %v4920 = vpop.f32.mrb[0].mxu0
    %v4921 = vadd.f32 %v3412, %v4920
    %4922 = vdwg.mxu0
    %4923 = vmatprep.subr.bf16.mxu0 %v4433
    %4924 = vmatpush1.bf16.msra.mxu0 %v4432
    %4925 = vmatprep.subr.bf16.mxu0 %v4440
    %4926 = vmatpush1.bf16.msra.mxu0 %v4439
    %4927 = vmatprep.subr.bf16.mxu0 %v4447
    %4928 = vmatpush1.bf16.msra.mxu0 %v4446
    %4929 = vmatprep.subr.bf16.mxu0 %v4454
    %4930 = vmatpush1.bf16.msra.mxu0 %v4453
    %4931 = vmatprep.subr.bf16.mxu0 %v4461
    %4932 = vmatpush1.bf16.msra.mxu0 %v4460
    %4933 = vmatprep.subr.bf16.mxu0 %v4468
    %4934 = vmatpush1.bf16.msra.mxu0 %v4467
    %4935 = vmatprep.subr.bf16.mxu0 %v4475
    %4936 = vmatpush1.bf16.msra.mxu0 %v4474
    %4937 = vmatprep.subr.bf16.mxu0 %v4482
    %4938 = vmatpush1.bf16.msra.mxu0 %v4481
    %4939 = vmatprep.subr.bf16.mxu0 %v4489
    %4940 = vmatpush1.bf16.msra.mxu0 %v4488
    %4941 = vmatprep.subr.bf16.mxu0 %v4496
    %4942 = vmatpush1.bf16.msra.mxu0 %v4495
    %4943 = vmatprep.subr.bf16.mxu0 %v4503
    %4944 = vmatpush1.bf16.msra.mxu0 %v4502
    %4945 = vmatprep.subr.bf16.mxu0 %v4510
    %4946 = vmatpush1.bf16.msra.mxu0 %v4509
    %4947 = vmatprep.subr.bf16.mxu0 %v4517
    %4948 = vmatpush1.bf16.msra.mxu0 %v4516
    %4949 = vmatprep.subr.bf16.mxu0 %v4524
    %4950 = vmatpush1.bf16.msra.mxu0 %v4523
    %4951 = vmatprep.subr.bf16.mxu0 %v4531
    %4952 = vmatpush1.bf16.msra.mxu0 %v4530
    %4953 = vmatprep.subr.bf16.mxu0 %v4538
    %4954 = vmatpush1.bf16.msra.mxu0 %v4537
    %4955 = vmatprep.mubr.bf16.mxu0 %v3081
    %4956 = vmatmul.mubr.bf16.gmra.mrb[0].mxu0 %v3080
    %v4957 = vpop.f32.mrb[0].mxu0
    %v4958 = vadd.f32 %v4915, %v4957
    %v4959 = vpop.f32.mrb[0].mxu0
    %v4960 = vadd.f32 %v4917, %v4959
    %v4961 = vpop.f32.mrb[0].mxu0
    %v4962 = vadd.f32 %v4919, %v4961
    %v4963 = vpop.f32.mrb[0].mxu0
    %v4964 = vadd.f32 %v4921, %v4963
    %4965 = vdwg.mxu0
    %4966 = vmatprep.subr.bf16.mxu0 %v4545
    %4967 = vmatpush1.bf16.msra.mxu0 %v4544
    %4968 = vmatprep.subr.bf16.mxu0 %v4552
    %4969 = vmatpush1.bf16.msra.mxu0 %v4551
    %4970 = vmatprep.subr.bf16.mxu0 %v4559
    %4971 = vmatpush1.bf16.msra.mxu0 %v4558
    %4972 = vmatprep.subr.bf16.mxu0 %v4566
    %4973 = vmatpush1.bf16.msra.mxu0 %v4565
    %4974 = vmatprep.subr.bf16.mxu0 %v4573
    %4975 = vmatpush1.bf16.msra.mxu0 %v4572
    %4976 = vmatprep.subr.bf16.mxu0 %v4580
    %4977 = vmatpush1.bf16.msra.mxu0 %v4579
    %4978 = vmatprep.subr.bf16.mxu0 %v4587
    %4979 = vmatpush1.bf16.msra.mxu0 %v4586
    %4980 = vmatprep.subr.bf16.mxu0 %v4594
    %4981 = vmatpush1.bf16.msra.mxu0 %v4593
    %4982 = vmatprep.subr.bf16.mxu0 0
    %4983 = vmatpush1.bf16.msra.mxu0 0
    %4984 = vmatprep.subr.bf16.mxu0 0
    %4985 = vmatpush1.bf16.msra.mxu0 0
    %4986 = vmatprep.subr.bf16.mxu0 0
    %4987 = vmatpush1.bf16.msra.mxu0 0
    %4988 = vmatprep.subr.bf16.mxu0 0
    %4989 = vmatpush1.bf16.msra.mxu0 0
    %4990 = vmatprep.subr.bf16.mxu0 0
    %4991 = vmatpush1.bf16.msra.mxu0 0
    %4992 = vmatprep.subr.bf16.mxu0 0
    %4993 = vmatpush1.bf16.msra.mxu0 0
    %4994 = vmatprep.subr.bf16.mxu0 0
    %4995 = vmatpush1.bf16.msra.mxu0 0
    %4996 = vmatprep.subr.bf16.mxu0 0
    %4997 = vmatpush1.bf16.msra.mxu0 0
    %4998 = vmatprep.mubr.bf16.mxu0 0
    %4999 = vmatmul.mubr.bf16.gmra.mrb[0].mxu0 %v3082
    %v5000 = vpop.f32.mrb[0].mxu0
    %v5001 = vadd.f32 %v4958, %v5000
    %v5002 = vpop.f32.mrb[0].mxu0
    %v5003 = vadd.f32 %v4960, %v5002
    %v5004 = vpop.f32.mrb[0].mxu0
    %v5005 = vadd.f32 %v4962, %v5004
    %v5006 = vpop.f32.mrb[0].mxu0
    %v5007 = vadd.f32 %v4964, %v5006
    %5008 = vdwg.mxu0
    %5009 = vmatprep.subr.bf16.mxu0 %v4323
    %5010 = vmatpush1.bf16.msra.mxu0 %v4322
    %5011 = vmatprep.subr.bf16.mxu0 %v4330
    %5012 = vmatpush1.bf16.msra.mxu0 %v4329
    %5013 = vmatprep.subr.bf16.mxu0 %v4337
    %5014 = vmatpush1.bf16.msra.mxu0 %v4336
    %5015 = vmatprep.subr.bf16.mxu0 %v4344
    %5016 = vmatpush1.bf16.msra.mxu0 %v4343
    %5017 = vmatprep.subr.bf16.mxu0 %v4351
    %5018 = vmatpush1.bf16.msra.mxu0 %v4350
    %5019 = vmatprep.subr.bf16.mxu0 %v4358
    %5020 = vmatpush1.bf16.msra.mxu0 %v4357
    %5021 = vmatprep.subr.bf16.mxu0 %v4365
    %5022 = vmatpush1.bf16.msra.mxu0 %v4364
    %5023 = vmatprep.subr.bf16.mxu0 %v4372
    %5024 = vmatpush1.bf16.msra.mxu0 %v4371
    %5025 = vmatprep.subr.bf16.mxu0 %v4379
    %5026 = vmatpush1.bf16.msra.mxu0 %v4378
    %5027 = vmatprep.subr.bf16.mxu0 %v4386
    %5028 = vmatpush1.bf16.msra.mxu0 %v4385
    %5029 = vmatprep.subr.bf16.mxu0 %v4393
    %5030 = vmatpush1.bf16.msra.mxu0 %v4392
    %5031 = vmatprep.subr.bf16.mxu0 %v4400
    %5032 = vmatpush1.bf16.msra.mxu0 %v4399
    %5033 = vmatprep.subr.bf16.mxu0 %v4407
    %5034 = vmatpush1.bf16.msra.mxu0 %v4406
    %5035 = vmatprep.subr.bf16.mxu0 %v4414
    %5036 = vmatpush1.bf16.msra.mxu0 %v4413
    %5037 = vmatprep.subr.bf16.mxu0 %v4421
    %5038 = vmatpush1.bf16.msra.mxu0 %v4420
    %5039 = vmatprep.subr.bf16.mxu0 %v4428
    %5040 = vmatpush1.bf16.msra.mxu0 %v4427
    %5041 = vmatprep.mubr.bf16.mxu0 %v3079
    %5042 = vmatmul.mubr.bf16.gmra.mrb[0].mxu0 %v3078
    %v5043 = vpop.f32.mrb[0].mxu0
    %v5044 = vadd.f32 %v3416, %v5043
    %v5045 = vpop.f32.mrb[0].mxu0
    %v5046 = vadd.f32 %v3420, %v5045
    %v5047 = vpop.f32.mrb[0].mxu0
    %v5048 = vadd.f32 %v3416, %v5047
    %v5049 = vpop.f32.mrb[0].mxu0
    %v5050 = vadd.f32 %v3420, %v5049
    %5051 = vdwg.mxu0
    %5052 = vmatprep.subr.bf16.mxu0 %v4435
    %5053 = vmatpush1.bf16.msra.mxu0 %v4434
    %5054 = vmatprep.subr.bf16.mxu0 %v4442
    %5055 = vmatpush1.bf16.msra.mxu0 %v4441
    %5056 = vmatprep.subr.bf16.mxu0 %v4449
    %5057 = vmatpush1.bf16.msra.mxu0 %v4448
    %5058 = vmatprep.subr.bf16.mxu0 %v4456
    %5059 = vmatpush1.bf16.msra.mxu0 %v4455
    %5060 = vmatprep.subr.bf16.mxu0 %v4463
    %5061 = vmatpush1.bf16.msra.mxu0 %v4462
    %5062 = vmatprep.subr.bf16.mxu0 %v4470
    %5063 = vmatpush1.bf16.msra.mxu0 %v4469
    %5064 = vmatprep.subr.bf16.mxu0 %v4477
    %5065 = vmatpush1.bf16.msra.mxu0 %v4476
    %5066 = vmatprep.subr.bf16.mxu0 %v4484
    %5067 = vmatpush1.bf16.msra.mxu0 %v4483
    %5068 = vmatprep.subr.bf16.mxu0 %v4491
    %5069 = vmatpush1.bf16.msra.mxu0 %v4490
    %5070 = vmatprep.subr.bf16.mxu0 %v4498
    %5071 = vmatpush1.bf16.msra.mxu0 %v4497
    %5072 = vmatprep.subr.bf16.mxu0 %v4505
    %5073 = vmatpush1.bf16.msra.mxu0 %v4504
    %5074 = vmatprep.subr.bf16.mxu0 %v4512
    %5075 = vmatpush1.bf16.msra.mxu0 %v4511
    %5076 = vmatprep.subr.bf16.mxu0 %v4519
    %5077 = vmatpush1.bf16.msra.mxu0 %v4518
    %5078 = vmatprep.subr.bf16.mxu0 %v4526
    %5079 = vmatpush1.bf16.msra.mxu0 %v4525
    %5080 = vmatprep.subr.bf16.mxu0 %v4533
    %5081 = vmatpush1.bf16.msra.mxu0 %v4532
    %5082 = vmatprep.subr.bf16.mxu0 %v4540
    %5083 = vmatpush1.bf16.msra.mxu0 %v4539
    %5084 = vmatprep.mubr.bf16.mxu0 %v3081
    %5085 = vmatmul.mubr.bf16.gmra.mrb[0].mxu0 %v3080
    %v5086 = vpop.f32.mrb[0].mxu0
    %v5087 = vadd.f32 %v5044, %v5086
    %v5088 = vpop.f32.mrb[0].mxu0
    %v5089 = vadd.f32 %v5046, %v5088
    %v5090 = vpop.f32.mrb[0].mxu0
    %v5091 = vadd.f32 %v5048, %v5090
    %v5092 = vpop.f32.mrb[0].mxu0
    %v5093 = vadd.f32 %v5050, %v5092
    %5094 = vdwg.mxu0
    %5095 = vmatprep.subr.bf16.mxu0 %v4547
    %5096 = vmatpush1.bf16.msra.mxu0 %v4546
    %5097 = vmatprep.subr.bf16.mxu0 %v4554
    %5098 = vmatpush1.bf16.msra.mxu0 %v4553
    %5099 = vmatprep.subr.bf16.mxu0 %v4561
    %5100 = vmatpush1.bf16.msra.mxu0 %v4560
    %5101 = vmatprep.subr.bf16.mxu0 %v4568
    %5102 = vmatpush1.bf16.msra.mxu0 %v4567
    %5103 = vmatprep.subr.bf16.mxu0 %v4575
    %5104 = vmatpush1.bf16.msra.mxu0 %v4574
    %5105 = vmatprep.subr.bf16.mxu0 %v4582
    %5106 = vmatpush1.bf16.msra.mxu0 %v4581
    %5107 = vmatprep.subr.bf16.mxu0 %v4589
    %5108 = vmatpush1.bf16.msra.mxu0 %v4588
    %5109 = vmatprep.subr.bf16.mxu0 %v4596
    %5110 = vmatpush1.bf16.msra.mxu0 %v4595
    %5111 = vmatprep.subr.bf16.mxu0 0
    %5112 = vmatpush1.bf16.msra.mxu0 0
    %5113 = vmatprep.subr.bf16.mxu0 0
    %5114 = vmatpush1.bf16.msra.mxu0 0
    %5115 = vmatprep.subr.bf16.mxu0 0
    %5116 = vmatpush1.bf16.msra.mxu0 0
    %5117 = vmatprep.subr.bf16.mxu0 0
    %5118 = vmatpush1.bf16.msra.mxu0 0
    %5119 = vmatprep.subr.bf16.mxu0 0
    %5120 = vmatpush1.bf16.msra.mxu0 0
    %5121 = vmatprep.subr.bf16.mxu0 0
    %5122 = vmatpush1.bf16.msra.mxu0 0
    %5123 = vmatprep.subr.bf16.mxu0 0
    %5124 = vmatpush1.bf16.msra.mxu0 0
    %5125 = vmatprep.subr.bf16.mxu0 0
    %5126 = vmatpush1.bf16.msra.mxu0 0
    %5127 = vmatprep.mubr.bf16.mxu0 0
    %5128 = vmatmul.mubr.bf16.gmra.mrb[0].mxu0 %v3082
    %v5129 = vpop.f32.mrb[0].mxu0
    %v5130 = vadd.f32 %v5087, %v5129
    %v5131 = vpop.f32.mrb[0].mxu0
    %v5132 = vadd.f32 %v5089, %v5131
    %v5133 = vpop.f32.mrb[0].mxu0
    %v5134 = vadd.f32 %v5091, %v5133
    %v5135 = vpop.f32.mrb[0].mxu0
    %v5136 = vadd.f32 %v5093, %v5135
    %5137 = vdwg.mxu0
    %5138 = vmatprep.subr.bf16.mxu0 %v4325
    %5139 = vmatpush1.bf16.msra.mxu0 %v4324
    %5140 = vmatprep.subr.bf16.mxu0 %v4332
    %5141 = vmatpush1.bf16.msra.mxu0 %v4331
    %5142 = vmatprep.subr.bf16.mxu0 %v4339
    %5143 = vmatpush1.bf16.msra.mxu0 %v4338
    %5144 = vmatprep.subr.bf16.mxu0 %v4346
    %5145 = vmatpush1.bf16.msra.mxu0 %v4345
    %5146 = vmatprep.subr.bf16.mxu0 %v4353
    %5147 = vmatpush1.bf16.msra.mxu0 %v4352
    %5148 = vmatprep.subr.bf16.mxu0 %v4360
    %5149 = vmatpush1.bf16.msra.mxu0 %v4359
    %5150 = vmatprep.subr.bf16.mxu0 %v4367
    %5151 = vmatpush1.bf16.msra.mxu0 %v4366
    %5152 = vmatprep.subr.bf16.mxu0 %v4374
    %5153 = vmatpush1.bf16.msra.mxu0 %v4373
    %5154 = vmatprep.subr.bf16.mxu0 %v4381
    %5155 = vmatpush1.bf16.msra.mxu0 %v4380
    %5156 = vmatprep.subr.bf16.mxu0 %v4388
    %5157 = vmatpush1.bf16.msra.mxu0 %v4387
    %5158 = vmatprep.subr.bf16.mxu0 %v4395
    %5159 = vmatpush1.bf16.msra.mxu0 %v4394
    %5160 = vmatprep.subr.bf16.mxu0 %v4402
    %5161 = vmatpush1.bf16.msra.mxu0 %v4401
    %5162 = vmatprep.subr.bf16.mxu0 %v4409
    %5163 = vmatpush1.bf16.msra.mxu0 %v4408
    %5164 = vmatprep.subr.bf16.mxu0 %v4416
    %5165 = vmatpush1.bf16.msra.mxu0 %v4415
    %5166 = vmatprep.subr.bf16.mxu0 %v4423
    %5167 = vmatpush1.bf16.msra.mxu0 %v4422
    %5168 = vmatprep.subr.bf16.mxu0 %v4430
    %5169 = vmatpush1.bf16.msra.mxu0 %v4429
    %5170 = vmatprep.mubr.bf16.mxu0 %v3079
    %5171 = vmatmul.mubr.bf16.gmra.mrb[0].mxu0 %v3078
    %v5172 = vpop.f32.mrb[0].mxu0
    %v5173 = vadd.f32 %v3424, %v5172
    %v5174 = vpop.f32.mrb[0].mxu0
    %v5175 = vadd.f32 %v3428, %v5174
    %v5176 = vpop.f32.mrb[0].mxu0
    %v5177 = vadd.f32 %v3424, %v5176
    %v5178 = vpop.f32.mrb[0].mxu0
    %v5179 = vadd.f32 %v3428, %v5178
    %5180 = vdwg.mxu0
    %5181 = vmatprep.subr.bf16.mxu0 %v4437
    %5182 = vmatpush1.bf16.msra.mxu0 %v4436
    %5183 = vmatprep.subr.bf16.mxu0 %v4444
    %5184 = vmatpush1.bf16.msra.mxu0 %v4443
    %5185 = vmatprep.subr.bf16.mxu0 %v4451
    %5186 = vmatpush1.bf16.msra.mxu0 %v4450
    %5187 = vmatprep.subr.bf16.mxu0 %v4458
    %5188 = vmatpush1.bf16.msra.mxu0 %v4457
    %5189 = vmatprep.subr.bf16.mxu0 %v4465
    %5190 = vmatpush1.bf16.msra.mxu0 %v4464
    %5191 = vmatprep.subr.bf16.mxu0 %v4472
    %5192 = vmatpush1.bf16.msra.mxu0 %v4471
    %5193 = vmatprep.subr.bf16.mxu0 %v4479
    %5194 = vmatpush1.bf16.msra.mxu0 %v4478
    %5195 = vmatprep.subr.bf16.mxu0 %v4486
    %5196 = vmatpush1.bf16.msra.mxu0 %v4485
    %5197 = vmatprep.subr.bf16.mxu0 %v4493
    %5198 = vmatpush1.bf16.msra.mxu0 %v4492
    %5199 = vmatprep.subr.bf16.mxu0 %v4500
    %5200 = vmatpush1.bf16.msra.mxu0 %v4499
    %5201 = vmatprep.subr.bf16.mxu0 %v4507
    %5202 = vmatpush1.bf16.msra.mxu0 %v4506
    %5203 = vmatprep.subr.bf16.mxu0 %v4514
    %5204 = vmatpush1.bf16.msra.mxu0 %v4513
    %5205 = vmatprep.subr.bf16.mxu0 %v4521
    %5206 = vmatpush1.bf16.msra.mxu0 %v4520
    %5207 = vmatprep.subr.bf16.mxu0 %v4528
    %5208 = vmatpush1.bf16.msra.mxu0 %v4527
    %5209 = vmatprep.subr.bf16.mxu0 %v4535
    %5210 = vmatpush1.bf16.msra.mxu0 %v4534
    %5211 = vmatprep.subr.bf16.mxu0 %v4542
    %5212 = vmatpush1.bf16.msra.mxu0 %v4541
    %5213 = vmatprep.mubr.bf16.mxu0 %v3081
    %5214 = vmatmul.mubr.bf16.gmra.mrb[0].mxu0 %v3080
    %v5215 = vpop.f32.mrb[0].mxu0
    %v5216 = vadd.f32 %v5173, %v5215
    %v5217 = vpop.f32.mrb[0].mxu0
    %v5218 = vadd.f32 %v5175, %v5217
    %v5219 = vpop.f32.mrb[0].mxu0
    %v5220 = vadd.f32 %v5177, %v5219
    %v5221 = vpop.f32.mrb[0].mxu0
    %v5222 = vadd.f32 %v5179, %v5221
    %5223 = vdwg.mxu0
    %5224 = vmatprep.subr.bf16.mxu0 %v4549
    %5225 = vmatpush1.bf16.msra.mxu0 %v4548
    %5226 = vmatprep.subr.bf16.mxu0 %v4556
    %5227 = vmatpush1.bf16.msra.mxu0 %v4555
    %5228 = vmatprep.subr.bf16.mxu0 %v4563
    %5229 = vmatpush1.bf16.msra.mxu0 %v4562
    %5230 = vmatprep.subr.bf16.mxu0 %v4570
    %5231 = vmatpush1.bf16.msra.mxu0 %v4569
    %5232 = vmatprep.subr.bf16.mxu0 %v4577
    %5233 = vmatpush1.bf16.msra.mxu0 %v4576
    %5234 = vmatprep.subr.bf16.mxu0 %v4584
    %5235 = vmatpush1.bf16.msra.mxu0 %v4583
    %5236 = vmatprep.subr.bf16.mxu0 %v4591
    %5237 = vmatpush1.bf16.msra.mxu0 %v4590
    %5238 = vmatprep.subr.bf16.mxu0 %v4598
    %5239 = vmatpush1.bf16.msra.mxu0 %v4597
    %5240 = vmatprep.subr.bf16.mxu0 0
    %5241 = vmatpush1.bf16.msra.mxu0 0
    %5242 = vmatprep.subr.bf16.mxu0 0
    %5243 = vmatpush1.bf16.msra.mxu0 0
    %5244 = vmatprep.subr.bf16.mxu0 0
    %5245 = vmatpush1.bf16.msra.mxu0 0
    %5246 = vmatprep.subr.bf16.mxu0 0
    %5247 = vmatpush1.bf16.msra.mxu0 0
    %5248 = vmatprep.subr.bf16.mxu0 0
    %5249 = vmatpush1.bf16.msra.mxu0 0
    %5250 = vmatprep.subr.bf16.mxu0 0
    %5251 = vmatpush1.bf16.msra.mxu0 0
    %5252 = vmatprep.subr.bf16.mxu0 0
    %5253 = vmatpush1.bf16.msra.mxu0 0
    %5254 = vmatprep.subr.bf16.mxu0 0
    %5255 = vmatpush1.bf16.msra.mxu0 0
    %5256 = vmatprep.mubr.bf16.mxu0 0
    %5257 = vmatmul.mubr.bf16.gmra.mrb[0].mxu0 %v3082
    %v5258 = vpop.f32.mrb[0].mxu0
    %v5259 = vadd.f32 %v5216, %v5258
    %v5260 = vpop.f32.mrb[0].mxu0
    %v5261 = vadd.f32 %v5218, %v5260
    %v5262 = vpop.f32.mrb[0].mxu0
    %v5263 = vadd.f32 %v5220, %v5262
    %v5264 = vpop.f32.mrb[0].mxu0
    %v5265 = vadd.f32 %v5222, %v5264
    %5266 = vdwg.mxu0
    %5267 = vmatprep.subr.bf16.mxu0 0
    %5268 = vmatpush1.bf16.msra.mxu0 %v4326
    %5269 = vmatprep.subr.bf16.mxu0 0
    %5270 = vmatpush1.bf16.msra.mxu0 %v4333
    %5271 = vmatprep.subr.bf16.mxu0 0
    %5272 = vmatpush1.bf16.msra.mxu0 %v4340
    %5273 = vmatprep.subr.bf16.mxu0 0
    %5274 = vmatpush1.bf16.msra.mxu0 %v4347
    %5275 = vmatprep.subr.bf16.mxu0 0
    %5276 = vmatpush1.bf16.msra.mxu0 %v4354
    %5277 = vmatprep.subr.bf16.mxu0 0
    %5278 = vmatpush1.bf16.msra.mxu0 %v4361
    %5279 = vmatprep.subr.bf16.mxu0 0
    %5280 = vmatpush1.bf16.msra.mxu0 %v4368
    %5281 = vmatprep.subr.bf16.mxu0 0
    %5282 = vmatpush1.bf16.msra.mxu0 %v4375
    %5283 = vmatprep.subr.bf16.mxu0 0
    %5284 = vmatpush1.bf16.msra.mxu0 %v4382
    %5285 = vmatprep.subr.bf16.mxu0 0
    %5286 = vmatpush1.bf16.msra.mxu0 %v4389
    %5287 = vmatprep.subr.bf16.mxu0 0
    %5288 = vmatpush1.bf16.msra.mxu0 %v4396
    %5289 = vmatprep.subr.bf16.mxu0 0
    %5290 = vmatpush1.bf16.msra.mxu0 %v4403
    %5291 = vmatprep.subr.bf16.mxu0 0
    %5292 = vmatpush1.bf16.msra.mxu0 %v4410
    %5293 = vmatprep.subr.bf16.mxu0 0
    %5294 = vmatpush1.bf16.msra.mxu0 %v4417
    %5295 = vmatprep.subr.bf16.mxu0 0
    %5296 = vmatpush1.bf16.msra.mxu0 %v4424
    %5297 = vmatprep.subr.bf16.mxu0 0
    %5298 = vmatpush1.bf16.msra.mxu0 %v4431
    %5299 = vmatprep.mubr.bf16.mxu0 %v3079
    %5300 = vmatmul.mubr.bf16.gmra.mrb[0].mxu0 %v3078
    %v5301 = vpop.f32.mrb[0].mxu0
    %v5302 = vadd.f32 %v3432, %v5301
    %v5303 = vpop.f32.mrb[0].mxu0
    %v5304 = vpop.f32.mrb[0].mxu0
    %v5305 = vadd.f32 %v3432, %v5304
    %v5306 = vpop.f32.mrb[0].mxu0
    %5307 = vdwg.mxu0
    %5308 = vmatprep.subr.bf16.mxu0 0
    %5309 = vmatpush1.bf16.msra.mxu0 %v4438
    %5310 = vmatprep.subr.bf16.mxu0 0
    %5311 = vmatpush1.bf16.msra.mxu0 %v4445
    %5312 = vmatprep.subr.bf16.mxu0 0
    %5313 = vmatpush1.bf16.msra.mxu0 %v4452
    %5314 = vmatprep.subr.bf16.mxu0 0
    %5315 = vmatpush1.bf16.msra.mxu0 %v4459
    %5316 = vmatprep.subr.bf16.mxu0 0
    %5317 = vmatpush1.bf16.msra.mxu0 %v4466
    %5318 = vmatprep.subr.bf16.mxu0 0
    %5319 = vmatpush1.bf16.msra.mxu0 %v4473
    %5320 = vmatprep.subr.bf16.mxu0 0
    %5321 = vmatpush1.bf16.msra.mxu0 %v4480
    %5322 = vmatprep.subr.bf16.mxu0 0
    %5323 = vmatpush1.bf16.msra.mxu0 %v4487
    %5324 = vmatprep.subr.bf16.mxu0 0
    %5325 = vmatpush1.bf16.msra.mxu0 %v4494
    %5326 = vmatprep.subr.bf16.mxu0 0
    %5327 = vmatpush1.bf16.msra.mxu0 %v4501
    %5328 = vmatprep.subr.bf16.mxu0 0
    %5329 = vmatpush1.bf16.msra.mxu0 %v4508
    %5330 = vmatprep.subr.bf16.mxu0 0
    %5331 = vmatpush1.bf16.msra.mxu0 %v4515
    %5332 = vmatprep.subr.bf16.mxu0 0
    %5333 = vmatpush1.bf16.msra.mxu0 %v4522
    %5334 = vmatprep.subr.bf16.mxu0 0
    %5335 = vmatpush1.bf16.msra.mxu0 %v4529
    %5336 = vmatprep.subr.bf16.mxu0 0
    %5337 = vmatpush1.bf16.msra.mxu0 %v4536
    %5338 = vmatprep.subr.bf16.mxu0 0
    %5339 = vmatpush1.bf16.msra.mxu0 %v4543
    %5340 = vmatprep.mubr.bf16.mxu0 %v3081
    %5341 = vmatmul.mubr.bf16.gmra.mrb[0].mxu0 %v3080
    %v5342 = vpop.f32.mrb[0].mxu0
    %v5343 = vadd.f32 %v5302, %v5342
    %v5344 = vpop.f32.mrb[0].mxu0
    %v5345 = vpop.f32.mrb[0].mxu0
    %v5346 = vadd.f32 %v5305, %v5345
    %v5347 = vpop.f32.mrb[0].mxu0
    %5348 = vdwg.mxu0
    %5349 = vmatprep.subr.bf16.mxu0 0
    %5350 = vmatpush1.bf16.msra.mxu0 %v4550
    %5351 = vmatprep.subr.bf16.mxu0 0
    %5352 = vmatpush1.bf16.msra.mxu0 %v4557
    %5353 = vmatprep.subr.bf16.mxu0 0
    %5354 = vmatpush1.bf16.msra.mxu0 %v4564
    %5355 = vmatprep.subr.bf16.mxu0 0
    %5356 = vmatpush1.bf16.msra.mxu0 %v4571
    %5357 = vmatprep.subr.bf16.mxu0 0
    %5358 = vmatpush1.bf16.msra.mxu0 %v4578
    %5359 = vmatprep.subr.bf16.mxu0 0
    %5360 = vmatpush1.bf16.msra.mxu0 %v4585
    %5361 = vmatprep.subr.bf16.mxu0 0
    %5362 = vmatpush1.bf16.msra.mxu0 %v4592
    %5363 = vmatprep.subr.bf16.mxu0 0
    %5364 = vmatpush1.bf16.msra.mxu0 %v4599
    %5365 = vmatprep.subr.bf16.mxu0 0
    %5366 = vmatpush1.bf16.msra.mxu0 0
    %5367 = vmatprep.subr.bf16.mxu0 0
    %5368 = vmatpush1.bf16.msra.mxu0 0
    %5369 = vmatprep.subr.bf16.mxu0 0
    %5370 = vmatpush1.bf16.msra.mxu0 0
    %5371 = vmatprep.subr.bf16.mxu0 0
    %5372 = vmatpush1.bf16.msra.mxu0 0
    %5373 = vmatprep.subr.bf16.mxu0 0
    %5374 = vmatpush1.bf16.msra.mxu0 0
    %5375 = vmatprep.subr.bf16.mxu0 0
    %5376 = vmatpush1.bf16.msra.mxu0 0
    %5377 = vmatprep.subr.bf16.mxu0 0
    %5378 = vmatpush1.bf16.msra.mxu0 0
    %5379 = vmatprep.subr.bf16.mxu0 0
    %5380 = vmatpush1.bf16.msra.mxu0 0
    %5381 = vmatprep.mubr.bf16.mxu0 0
    %5382 = vmatmul.mubr.bf16.gmra.mrb[0].mxu0 %v3082
    %v5383 = vpop.f32.mrb[0].mxu0
    %v5384 = vadd.f32 %v5343, %v5383
    %v5385 = vpop.f32.mrb[0].mxu0
    %v5386 = vpop.f32.mrb[0].mxu0
    %v5387 = vadd.f32 %v5346, %v5386
    %v5388 = vpop.f32.mrb[0].mxu0
    %5389 = vdwg.mxu0
    %v5390 = vmul.f32 %v5001, 0.5
    %v5391 = vmul.f32 %v5003, 0.5
    %v5392 = vmul.f32 %v5130, 0.5
    %v5393 = vmul.f32 %v5132, 0.5
    %v5394 = vmul.f32 %v5259, 0.5
    %v5395 = vmul.f32 %v5261, 0.5
    %v5396 = vmul.f32 %v5384, 0.5
    %v5397 = vmul.f32 %v5005, 0.5
    %v5398 = vmul.f32 %v5007, 0.5
    %v5399 = vmul.f32 %v5134, 0.5
    %v5400 = vmul.f32 %v5136, 0.5
    %v5401 = vmul.f32 %v5263, 0.5
    %v5402 = vmul.f32 %v5265, 0.5
    %v5403 = vmul.f32 %v5387, 0.5
    %v5404 = vtanh.pop %v5390
    %v5405 = vtanh.pop %v5391
    %v5406 = vtanh.pop %v5392
    %v5407 = vtanh.pop %v5393
    %v5408 = vtanh.pop %v5394
    %v5409 = vtanh.pop %v5395
    %v5410 = vtanh.pop %v5396
    %v5411 = vtanh.pop %v5397
    %v5412 = vtanh.pop %v5398
    %v5413 = vtanh.pop %v5399
    %v5414 = vtanh.pop %v5400
    %v5415 = vtanh.pop %v5401
    %v5416 = vtanh.pop %v5402
    %v5417 = vtanh.pop %v5403
    %v5418 = vmul.f32 %v5404, 0.5
    %v5419 = vmul.f32 %v5405, 0.5
    %v5420 = vmul.f32 %v5406, 0.5
    %v5421 = vmul.f32 %v5407, 0.5
    %v5422 = vmul.f32 %v5408, 0.5
    %v5423 = vmul.f32 %v5409, 0.5
    %v5424 = vmul.f32 %v5410, 0.5
    %v5425 = vmul.f32 %v5411, 0.5
    %v5426 = vmul.f32 %v5412, 0.5
    %v5427 = vmul.f32 %v5413, 0.5
    %v5428 = vmul.f32 %v5414, 0.5
    %v5429 = vmul.f32 %v5415, 0.5
    %v5430 = vmul.f32 %v5416, 0.5
    %v5431 = vmul.f32 %v5417, 0.5
    %v5432 = vadd.f32 %v5418, 0.5
    %v5433 = vadd.f32 %v5419, 0.5
    %v5434 = vadd.f32 %v5420, 0.5
    %v5435 = vadd.f32 %v5421, 0.5
    %v5436 = vadd.f32 %v5422, 0.5
    %v5437 = vadd.f32 %v5423, 0.5
    %v5438 = vadd.f32 %v5424, 0.5
    %v5439 = vadd.f32 %v5425, 0.5
    %v5440 = vadd.f32 %v5426, 0.5
    %v5441 = vadd.f32 %v5427, 0.5
    %v5442 = vadd.f32 %v5428, 0.5
    %v5443 = vadd.f32 %v5429, 0.5
    %v5444 = vadd.f32 %v5430, 0.5
    %v5445 = vadd.f32 %v5431, 0.5
    %5446 = vst [vmem:[#allocation2] sm:$0xff] %v5432
    %5447 = vst [vmem:[#allocation2 + $0x8] sm:$0xff] %v5433
    %5448 = vst [vmem:[#allocation2 + $0x10] sm:$0xff] %v5434
    %5449 = vst [vmem:[#allocation2 + $0x18] sm:$0xff] %v5435
    %5450 = vst [vmem:[#allocation2 + $0x20] sm:$0xff] %v5436
    %5451 = vst [vmem:[#allocation2 + $0x28] sm:$0xff] %v5437
    %5452 = vst.msk [vmem:[#allocation2 + $0x30] sm:$0xff] %vm1672, %v5438
    %5453 = vst [vmem:[#allocation2 + $0x38] sm:$0xff] %v5439
    %5454 = vst [vmem:[#allocation2 + $0x40] sm:$0xff] %v5440
    %5455 = vst [vmem:[#allocation2 + $0x48] sm:$0xff] %v5441
    %5456 = vst [vmem:[#allocation2 + $0x50] sm:$0xff] %v5442
    %5457 = vst [vmem:[#allocation2 + $0x58] sm:$0xff] %v5443
    %5458 = vst [vmem:[#allocation2 + $0x60] sm:$0xff] %v5444
    %5459 = vst.msk [vmem:[#allocation2 + $0x68] sm:$0xff] %vm1672, %v5445
    // Predicated region
    $region38: #{tpu_custom_call.1} parent=1 // pred_check
      _
    $region39: #{tpu_custom_call.1} parent=1 // pred_check_branch
      %5461 = sbr.rel (0) target = $region41
    $region40: #{tpu_custom_call.1} parent=1 // pred_region
      %s5463 = ssub.s32 1792, 1792
      %5464 = vsyncadd [#allocation3], %s5463
      %s5465 = sshll.u32 [#allocation2], 4
      %s5466 = int_to_ptr.vmem [resolvable:$true] %s5465
      %5471 = dma.vmem_to_hbm [thread:$0]  %s5466, 1792, %s9, [#allocation3], 896, 896, 56
    $region41: #{tpu_custom_call.1} parent=1 // pred_fallthru
      _
    // Predicated region
    $region42: #{tpu_custom_call.1} parent=1 // pred_check
      _
    $region43: #{tpu_custom_call.1} parent=1 // pred_check_branch
      %5473 = sbr.rel (0) target = $region45
    $region44: #{tpu_custom_call.1} parent=1 // pred_region
      %5474 = dma.done [#allocation3], 1792
    $region45: #{tpu_custom_call.1} parent=1 // pred_fallthru
      _
    %5475 = vsyncpa [#allocation3], 1

</llo_original>
